<compile_context>
chip_gen: v5e
topology: v5e:2x2
jax: 0.10.0
libtpu: 0.0.40
codegen_flags: <defaults>
</compile_context>

<pallas_src>
import jax
import jax.numpy as jnp
from jax.experimental import pallas as pl
from jax.experimental.pallas import tpu as pltpu


# ---------------------------------------------------------------------------
# Fused kernel: both BiConvNet branches (3 dots each) + bias + sum, in one body.
# ---------------------------------------------------------------------------
def _biconv_kernel(x_ref,
                   w1h_ref, b1h_ref, w2h_ref, b2h_ref, wlh_ref,
                   w1w_ref, b1w_ref, w2w_ref, b2w_ref, wlw_ref,
                   bout_ref, out_ref):
    bf16 = jnp.bfloat16
    x = x_ref[...].astype(bf16)                       # (bb, C*H*W)

    def branch(w1_ref, b1_ref, w2_ref, b2_ref, wl_ref):
        # Conv(1,W)/(H,1) over all positions at once: scattered (C*H*W, n_pos*2M) weight.
        hid = jnp.dot(x, w1_ref[...],
                      preferred_element_type=jnp.float32) + b1_ref[...]
        hid = jnp.maximum(hid, 0.01 * hid)            # nn.LeakyReLU(0.01)
        # 1x1 conv over all positions: block-diagonal (n_pos*2M, n_pos*M) weight.
        f = jnp.dot(hid.astype(bf16), w2_ref[...],
                    preferred_element_type=jnp.float32) + b2_ref[...]
        f = jnp.maximum(f, 0.0)                       # nn.ReLU
        # Linear(n_pos*M, out): channel-major flatten already folded into wl rows.
        return jnp.dot(f.astype(bf16), wl_ref[...],
                       preferred_element_type=jnp.float32)

    xh = branch(w1h_ref, b1h_ref, w2h_ref, b2h_ref, wlh_ref)
    xw = branch(w1w_ref, b1w_ref, w2w_ref, b2w_ref, wlw_ref)
    out_ref[...] = (xh + xw + bout_ref[...]).astype(out_ref.dtype)


# ---------------------------------------------------------------------------
# Wrapper helpers
# ---------------------------------------------------------------------------
def _batch_block(b):
    """Batch rows handled per grid step.

    Big blocks (up to 512) amortize the ~0.35us/step overhead; once the batch is
    large enough we keep >= 2 grid steps so the "parallel" axis can shard across
    the two TensorCores on v7x (one extra step is negligible on v5e/v6e).
    """
    if b < 16:
        return b                       # tiny batch: one full-size block
    cap = min(512, b // 2)             # guarantees >= 2 steps
    for d in range(cap, 7, -1):
        if b % d == 0 and d % 8 == 0:
            return d
    return b                           # no aligned divisor: single full block


def init_params(key, mid_dim, inp_dim, out_dim):
    """Synthetic parameters in PyTorch-native layout (Conv2d / Linear shapes)."""
    c, h, w = inp_dim
    m = mid_dim
    ks = jax.random.split(key, 12)

    def w_init(k, shape, fan_in):
        return jax.random.normal(k, shape, jnp.float32) / jnp.sqrt(float(fan_in))

    def b_init(k, n):
        return jax.random.normal(k, (n,), jnp.float32) * 0.05

    return {
        'conv1_h_w': w_init(ks[0], (2 * m, c, 1, w), c * w),
        'conv1_h_b': b_init(ks[1], 2 * m),
        'conv2_h_w': w_init(ks[2], (m, 2 * m, 1, 1), 2 * m),
        'conv2_h_b': b_init(ks[3], m),
        'lin_h_w': w_init(ks[4], (out_dim, h * m), h * m),
        'lin_h_b': b_init(ks[5], out_dim),
        'conv1_w_w': w_init(ks[6], (2 * m, c, h, 1), c * h),
        'conv1_w_b': b_init(ks[7], 2 * m),
        'conv2_w_w': w_init(ks[8], (m, 2 * m, 1, 1), 2 * m),
        'conv2_w_b': b_init(ks[9], m),
        'lin_w_w': w_init(ks[10], (out_dim, w * m), w * m),
        'lin_w_b': b_init(ks[11], out_dim),
    }


def prepare_params(p, mid_dim, inp_dim, out_dim):
    """One-time fold of conv structure + flatten order into big bf16 matmul weights.

    Input flat index (per batch row) is the plain NCHW order: c*H*W + h*W + w.
      h-branch: hid col = h*2M + k, f col = h*M + m, Linear rows ordered (h, m)
                and mapped to the PyTorch flatten index m*H + h.
      w-branch: same with the roles of H and W swapped (flatten index m*W + w).
    """
    c, h, w = inp_dim
    m = mid_dim
    bf, f32 = jnp.bfloat16, jnp.float32
    eye_h = jnp.eye(h, dtype=f32)
    eye_w = jnp.eye(w, dtype=f32)

    w1h = p['conv1_h_w'].reshape(2 * m, c, w)   # (2M, C, W)
    w2h = p['conv2_h_w'].reshape(m, 2 * m)      # (M, 2M)
    w1w = p['conv1_w_w'].reshape(2 * m, c, h)   # (2M, C, H)
    w2w = p['conv2_w_w'].reshape(m, 2 * m)

    return {
        # cnn_h: Conv2d(C, 2M, (1, W)) as one (C*H*W, H*2M) scattered weight.
        'w1h': jnp.einsum('hH,kcw->chwHk', eye_h, w1h)
                  .reshape(c * h * w, h * 2 * m).astype(bf),
        'b1h': jnp.tile(p['conv1_h_b'], h).reshape(1, h * 2 * m).astype(f32),
        # cnn_h: 1x1 conv as a block-diagonal (H*2M, H*M) weight.
        'w2h': jnp.einsum('hH,mk->hkHm', eye_h, w2h)
                  .reshape(h * 2 * m, h * m).astype(bf),
        'b2h': jnp.tile(p['conv2_h_b'], h).reshape(1, h * m).astype(f32),
        # cnn_h: Linear(H*M, out); PyTorch flatten index is m*H + h -> rows (h, m).
        'wlh': jnp.transpose(p['lin_h_w'].reshape(out_dim, m, h), (2, 1, 0))
                  .reshape(h * m, out_dim).astype(bf),
        # cnn_w: Conv2d(C, 2M, (H, 1)) as one (C*H*W, W*2M) scattered weight.
        'w1w': jnp.einsum('wV,kch->chwVk', eye_w, w1w)
                  .reshape(c * h * w, w * 2 * m).astype(bf),
        'b1w': jnp.tile(p['conv1_w_b'], w).reshape(1, w * 2 * m).astype(f32),
        'w2w': jnp.einsum('wV,mk->wkVm', eye_w, w2w)
                  .reshape(w * 2 * m, w * m).astype(bf),
        'b2w': jnp.tile(p['conv2_w_b'], w).reshape(1, w * m).astype(f32),
        # cnn_w: Linear(W*M, out); flatten index is m*W + w -> rows (w, m).
        'wlw': jnp.transpose(p['lin_w_w'].reshape(out_dim, m, w), (2, 1, 0))
                  .reshape(w * m, out_dim).astype(bf),
        # Both Linear biases pre-summed; added once after xh + xw.
        'bout': (p['lin_h_b'] + p['lin_w_b']).reshape(1, out_dim).astype(f32),
    }


def biconv_forward(state, q, mid_dim, inp_dim, out_dim):
    """BiConvNet.forward. state: (B, C, H, W) float32 (NCHW)."""
    b = state.shape[0]
    c, h, w = inp_dim
    m = mid_dim

    # Single input view: plain NCHW row-major flatten (free reshape, no transpose,
    # no duplicate copy).  bf16 cast happens inside the kernel.
    x = state.reshape(b, c * h * w)

    block_b = _batch_block(b)
    grid = (b // block_b,)

    weights = (q['w1h'], q['b1h'], q['w2h'], q['b2h'], q['wlh'],
               q['w1w'], q['b1w'], q['w2w'], q['b2w'], q['wlw'],
               q['bout'])

    # Grid-invariant full-block specs for the (small, ~2 MB total) weights.
    const_specs = [pl.BlockSpec(a.shape, lambda i: (0, 0)) for a in weights]

    in_specs = [pl.BlockSpec((block_b, c * h * w), lambda i: (i, 0))] + const_specs
    out_specs = pl.BlockSpec((block_b, out_dim), lambda i: (i, 0))

    flops = (2 * b * (c * h * w) * (h * 2 * m) + 2 * b * (h * 2 * m) * (h * m)
             + 2 * b * (h * m) * out_dim
             + 2 * b * (c * h * w) * (w * 2 * m) + 2 * b * (w * 2 * m) * (w * m)
             + 2 * b * (w * m) * out_dim)
    bytes_accessed = int(x.size * 4
                         + sum(int(a.size) * a.dtype.itemsize for a in weights)
                         + b * out_dim * 4)

    return pl.pallas_call(
        _biconv_kernel,
        out_shape=jax.ShapeDtypeStruct((b, out_dim), jnp.float32),
        grid=grid,
        in_specs=in_specs,
        out_specs=out_specs,
        compiler_params=pltpu.CompilerParams(
            dimension_semantics=("parallel",)),   # batch tiles shard across TCs (v7x)
        cost_estimate=pl.CostEstimate(flops=flops, transcendentals=0,
                                      bytes_accessed=bytes_accessed),
    )(x, *weights)


# ---------------------------------------------------------------------------
# Pure-JAX references for correctness checks
# ---------------------------------------------------------------------------
def reference_forward(state, p, mid_dim, inp_dim, out_dim):
    """Exact f32 reference mirroring the PyTorch BiConvNet forward."""
    b = state.shape[0]
    c, h, w = inp_dim
    m = mid_dim
    hp = jax.lax.Precision.HIGHEST
    lrelu = lambda v: jnp.where(v >= 0, v, 0.01 * v)

    yh = jnp.einsum('bchw,kcw->bkh', state, p['conv1_h_w'][:, :, 0, :],
                    precision=hp) + p['conv1_h_b'][None, :, None]
    yh = lrelu(yh)
    zh = jnp.einsum('bkh,mk->bmh', yh, p['conv2_h_w'][:, :, 0, 0],
                    precision=hp) + p['conv2_h_b'][None, :, None]
    zh = jnp.maximum(zh, 0.0)
    xh = jnp.dot(zh.reshape(b, m * h), p['lin_h_w'].T, precision=hp) + p['lin_h_b']

    yw = jnp.einsum('bchw,kch->bkw', state, p['conv1_w_w'][:, :, :, 0],
                    precision=hp) + p['conv1_w_b'][None, :, None]
    yw = lrelu(yw)
    zw = jnp.einsum('bkw,mk->bmw', yw, p['conv2_w_w'][:, :, 0, 0],
                    precision=hp) + p['conv2_w_b'][None, :, None]
    zw = jnp.maximum(zw, 0.0)
    xw = jnp.dot(zw.reshape(b, m * w), p['lin_w_w'].T, precision=hp) + p['lin_w_b']
    return xh + xw


def reference_forward_bf16(state, q, mid_dim, inp_dim, out_dim):
    """Same math as the kernel (bf16 matmul inputs, f32 accumulation), in plain JAX."""
    b = state.shape[0]
    c, h, w = inp_dim
    bf = jnp.bfloat16
    x = state.reshape(b, c * h * w).astype(bf)

    def branch(w1, b1, w2, b2, wl):
        hid = jnp.dot(x, w1, preferred_element_type=jnp.float32) + b1
        hid = jnp.maximum(hid, 0.01 * hid)
        f = jnp.dot(hid.astype(bf), w2, preferred_element_type=jnp.float32) + b2
        f = jnp.maximum(f, 0.0)
        return jnp.dot(f.astype(bf), wl, preferred_element_type=jnp.float32)

    return (branch(q['w1h'], q['b1h'], q['w2h'], q['b2h'], q['wlh'])
            + branch(q['w1w'], q['b1w'], q['w2w'], q['b2w'], q['wlw'])
            + q['bout'])


# ---------------------------------------------------------------------------
# Demo / self-test
# ---------------------------------------------------------------------------
if __name__ == "__main__":
    mid_dim = 32
    inp_dim = (2, 8, 16)           # (C, H, W)
    out_dim = 4 * mid_dim          # 128 (as used by elegantrl); lane-dense output
    batch = 2

    key = jax.random.PRNGKey(0)
    k_p, k_x, k_x2 = jax.random.split(key, 3)
    params = init_params(k_p, mid_dim, inp_dim, out_dim)
    q = prepare_params(params, mid_dim, inp_dim, out_dim)

    state = jax.random.normal(k_x, (batch,) + inp_dim, jnp.float32)   # NCHW

    out = jax.block_until_ready(biconv_forward(state, q, mid_dim, inp_dim, out_dim))
    assert out.shape == (batch, out_dim), out.shape
    assert bool(jnp.all(jnp.isfinite(out)))

    # Tight check against a reference doing the identical bf16-input / f32-accum math.
    ref_bf16 = reference_forward_bf16(state, q, mid_dim, inp_dim, out_dim)
    err_b = float(jnp.max(jnp.abs(out - ref_bf16)))
    assert jnp.allclose(out, ref_bf16, atol=2e-3, rtol=2e-3), err_b

    # Semantic check against the exact f32 PyTorch-equivalent forward; the looser
    # tolerance is the bf16 quantization budget of three stacked matmul layers.
    ref_f32 = reference_forward(state, params, mid_dim, inp_dim, out_dim)
    err_f = float(jnp.max(jnp.abs(out - ref_f32)))
    assert jnp.allclose(out, ref_f32, atol=5e-2, rtol=5e-2), err_f

    # Exercise the multi-step "parallel" batch grid (>= 2 steps -> v7x megacore path).
    big_b = 256
    state_big = jax.random.normal(k_x2, (big_b,) + inp_dim, jnp.float32)
    out_big = jax.block_until_ready(
        biconv_forward(state_big, q, mid_dim, inp_dim, out_dim))
    ref_big = reference_forward_bf16(state_big, q, mid_dim, inp_dim, out_dim)
    assert out_big.shape == (big_b, out_dim)
    assert jnp.allclose(out_big, ref_big, atol=2e-3, rtol=2e-3), \
        float(jnp.max(jnp.abs(out_big - ref_big)))

    print("KERNEL_OK")
</pallas_src>

<mosaic_0001>
module attributes {stable_mosaic.version = 11 : i64} {
  func.func @_biconv_kernel(%arg0: i32, %arg1: memref<2x256xf32, #tpu.memory_space<vmem>>, %arg2: memref<256x512xbf16, #tpu.memory_space<vmem>>, %arg3: memref<1x512xf32, #tpu.memory_space<vmem>>, %arg4: memref<512x256xbf16, #tpu.memory_space<vmem>>, %arg5: memref<1x256xf32, #tpu.memory_space<vmem>>, %arg6: memref<256x128xbf16, #tpu.memory_space<vmem>>, %arg7: memref<256x1024xbf16, #tpu.memory_space<vmem>>, %arg8: memref<1x1024xf32, #tpu.memory_space<vmem>>, %arg9: memref<1024x512xbf16, #tpu.memory_space<vmem>>, %arg10: memref<1x512xf32, #tpu.memory_space<vmem>>, %arg11: memref<512x128xbf16, #tpu.memory_space<vmem>>, %arg12: memref<1x128xf32, #tpu.memory_space<vmem>>, %arg13: memref<2x128xf32, #tpu.memory_space<vmem>>) attributes {dimension_semantics = [#tpu.dimension_semantics<parallel>], iteration_bounds = array<i64: 1>, scalar_prefetch = 0 : i64, scratch_operands = 0 : i64, tpu.core_type = #tpu.core_type<tc>, window_params = [{transform_indices = @transform_0, window_bounds = array<i64: 2, 256>}, {pipeline_mode = #tpu.pipeline_mode<synchronous>, transform_indices = @transform_1, window_bounds = array<i64: 256, 512>}, {pipeline_mode = #tpu.pipeline_mode<synchronous>, transform_indices = @transform_2, window_bounds = array<i64: 1, 512>}, {pipeline_mode = #tpu.pipeline_mode<synchronous>, transform_indices = @transform_3, window_bounds = array<i64: 512, 256>}, {pipeline_mode = #tpu.pipeline_mode<synchronous>, transform_indices = @transform_4, window_bounds = array<i64: 1, 256>}, {pipeline_mode = #tpu.pipeline_mode<synchronous>, transform_indices = @transform_5, window_bounds = array<i64: 256, 128>}, {pipeline_mode = #tpu.pipeline_mode<synchronous>, transform_indices = @transform_6, window_bounds = array<i64: 256, 1024>}, {pipeline_mode = #tpu.pipeline_mode<synchronous>, transform_indices = @transform_7, window_bounds = array<i64: 1, 1024>}, {pipeline_mode = #tpu.pipeline_mode<synchronous>, transform_indices = @transform_8, window_bounds = array<i64: 1024, 512>}, {pipeline_mode = #tpu.pipeline_mode<synchronous>, transform_indices = @transform_9, window_bounds = array<i64: 1, 512>}, {pipeline_mode = #tpu.pipeline_mode<synchronous>, transform_indices = @transform_10, window_bounds = array<i64: 512, 128>}, {pipeline_mode = #tpu.pipeline_mode<synchronous>, transform_indices = @transform_11, window_bounds = array<i64: 1, 128>}, {transform_indices = @transform_12, window_bounds = array<i64: 2, 128>}]} {
    %c0 = arith.constant 0 : index
    %c0_0 = arith.constant 0 : index
    %0 = vector.load %arg1[%c0, %c0_0] : memref<2x256xf32, #tpu.memory_space<vmem>>, vector<2x256xf32>
    %1 = arith.truncf %0 : vector<2x256xf32> to vector<2x256xbf16>
    %c0_1 = arith.constant 0 : index
    %c0_2 = arith.constant 0 : index
    %2 = vector.load %arg2[%c0_1, %c0_2] : memref<256x512xbf16, #tpu.memory_space<vmem>>, vector<256x512xbf16>
    %cst = arith.constant dense<0.000000e+00> : vector<2x512xf32>
    %3 = tpu.matmul %1, %2, %cst {dimension_numbers = #tpu.dot_dimension_numbers<[1], [0], [0], [1], [0, 0, 1, 1], [], []>} : vector<2x256xbf16>, vector<256x512xbf16>, vector<2x512xf32> -> vector<2x512xf32>
    %c0_3 = arith.constant 0 : index
    %c0_4 = arith.constant 0 : index
    %4 = vector.load %arg3[%c0_3, %c0_4] : memref<1x512xf32, #tpu.memory_space<vmem>>, vector<1x512xf32>
    %5 = vector.broadcast %4 : vector<1x512xf32> to vector<2x512xf32>
    %6 = arith.addf %3, %5 : vector<2x512xf32>
    %cst_5 = arith.constant 0.00999999977 : f32
    %7 = vector.broadcast %cst_5 : f32 to vector<2x512xf32>
    %8 = arith.mulf %7, %6 : vector<2x512xf32>
    %9 = arith.maximumf %6, %8 : vector<2x512xf32>
    %10 = arith.truncf %9 : vector<2x512xf32> to vector<2x512xbf16>
    %c0_6 = arith.constant 0 : index
    %c0_7 = arith.constant 0 : index
    %11 = vector.load %arg4[%c0_6, %c0_7] : memref<512x256xbf16, #tpu.memory_space<vmem>>, vector<512x256xbf16>
    %cst_8 = arith.constant dense<0.000000e+00> : vector<2x256xf32>
    %12 = tpu.matmul %10, %11, %cst_8 {dimension_numbers = #tpu.dot_dimension_numbers<[1], [0], [0], [1], [0, 0, 1, 1], [], []>} : vector<2x512xbf16>, vector<512x256xbf16>, vector<2x256xf32> -> vector<2x256xf32>
    %c0_9 = arith.constant 0 : index
    %c0_10 = arith.constant 0 : index
    %13 = vector.load %arg5[%c0_9, %c0_10] : memref<1x256xf32, #tpu.memory_space<vmem>>, vector<1x256xf32>
    %14 = vector.broadcast %13 : vector<1x256xf32> to vector<2x256xf32>
    %15 = arith.addf %12, %14 : vector<2x256xf32>
    %cst_11 = arith.constant 0.000000e+00 : f32
    %16 = vector.broadcast %cst_11 : f32 to vector<2x256xf32>
    %17 = arith.maximumf %15, %16 : vector<2x256xf32>
    %18 = arith.truncf %17 : vector<2x256xf32> to vector<2x256xbf16>
    %c0_12 = arith.constant 0 : index
    %c0_13 = arith.constant 0 : index
    %19 = vector.load %arg6[%c0_12, %c0_13] : memref<256x128xbf16, #tpu.memory_space<vmem>>, vector<256x128xbf16>
    %cst_14 = arith.constant dense<0.000000e+00> : vector<2x128xf32>
    %20 = tpu.matmul %18, %19, %cst_14 {dimension_numbers = #tpu.dot_dimension_numbers<[1], [0], [0], [1], [0, 0, 1, 1], [], []>} : vector<2x256xbf16>, vector<256x128xbf16>, vector<2x128xf32> -> vector<2x128xf32>
    %c0_15 = arith.constant 0 : index
    %c0_16 = arith.constant 0 : index
    %21 = vector.load %arg7[%c0_15, %c0_16] : memref<256x1024xbf16, #tpu.memory_space<vmem>>, vector<256x1024xbf16>
    %cst_17 = arith.constant dense<0.000000e+00> : vector<2x1024xf32>
    %22 = tpu.matmul %1, %21, %cst_17 {dimension_numbers = #tpu.dot_dimension_numbers<[1], [0], [0], [1], [0, 0, 1, 1], [], []>} : vector<2x256xbf16>, vector<256x1024xbf16>, vector<2x1024xf32> -> vector<2x1024xf32>
    %c0_18 = arith.constant 0 : index
    %c0_19 = arith.constant 0 : index
    %23 = vector.load %arg8[%c0_18, %c0_19] : memref<1x1024xf32, #tpu.memory_space<vmem>>, vector<1x1024xf32>
    %24 = vector.broadcast %23 : vector<1x1024xf32> to vector<2x1024xf32>
    %25 = arith.addf %22, %24 : vector<2x1024xf32>
    %cst_20 = arith.constant 0.00999999977 : f32
    %26 = vector.broadcast %cst_20 : f32 to vector<2x1024xf32>
    %27 = arith.mulf %26, %25 : vector<2x1024xf32>
    %28 = arith.maximumf %25, %27 : vector<2x1024xf32>
    %29 = arith.truncf %28 : vector<2x1024xf32> to vector<2x1024xbf16>
    %c0_21 = arith.constant 0 : index
    %c0_22 = arith.constant 0 : index
    %30 = vector.load %arg9[%c0_21, %c0_22] : memref<1024x512xbf16, #tpu.memory_space<vmem>>, vector<1024x512xbf16>
    %cst_23 = arith.constant dense<0.000000e+00> : vector<2x512xf32>
    %31 = tpu.matmul %29, %30, %cst_23 {dimension_numbers = #tpu.dot_dimension_numbers<[1], [0], [0], [1], [0, 0, 1, 1], [], []>} : vector<2x1024xbf16>, vector<1024x512xbf16>, vector<2x512xf32> -> vector<2x512xf32>
    %c0_24 = arith.constant 0 : index
    %c0_25 = arith.constant 0 : index
    %32 = vector.load %arg10[%c0_24, %c0_25] : memref<1x512xf32, #tpu.memory_space<vmem>>, vector<1x512xf32>
    %33 = vector.broadcast %32 : vector<1x512xf32> to vector<2x512xf32>
    %34 = arith.addf %31, %33 : vector<2x512xf32>
    %cst_26 = arith.constant 0.000000e+00 : f32
    %35 = vector.broadcast %cst_26 : f32 to vector<2x512xf32>
    %36 = arith.maximumf %34, %35 : vector<2x512xf32>
    %37 = arith.truncf %36 : vector<2x512xf32> to vector<2x512xbf16>
    %c0_27 = arith.constant 0 : index
    %c0_28 = arith.constant 0 : index
    %38 = vector.load %arg11[%c0_27, %c0_28] : memref<512x128xbf16, #tpu.memory_space<vmem>>, vector<512x128xbf16>
    %cst_29 = arith.constant dense<0.000000e+00> : vector<2x128xf32>
    %39 = tpu.matmul %37, %38, %cst_29 {dimension_numbers = #tpu.dot_dimension_numbers<[1], [0], [0], [1], [0, 0, 1, 1], [], []>} : vector<2x512xbf16>, vector<512x128xbf16>, vector<2x128xf32> -> vector<2x128xf32>
    %40 = arith.addf %20, %39 : vector<2x128xf32>
    %c0_30 = arith.constant 0 : index
    %c0_31 = arith.constant 0 : index
    %41 = vector.load %arg12[%c0_30, %c0_31] : memref<1x128xf32, #tpu.memory_space<vmem>>, vector<1x128xf32>
    %42 = vector.broadcast %41 : vector<1x128xf32> to vector<2x128xf32>
    %43 = arith.addf %40, %42 : vector<2x128xf32>
    %c0_32 = arith.constant 0 : index
    %c0_33 = arith.constant 0 : index
    %44 = vector.load %arg13[%c0_32, %c0_33] : memref<2x128xf32, #tpu.memory_space<vmem>>, vector<2x128xf32>
    tpu.vector_store %arg13[%c0_32, %c0_33], %43 {strides = array<i32>} : memref<2x128xf32, #tpu.memory_space<vmem>>, vector<2x128xf32>,
    return
  }
  func.func @transform_0(%arg0: i32) -> (i32, i32) {
    %c0_i32 = arith.constant 0 : i32
    %c0_i32_0 = arith.constant 0 : i32
    return %arg0, %c0_i32 : i32, i32
  }
  func.func @transform_1(%arg0: i32) -> (i32, i32) {
    %c0_i32 = arith.constant 0 : i32
    %c0_i32_0 = arith.constant 0 : i32
    %c0_i32_1 = arith.constant 0 : i32
    return %c0_i32, %c0_i32_0 : i32, i32
  }
  func.func @transform_2(%arg0: i32) -> (i32, i32) {
    %c0_i32 = arith.constant 0 : i32
    %c0_i32_0 = arith.constant 0 : i32
    %c0_i32_1 = arith.constant 0 : i32
    return %c0_i32, %c0_i32_0 : i32, i32
  }
  func.func @transform_3(%arg0: i32) -> (i32, i32) {
    %c0_i32 = arith.constant 0 : i32
    %c0_i32_0 = arith.constant 0 : i32
    %c0_i32_1 = arith.constant 0 : i32
    return %c0_i32, %c0_i32_0 : i32, i32
  }
  func.func @transform_4(%arg0: i32) -> (i32, i32) {
    %c0_i32 = arith.constant 0 : i32
    %c0_i32_0 = arith.constant 0 : i32
    %c0_i32_1 = arith.constant 0 : i32
    return %c0_i32, %c0_i32_0 : i32, i32
  }
  func.func @transform_5(%arg0: i32) -> (i32, i32) {
    %c0_i32 = arith.constant 0 : i32
    %c0_i32_0 = arith.constant 0 : i32
    %c0_i32_1 = arith.constant 0 : i32
    return %c0_i32, %c0_i32_0 : i32, i32
  }
  func.func @transform_6(%arg0: i32) -> (i32, i32) {
    %c0_i32 = arith.constant 0 : i32
    %c0_i32_0 = arith.constant 0 : i32
    %c0_i32_1 = arith.constant 0 : i32
    return %c0_i32, %c0_i32_0 : i32, i32
  }
  func.func @transform_7(%arg0: i32) -> (i32, i32) {
    %c0_i32 = arith.constant 0 : i32
    %c0_i32_0 = arith.constant 0 : i32
    %c0_i32_1 = arith.constant 0 : i32
    return %c0_i32, %c0_i32_0 : i32, i32
  }
  func.func @transform_8(%arg0: i32) -> (i32, i32) {
    %c0_i32 = arith.constant 0 : i32
    %c0_i32_0 = arith.constant 0 : i32
    %c0_i32_1 = arith.constant 0 : i32
    return %c0_i32, %c0_i32_0 : i32, i32
  }
  func.func @transform_9(%arg0: i32) -> (i32, i32) {
    %c0_i32 = arith.constant 0 : i32
    %c0_i32_0 = arith.constant 0 : i32
    %c0_i32_1 = arith.constant 0 : i32
    return %c0_i32, %c0_i32_0 : i32, i32
  }
  func.func @transform_10(%arg0: i32) -> (i32, i32) {
    %c0_i32 = arith.constant 0 : i32
    %c0_i32_0 = arith.constant 0 : i32
    %c0_i32_1 = arith.constant 0 : i32
    return %c0_i32, %c0_i32_0 : i32, i32
  }
  func.func @transform_11(%arg0: i32) -> (i32, i32) {
    %c0_i32 = arith.constant 0 : i32
    %c0_i32_0 = arith.constant 0 : i32
    %c0_i32_1 = arith.constant 0 : i32
    return %c0_i32, %c0_i32_0 : i32, i32
  }
  func.func @transform_12(%arg0: i32) -> (i32, i32) {
    %c0_i32 = arith.constant 0 : i32
    %c0_i32_0 = arith.constant 0 : i32
    return %arg0, %c0_i32 : i32, i32
  }
}

</mosaic_0001>

<llo_original>
// kernel: tpu_custom_call.1
$region0: #{tpu_custom_call.1}
  #allocation0 [shape = 'u32[]', space=smem, size = 0x4, offset = 0x4, fixed_abs, tag = 'smem constant byte address 0x4 - core index']
  #allocation1 [shape = 'u32[72,128]{1,0:T(1,128)}', space=vmem, size = 0x9000, scoped, tag = 'internal scratch']
  %s0 = inlined_call_operand.hbm [shape: f32[2,256], index: 0, kind: input, shape index: {}]
  %s1 = inlined_call_operand.hbm [shape: bf16[256,512], index: 1, kind: input, shape index: {}]
  %s2 = inlined_call_operand.hbm [shape: f32[1,512], index: 2, kind: input, shape index: {}]
  %s3 = inlined_call_operand.hbm [shape: bf16[512,256], index: 3, kind: input, shape index: {}]
  %s4 = inlined_call_operand.vmem [shape: f32[1,256], index: 4, kind: input, shape index: {}]
  %s5 = inlined_call_operand.hbm [shape: bf16[256,128], index: 5, kind: input, shape index: {}]
  %s6 = inlined_call_operand.hbm [shape: bf16[256,1024], index: 6, kind: input, shape index: {}]
  %s7 = inlined_call_operand.hbm [shape: f32[1,1024], index: 7, kind: input, shape index: {}]
  %s8 = inlined_call_operand.hbm [shape: bf16[1024,512], index: 8, kind: input, shape index: {}]
  %s9 = inlined_call_operand.vmem [shape: f32[1,512], index: 9, kind: input, shape index: {}]
  %s10 = inlined_call_operand.hbm [shape: bf16[512,128], index: 10, kind: input, shape index: {}]
  %s11 = inlined_call_operand.vmem [shape: f32[1,128], index: 11, kind: input, shape index: {}]
  %s12 = inlined_call_operand.hbm [shape: f32[2,128], index: 12, kind: output, shape index: {}]
  %s13 = sld [smem:[#allocation0]]
  $region94: #{tpu_custom_call.1} parent=0
    _
  %s15 = ssub.s32 1, %s13
  %s16 = scalar_select 0, %s15, %s13
  $region1: #{tpu_custom_call.1} parent=0
    #allocation2 [shape = 'u8[2048]{0}', space=vmem, size = 0x800, scoped, tag = 'input window, operand 0, single buffered']
    #allocation3 [shape = 's32[1]{0}', space=sflag, size = 0x4, scoped, tag = 'scoped memory for tpu_custom_call.1']
    #allocation4 [shape = 's32[1]{0}', space=sflag, size = 0x4, scoped, tag = 'scoped memory for tpu_custom_call.1']
    #allocation5 [shape = 'u8[262144]{0}', space=vmem, size = 0x40000, scoped, tag = 'input window, operand 1, single buffered']
    #allocation6 [shape = 's32[1]{0}', space=sflag, size = 0x4, scoped, tag = 'scoped memory for tpu_custom_call.1']
    #allocation7 [shape = 'u8[2048]{0}', space=vmem, size = 0x800, scoped, tag = 'input window, operand 2, single buffered']
    #allocation8 [shape = 'u8[262144]{0}', space=vmem, size = 0x40000, scoped, tag = 'input window, operand 3, single buffered']
    #allocation9 [shape = 's32[1]{0}', space=sflag, size = 0x4, scoped, tag = 'scoped memory for tpu_custom_call.1']
    #allocation10 [shape = 'u8[65536]{0}', space=vmem, size = 0x10000, scoped, tag = 'input window, operand 5, single buffered']
    #allocation11 [shape = 'u8[524288]{0}', space=vmem, size = 0x80000, scoped, tag = 'input window, operand 6, single buffered']
    #allocation12 [shape = 's32[1]{0}', space=sflag, size = 0x4, scoped, tag = 'scoped memory for tpu_custom_call.1']
    #allocation13 [shape = 'u8[4096]{0}', space=vmem, size = 0x1000, scoped, tag = 'input window, operand 7, single buffered']
    #allocation14 [shape = 'u8[1048576]{0}', space=vmem, size = 0x100000, scoped, tag = 'input window, operand 8, single buffered']
    #allocation15 [shape = 's32[1]{0}', space=sflag, size = 0x4, scoped, tag = 'scoped memory for tpu_custom_call.1']
    #allocation16 [shape = 'u8[131072]{0}', space=vmem, size = 0x20000, scoped, tag = 'input window, operand 10, single buffered']
    #allocation17 [shape = 'u8[1024]{0}', space=vmem, size = 0x400, scoped, tag = 'output window, operand 0, single buffered']
    %17 = vsyncpa [#allocation3], 0
    %18 = vsyncpa [#allocation6], 0
    %19 = vsyncpa [#allocation9], 0
    %20 = vsyncpa [#allocation12], 0
    %21 = vsyncpa [#allocation15], 0
    %22 = vsyncpa [#allocation4], 0
    // Predicated region
    $region2: #{tpu_custom_call.1} parent=1 // pred_check
      _
    $region3: #{tpu_custom_call.1} parent=1 // pred_check_branch
      %24 = sbr.rel (0) target = $region5
    $region4: #{tpu_custom_call.1} parent=1 // pred_region
      %26 = vsyncadd [#allocation3], 0
      %s28 = sshll.u32 %s0, 4
      %s29 = int_to_ptr.hbm [resolvable:$true] %s28
      %s30 = sshll.u32 [#allocation2], 4
      %s31 = int_to_ptr.vmem [resolvable:$true] %s30
      %33 = dma.hbm_to_vmem [thread:$0]  %s29, 64, %s31, [#allocation3]
    $region5: #{tpu_custom_call.1} parent=1 // pred_fallthru
      _
    // Predicated region
    $region6: #{tpu_custom_call.1} parent=1 // pred_check
      _
    $region7: #{tpu_custom_call.1} parent=1 // pred_check_branch
      %35 = sbr.rel (0) target = $region9
    $region8: #{tpu_custom_call.1} parent=1 // pred_region
      %37 = vsyncadd [#allocation6], 0
      %s38 = sshll.u32 %s1, 4
      %s39 = int_to_ptr.hbm [resolvable:$true] %s38
      %s40 = sshll.u32 [#allocation5], 4
      %s41 = int_to_ptr.vmem [resolvable:$true] %s40
      %46 = dma.hbm_to_vmem [thread:$0]  %s39, 8192, %s41, [#allocation6], 256, 256, 16
    $region9: #{tpu_custom_call.1} parent=1 // pred_fallthru
      _
    // Predicated region
    $region10: #{tpu_custom_call.1} parent=1 // pred_check
      _
    $region11: #{tpu_custom_call.1} parent=1 // pred_check_branch
      %48 = sbr.rel (0) target = $region13
    $region12: #{tpu_custom_call.1} parent=1 // pred_region
      %50 = vsyncadd [#allocation6], 0
      %s52 = sshll.u32 %s2, 4
      %s53 = int_to_ptr.hbm [resolvable:$true] %s52
      %s54 = sshll.u32 [#allocation7], 4
      %s55 = int_to_ptr.vmem [resolvable:$true] %s54
      %57 = dma.hbm_to_vmem [thread:$0]  %s53, 64, %s55, [#allocation6]
    $region13: #{tpu_custom_call.1} parent=1 // pred_fallthru
      _
    // Predicated region
    $region14: #{tpu_custom_call.1} parent=1 // pred_check
      _
    $region15: #{tpu_custom_call.1} parent=1 // pred_check_branch
      %59 = sbr.rel (0) target = $region17
    $region16: #{tpu_custom_call.1} parent=1 // pred_region
      %61 = vsyncadd [#allocation9], 0
      %s62 = sshll.u32 %s3, 4
      %s63 = int_to_ptr.hbm [resolvable:$true] %s62
      %s64 = sshll.u32 [#allocation8], 4
      %s65 = int_to_ptr.vmem [resolvable:$true] %s64
      %70 = dma.hbm_to_vmem [thread:$0]  %s63, 8192, %s65, [#allocation9], 128, 128, 8
    $region17: #{tpu_custom_call.1} parent=1 // pred_fallthru
      _
    // Predicated region
    $region18: #{tpu_custom_call.1} parent=1 // pred_check
      _
    $region19: #{tpu_custom_call.1} parent=1 // pred_check_branch
      %72 = sbr.rel (0) target = $region21
    $region20: #{tpu_custom_call.1} parent=1 // pred_region
      _
    $region21: #{tpu_custom_call.1} parent=1 // pred_fallthru
      _
    // Predicated region
    $region22: #{tpu_custom_call.1} parent=1 // pred_check
      _
    $region23: #{tpu_custom_call.1} parent=1 // pred_check_branch
      %74 = sbr.rel (0) target = $region25
    $region24: #{tpu_custom_call.1} parent=1 // pred_region
      %76 = vsyncadd [#allocation9], 0
      %s77 = sshll.u32 %s5, 4
      %s78 = int_to_ptr.hbm [resolvable:$true] %s77
      %s79 = sshll.u32 [#allocation10], 4
      %s80 = int_to_ptr.vmem [resolvable:$true] %s79
      %85 = dma.hbm_to_vmem [thread:$0]  %s78, 2048, %s80, [#allocation9], 64, 64, 4
    $region25: #{tpu_custom_call.1} parent=1 // pred_fallthru
      _
    // Predicated region
    $region26: #{tpu_custom_call.1} parent=1 // pred_check
      _
    $region27: #{tpu_custom_call.1} parent=1 // pred_check_branch
      %87 = sbr.rel (0) target = $region29
    $region28: #{tpu_custom_call.1} parent=1 // pred_region
      %89 = vsyncadd [#allocation12], 0
      %s90 = sshll.u32 %s6, 4
      %s91 = int_to_ptr.hbm [resolvable:$true] %s90
      %s92 = sshll.u32 [#allocation11], 4
      %s93 = int_to_ptr.vmem [resolvable:$true] %s92
      %98 = dma.hbm_to_vmem [thread:$0]  %s91, 16384, %s93, [#allocation12], 512, 512, 32
    $region29: #{tpu_custom_call.1} parent=1 // pred_fallthru
      _
    // Predicated region
    $region30: #{tpu_custom_call.1} parent=1 // pred_check
      _
    $region31: #{tpu_custom_call.1} parent=1 // pred_check_branch
      %100 = sbr.rel (0) target = $region33
    $region32: #{tpu_custom_call.1} parent=1 // pred_region
      %102 = vsyncadd [#allocation12], 0
      %s104 = sshll.u32 %s7, 4
      %s105 = int_to_ptr.hbm [resolvable:$true] %s104
      %s106 = sshll.u32 [#allocation13], 4
      %s107 = int_to_ptr.vmem [resolvable:$true] %s106
      %109 = dma.hbm_to_vmem [thread:$0]  %s105, 128, %s107, [#allocation12]
    $region33: #{tpu_custom_call.1} parent=1 // pred_fallthru
      _
    // Predicated region
    $region34: #{tpu_custom_call.1} parent=1 // pred_check
      _
    $region35: #{tpu_custom_call.1} parent=1 // pred_check_branch
      %111 = sbr.rel (0) target = $region37
    $region36: #{tpu_custom_call.1} parent=1 // pred_region
      %113 = vsyncadd [#allocation15], 0
      %s114 = sshll.u32 %s8, 4
      %s115 = int_to_ptr.hbm [resolvable:$true] %s114
      %s116 = sshll.u32 [#allocation14], 4
      %s117 = int_to_ptr.vmem [resolvable:$true] %s116
      %122 = dma.hbm_to_vmem [thread:$0]  %s115, 32768, %s117, [#allocation15], 256, 256, 16
    $region37: #{tpu_custom_call.1} parent=1 // pred_fallthru
      _
    // Predicated region
    $region38: #{tpu_custom_call.1} parent=1 // pred_check
      _
    $region39: #{tpu_custom_call.1} parent=1 // pred_check_branch
      %124 = sbr.rel (0) target = $region41
    $region40: #{tpu_custom_call.1} parent=1 // pred_region
      _
    $region41: #{tpu_custom_call.1} parent=1 // pred_fallthru
      _
    // Predicated region
    $region42: #{tpu_custom_call.1} parent=1 // pred_check
      _
    $region43: #{tpu_custom_call.1} parent=1 // pred_check_branch
      %126 = sbr.rel (0) target = $region45
    $region44: #{tpu_custom_call.1} parent=1 // pred_region
      %128 = vsyncadd [#allocation15], 0
      %s129 = sshll.u32 %s10, 4
      %s130 = int_to_ptr.hbm [resolvable:$true] %s129
      %s131 = sshll.u32 [#allocation16], 4
      %s132 = int_to_ptr.vmem [resolvable:$true] %s131
      %137 = dma.hbm_to_vmem [thread:$0]  %s130, 4096, %s132, [#allocation15], 64, 64, 4
    $region45: #{tpu_custom_call.1} parent=1 // pred_fallthru
      _
    // Predicated region
    $region46: #{tpu_custom_call.1} parent=1 // pred_check
      _
    $region47: #{tpu_custom_call.1} parent=1 // pred_check_branch
      %139 = sbr.rel (0) target = $region49
    $region48: #{tpu_custom_call.1} parent=1 // pred_region
      _
    $region49: #{tpu_custom_call.1} parent=1 // pred_fallthru
      _
    // Predicated region
    $region50: #{tpu_custom_call.1} parent=1 // pred_check
      _
    $region51: #{tpu_custom_call.1} parent=1 // pred_check_branch
      %141 = sbr.rel (0) target = $region53
    $region52: #{tpu_custom_call.1} parent=1 // pred_region
      %143 = dma.done [#allocation3], 64
    $region53: #{tpu_custom_call.1} parent=1 // pred_fallthru
      _
    // Predicated region
    $region54: #{tpu_custom_call.1} parent=1 // pred_check
      _
    $region55: #{tpu_custom_call.1} parent=1 // pred_check_branch
      %145 = sbr.rel (0) target = $region57
    $region56: #{tpu_custom_call.1} parent=1 // pred_region
      %147 = dma.done [#allocation6], 8192
    $region57: #{tpu_custom_call.1} parent=1 // pred_fallthru
      _
    // Predicated region
    $region58: #{tpu_custom_call.1} parent=1 // pred_check
      _
    $region59: #{tpu_custom_call.1} parent=1 // pred_check_branch
      %149 = sbr.rel (0) target = $region61
    $region60: #{tpu_custom_call.1} parent=1 // pred_region
      %151 = dma.done [#allocation6], 64
    $region61: #{tpu_custom_call.1} parent=1 // pred_fallthru
      _
    // Predicated region
    $region62: #{tpu_custom_call.1} parent=1 // pred_check
      _
    $region63: #{tpu_custom_call.1} parent=1 // pred_check_branch
      %153 = sbr.rel (0) target = $region65
    $region64: #{tpu_custom_call.1} parent=1 // pred_region
      %155 = dma.done [#allocation9], 8192
    $region65: #{tpu_custom_call.1} parent=1 // pred_fallthru
      _
    // Predicated region
    $region66: #{tpu_custom_call.1} parent=1 // pred_check
      _
    $region67: #{tpu_custom_call.1} parent=1 // pred_check_branch
      %157 = sbr.rel (0) target = $region69
    $region68: #{tpu_custom_call.1} parent=1 // pred_region
      %159 = dma.done [#allocation9], 2048
    $region69: #{tpu_custom_call.1} parent=1 // pred_fallthru
      _
    // Predicated region
    $region70: #{tpu_custom_call.1} parent=1 // pred_check
      _
    $region71: #{tpu_custom_call.1} parent=1 // pred_check_branch
      %161 = sbr.rel (0) target = $region73
    $region72: #{tpu_custom_call.1} parent=1 // pred_region
      %163 = dma.done [#allocation12], 16384
    $region73: #{tpu_custom_call.1} parent=1 // pred_fallthru
      _
    // Predicated region
    $region74: #{tpu_custom_call.1} parent=1 // pred_check
      _
    $region75: #{tpu_custom_call.1} parent=1 // pred_check_branch
      %165 = sbr.rel (0) target = $region77
    $region76: #{tpu_custom_call.1} parent=1 // pred_region
      %167 = dma.done [#allocation12], 128
    $region77: #{tpu_custom_call.1} parent=1 // pred_fallthru
      _
    // Predicated region
    $region78: #{tpu_custom_call.1} parent=1 // pred_check
      _
    $region79: #{tpu_custom_call.1} parent=1 // pred_check_branch
      %169 = sbr.rel (0) target = $region81
    $region80: #{tpu_custom_call.1} parent=1 // pred_region
      %171 = dma.done [#allocation15], 32768
    $region81: #{tpu_custom_call.1} parent=1 // pred_fallthru
      _
    // Predicated region
    $region82: #{tpu_custom_call.1} parent=1 // pred_check
      _
    $region83: #{tpu_custom_call.1} parent=1 // pred_check_branch
      %173 = sbr.rel (0) target = $region85
    $region84: #{tpu_custom_call.1} parent=1 // pred_region
      %175 = dma.done [#allocation15], 4096
    $region85: #{tpu_custom_call.1} parent=1 // pred_fallthru
      _
    %v176 = vld [vmem:[#allocation2] sm:$0xf]
    %178 = vst [vmem:[#allocation1] ss:$4 sm:$0xff] %v176
    %v179 = vld.sshfl [vmem:[#allocation1] sm:$0xff pattern:$0x73625140]
    %v180 = vld.sshfl [vmem:[#allocation1 + $0x8] sm:$0xff pattern:$0x73625140]
    %v183 = vpack.c.bf16 %v179, %v179
    %v184 = vpack.c.bf16 %v180, %v180
    %v185 = vld [vmem:[#allocation5] sm:$0xff]
    %v186 = vld [vmem:[#allocation5 + $0x8] sm:$0xff]
    %v187 = vld [vmem:[#allocation5 + $0x10] sm:$0xff]
    %v188 = vld [vmem:[#allocation5 + $0x18] sm:$0xff]
    %v189 = vld [vmem:[#allocation5 + $0x20] sm:$0xff]
    %v190 = vld [vmem:[#allocation5 + $0x28] sm:$0xff]
    %v191 = vld [vmem:[#allocation5 + $0x30] sm:$0xff]
    %v192 = vld [vmem:[#allocation5 + $0x38] sm:$0xff]
    %v193 = vld [vmem:[#allocation5 + $0x40] sm:$0xff]
    %v194 = vld [vmem:[#allocation5 + $0x48] sm:$0xff]
    %v195 = vld [vmem:[#allocation5 + $0x50] sm:$0xff]
    %v196 = vld [vmem:[#allocation5 + $0x58] sm:$0xff]
    %v197 = vld [vmem:[#allocation5 + $0x60] sm:$0xff]
    %v198 = vld [vmem:[#allocation5 + $0x68] sm:$0xff]
    %v199 = vld [vmem:[#allocation5 + $0x70] sm:$0xff]
    %v200 = vld [vmem:[#allocation5 + $0x78] sm:$0xff]
    %v201 = vld [vmem:[#allocation5 + $0x80] sm:$0xff]
    %v202 = vld [vmem:[#allocation5 + $0x88] sm:$0xff]
    %v203 = vld [vmem:[#allocation5 + $0x90] sm:$0xff]
    %v204 = vld [vmem:[#allocation5 + $0x98] sm:$0xff]
    %v205 = vld [vmem:[#allocation5 + $0xa0] sm:$0xff]
    %v206 = vld [vmem:[#allocation5 + $0xa8] sm:$0xff]
    %v207 = vld [vmem:[#allocation5 + $0xb0] sm:$0xff]
    %v208 = vld [vmem:[#allocation5 + $0xb8] sm:$0xff]
    %v209 = vld [vmem:[#allocation5 + $0xc0] sm:$0xff]
    %v210 = vld [vmem:[#allocation5 + $0xc8] sm:$0xff]
    %v211 = vld [vmem:[#allocation5 + $0xd0] sm:$0xff]
    %v212 = vld [vmem:[#allocation5 + $0xd8] sm:$0xff]
    %v213 = vld [vmem:[#allocation5 + $0xe0] sm:$0xff]
    %v214 = vld [vmem:[#allocation5 + $0xe8] sm:$0xff]
    %v215 = vld [vmem:[#allocation5 + $0xf0] sm:$0xff]
    %v216 = vld [vmem:[#allocation5 + $0xf8] sm:$0xff]
    %v217 = vld [vmem:[#allocation5 + $0x100] sm:$0xff]
    %v218 = vld [vmem:[#allocation5 + $0x108] sm:$0xff]
    %v219 = vld [vmem:[#allocation5 + $0x110] sm:$0xff]
    %v220 = vld [vmem:[#allocation5 + $0x118] sm:$0xff]
    %v221 = vld [vmem:[#allocation5 + $0x120] sm:$0xff]
    %v222 = vld [vmem:[#allocation5 + $0x128] sm:$0xff]
    %v223 = vld [vmem:[#allocation5 + $0x130] sm:$0xff]
    %v224 = vld [vmem:[#allocation5 + $0x138] sm:$0xff]
    %v225 = vld [vmem:[#allocation5 + $0x140] sm:$0xff]
    %v226 = vld [vmem:[#allocation5 + $0x148] sm:$0xff]
    %v227 = vld [vmem:[#allocation5 + $0x150] sm:$0xff]
    %v228 = vld [vmem:[#allocation5 + $0x158] sm:$0xff]
    %v229 = vld [vmem:[#allocation5 + $0x160] sm:$0xff]
    %v230 = vld [vmem:[#allocation5 + $0x168] sm:$0xff]
    %v231 = vld [vmem:[#allocation5 + $0x170] sm:$0xff]
    %v232 = vld [vmem:[#allocation5 + $0x178] sm:$0xff]
    %v233 = vld [vmem:[#allocation5 + $0x180] sm:$0xff]
    %v234 = vld [vmem:[#allocation5 + $0x188] sm:$0xff]
    %v235 = vld [vmem:[#allocation5 + $0x190] sm:$0xff]
    %v236 = vld [vmem:[#allocation5 + $0x198] sm:$0xff]
    %v237 = vld [vmem:[#allocation5 + $0x1a0] sm:$0xff]
    %v238 = vld [vmem:[#allocation5 + $0x1a8] sm:$0xff]
    %v239 = vld [vmem:[#allocation5 + $0x1b0] sm:$0xff]
    %v240 = vld [vmem:[#allocation5 + $0x1b8] sm:$0xff]
    %v241 = vld [vmem:[#allocation5 + $0x1c0] sm:$0xff]
    %v242 = vld [vmem:[#allocation5 + $0x1c8] sm:$0xff]
    %v243 = vld [vmem:[#allocation5 + $0x1d0] sm:$0xff]
    %v244 = vld [vmem:[#allocation5 + $0x1d8] sm:$0xff]
    %v245 = vld [vmem:[#allocation5 + $0x1e0] sm:$0xff]
    %v246 = vld [vmem:[#allocation5 + $0x1e8] sm:$0xff]
    %v247 = vld [vmem:[#allocation5 + $0x1f0] sm:$0xff]
    %v248 = vld [vmem:[#allocation5 + $0x1f8] sm:$0xff]
    %v249 = vld [vmem:[#allocation7] sm:$0xf]
    %v251 = vperm.slane %v249, 0
    %v252 = vperm.slane %v249, 1
    %v253 = vperm.slane %v249, 2
    %v254 = vperm.slane %v249, 3
    %v323 = vunpack.c.l.b16 %v185
    %v324 = vunpack.c.h.b16 %v185
    %v325 = vunpack.c.l.b16 %v186
    %v326 = vunpack.c.h.b16 %v186
    %v327 = vunpack.c.l.b16 %v187
    %v328 = vunpack.c.h.b16 %v187
    %v329 = vunpack.c.l.b16 %v188
    %v330 = vunpack.c.h.b16 %v188
    %v331 = vunpack.c.l.b16 %v189
    %v332 = vunpack.c.h.b16 %v189
    %v333 = vunpack.c.l.b16 %v190
    %v334 = vunpack.c.h.b16 %v190
    %v335 = vunpack.c.l.b16 %v191
    %v336 = vunpack.c.h.b16 %v191
    %v337 = vunpack.c.l.b16 %v192
    %v338 = vunpack.c.h.b16 %v192
    %v339 = vunpack.c.l.b16 %v193
    %v340 = vunpack.c.h.b16 %v193
    %v341 = vunpack.c.l.b16 %v194
    %v342 = vunpack.c.h.b16 %v194
    %v343 = vunpack.c.l.b16 %v195
    %v344 = vunpack.c.h.b16 %v195
    %v345 = vunpack.c.l.b16 %v196
    %v346 = vunpack.c.h.b16 %v196
    %v347 = vunpack.c.l.b16 %v197
    %v348 = vunpack.c.h.b16 %v197
    %v349 = vunpack.c.l.b16 %v198
    %v350 = vunpack.c.h.b16 %v198
    %v351 = vunpack.c.l.b16 %v199
    %v352 = vunpack.c.h.b16 %v199
    %v353 = vunpack.c.l.b16 %v200
    %v354 = vunpack.c.h.b16 %v200
    %v355 = vunpack.c.l.b16 %v201
    %v356 = vunpack.c.h.b16 %v201
    %v357 = vunpack.c.l.b16 %v202
    %v358 = vunpack.c.h.b16 %v202
    %v359 = vunpack.c.l.b16 %v203
    %v360 = vunpack.c.h.b16 %v203
    %v361 = vunpack.c.l.b16 %v204
    %v362 = vunpack.c.h.b16 %v204
    %v363 = vunpack.c.l.b16 %v205
    %v364 = vunpack.c.h.b16 %v205
    %v365 = vunpack.c.l.b16 %v206
    %v366 = vunpack.c.h.b16 %v206
    %v367 = vunpack.c.l.b16 %v207
    %v368 = vunpack.c.h.b16 %v207
    %v369 = vunpack.c.l.b16 %v208
    %v370 = vunpack.c.h.b16 %v208
    %v371 = vunpack.c.l.b16 %v209
    %v372 = vunpack.c.h.b16 %v209
    %v373 = vunpack.c.l.b16 %v210
    %v374 = vunpack.c.h.b16 %v210
    %v375 = vunpack.c.l.b16 %v211
    %v376 = vunpack.c.h.b16 %v211
    %v377 = vunpack.c.l.b16 %v212
    %v378 = vunpack.c.h.b16 %v212
    %v379 = vunpack.c.l.b16 %v213
    %v380 = vunpack.c.h.b16 %v213
    %v381 = vunpack.c.l.b16 %v214
    %v382 = vunpack.c.h.b16 %v214
    %v383 = vunpack.c.l.b16 %v215
    %v384 = vunpack.c.h.b16 %v215
    %v385 = vunpack.c.l.b16 %v216
    %v386 = vunpack.c.h.b16 %v216
    %v387 = vunpack.c.l.b16 %v217
    %v388 = vunpack.c.h.b16 %v217
    %v389 = vunpack.c.l.b16 %v218
    %v390 = vunpack.c.h.b16 %v218
    %v391 = vunpack.c.l.b16 %v219
    %v392 = vunpack.c.h.b16 %v219
    %v393 = vunpack.c.l.b16 %v220
    %v394 = vunpack.c.h.b16 %v220
    %v395 = vunpack.c.l.b16 %v221
    %v396 = vunpack.c.h.b16 %v221
    %v397 = vunpack.c.l.b16 %v222
    %v398 = vunpack.c.h.b16 %v222
    %v399 = vunpack.c.l.b16 %v223
    %v400 = vunpack.c.h.b16 %v223
    %v401 = vunpack.c.l.b16 %v224
    %v402 = vunpack.c.h.b16 %v224
    %v403 = vunpack.c.l.b16 %v225
    %v404 = vunpack.c.h.b16 %v225
    %v405 = vunpack.c.l.b16 %v226
    %v406 = vunpack.c.h.b16 %v226
    %v407 = vunpack.c.l.b16 %v227
    %v408 = vunpack.c.h.b16 %v227
    %v409 = vunpack.c.l.b16 %v228
    %v410 = vunpack.c.h.b16 %v228
    %v411 = vunpack.c.l.b16 %v229
    %v412 = vunpack.c.h.b16 %v229
    %v413 = vunpack.c.l.b16 %v230
    %v414 = vunpack.c.h.b16 %v230
    %v415 = vunpack.c.l.b16 %v231
    %v416 = vunpack.c.h.b16 %v231
    %v417 = vunpack.c.l.b16 %v232
    %v418 = vunpack.c.h.b16 %v232
    %v419 = vunpack.c.l.b16 %v233
    %v420 = vunpack.c.h.b16 %v233
    %v421 = vunpack.c.l.b16 %v234
    %v422 = vunpack.c.h.b16 %v234
    %v423 = vunpack.c.l.b16 %v235
    %v424 = vunpack.c.h.b16 %v235
    %v425 = vunpack.c.l.b16 %v236
    %v426 = vunpack.c.h.b16 %v236
    %v427 = vunpack.c.l.b16 %v237
    %v428 = vunpack.c.h.b16 %v237
    %v429 = vunpack.c.l.b16 %v238
    %v430 = vunpack.c.h.b16 %v238
    %v431 = vunpack.c.l.b16 %v239
    %v432 = vunpack.c.h.b16 %v239
    %v433 = vunpack.c.l.b16 %v240
    %v434 = vunpack.c.h.b16 %v240
    %v435 = vunpack.c.l.b16 %v241
    %v436 = vunpack.c.h.b16 %v241
    %v437 = vunpack.c.l.b16 %v242
    %v438 = vunpack.c.h.b16 %v242
    %v439 = vunpack.c.l.b16 %v243
    %v440 = vunpack.c.h.b16 %v243
    %v441 = vunpack.c.l.b16 %v244
    %v442 = vunpack.c.h.b16 %v244
    %v443 = vunpack.c.l.b16 %v245
    %v444 = vunpack.c.h.b16 %v245
    %v445 = vunpack.c.l.b16 %v246
    %v446 = vunpack.c.h.b16 %v246
    %v447 = vunpack.c.l.b16 %v247
    %v448 = vunpack.c.h.b16 %v247
    %v449 = vunpack.c.l.b16 %v248
    %v450 = vunpack.c.h.b16 %v248
    %v451 = vpack.c.b16 %v327, %v323
    %v452 = vpack.c.b16 %v328, %v324
    %v453 = vpack.c.b16 %v329, %v325
    %v454 = vpack.c.b16 %v330, %v326
    %v455 = vpack.c.b16 %v335, %v331
    %v456 = vpack.c.b16 %v336, %v332
    %v457 = vpack.c.b16 %v337, %v333
    %v458 = vpack.c.b16 %v338, %v334
    %v459 = vpack.c.b16 %v343, %v339
    %v460 = vpack.c.b16 %v344, %v340
    %v461 = vpack.c.b16 %v345, %v341
    %v462 = vpack.c.b16 %v346, %v342
    %v463 = vpack.c.b16 %v351, %v347
    %v464 = vpack.c.b16 %v352, %v348
    %v465 = vpack.c.b16 %v353, %v349
    %v466 = vpack.c.b16 %v354, %v350
    %v467 = vpack.c.b16 %v359, %v355
    %v468 = vpack.c.b16 %v360, %v356
    %v469 = vpack.c.b16 %v361, %v357
    %v470 = vpack.c.b16 %v362, %v358
    %v471 = vpack.c.b16 %v367, %v363
    %v472 = vpack.c.b16 %v368, %v364
    %v473 = vpack.c.b16 %v369, %v365
    %v474 = vpack.c.b16 %v370, %v366
    %v475 = vpack.c.b16 %v375, %v371
    %v476 = vpack.c.b16 %v376, %v372
    %v477 = vpack.c.b16 %v377, %v373
    %v478 = vpack.c.b16 %v378, %v374
    %v479 = vpack.c.b16 %v383, %v379
    %v480 = vpack.c.b16 %v384, %v380
    %v481 = vpack.c.b16 %v385, %v381
    %v482 = vpack.c.b16 %v386, %v382
    %v483 = vpack.c.b16 %v391, %v387
    %v484 = vpack.c.b16 %v392, %v388
    %v485 = vpack.c.b16 %v393, %v389
    %v486 = vpack.c.b16 %v394, %v390
    %v487 = vpack.c.b16 %v399, %v395
    %v488 = vpack.c.b16 %v400, %v396
    %v489 = vpack.c.b16 %v401, %v397
    %v490 = vpack.c.b16 %v402, %v398
    %v491 = vpack.c.b16 %v407, %v403
    %v492 = vpack.c.b16 %v408, %v404
    %v493 = vpack.c.b16 %v409, %v405
    %v494 = vpack.c.b16 %v410, %v406
    %v495 = vpack.c.b16 %v415, %v411
    %v496 = vpack.c.b16 %v416, %v412
    %v497 = vpack.c.b16 %v417, %v413
    %v498 = vpack.c.b16 %v418, %v414
    %v499 = vpack.c.b16 %v423, %v419
    %v500 = vpack.c.b16 %v424, %v420
    %v501 = vpack.c.b16 %v425, %v421
    %v502 = vpack.c.b16 %v426, %v422
    %v503 = vpack.c.b16 %v431, %v427
    %v504 = vpack.c.b16 %v432, %v428
    %v505 = vpack.c.b16 %v433, %v429
    %v506 = vpack.c.b16 %v434, %v430
    %v507 = vpack.c.b16 %v439, %v435
    %v508 = vpack.c.b16 %v440, %v436
    %v509 = vpack.c.b16 %v441, %v437
    %v510 = vpack.c.b16 %v442, %v438
    %v511 = vpack.c.b16 %v447, %v443
    %v512 = vpack.c.b16 %v448, %v444
    %v513 = vpack.c.b16 %v449, %v445
    %v514 = vpack.c.b16 %v450, %v446
    %579 = vmatpush.bf16.msra.mxu0 %v479
    %580 = vmatpush.bf16.msra.mxu0 %v475
    %581 = vmatpush.bf16.msra.mxu0 %v471
    %582 = vmatpush.bf16.msra.mxu0 %v467
    %583 = vmatpush.bf16.msra.mxu0 %v463
    %584 = vmatpush.bf16.msra.mxu0 %v459
    %585 = vmatpush.bf16.msra.mxu0 %v455
    %586 = vmatpush.bf16.msra.mxu0 %v451
    %587 = vmatmul.bf16.gmra.mxu0 %v183
    %v588 = vpop.f32.mrf.mxu0
    %v589 = vadd.f32 %v251, %v588
    %v590 = vpop.f32.mrf.mxu0
    %591 = vdwg.mxu0
    %592 = vmatpush.bf16.msra.mxu0 %v511
    %593 = vmatpush.bf16.msra.mxu0 %v507
    %594 = vmatpush.bf16.msra.mxu0 %v503
    %595 = vmatpush.bf16.msra.mxu0 %v499
    %596 = vmatpush.bf16.msra.mxu0 %v495
    %597 = vmatpush.bf16.msra.mxu0 %v491
    %598 = vmatpush.bf16.msra.mxu0 %v487
    %599 = vmatpush.bf16.msra.mxu0 %v483
    %600 = vmatmul.bf16.gmra.mxu0 %v184
    %v601 = vpop.f32.mrf.mxu0
    %v602 = vadd.f32 %v589, %v601
    %v603 = vpop.f32.mrf.mxu0
    %604 = vdwg.mxu0
    %605 = vmatpush.bf16.msra.mxu0 %v480
    %606 = vmatpush.bf16.msra.mxu0 %v476
    %607 = vmatpush.bf16.msra.mxu0 %v472
    %608 = vmatpush.bf16.msra.mxu0 %v468
    %609 = vmatpush.bf16.msra.mxu0 %v464
    %610 = vmatpush.bf16.msra.mxu0 %v460
    %611 = vmatpush.bf16.msra.mxu0 %v456
    %612 = vmatpush.bf16.msra.mxu0 %v452
    %613 = vmatmul.bf16.gmra.mxu0 %v183
    %v614 = vpop.f32.mrf.mxu0
    %v615 = vadd.f32 %v252, %v614
    %v616 = vpop.f32.mrf.mxu0
    %617 = vdwg.mxu0
    %618 = vmatpush.bf16.msra.mxu0 %v512
    %619 = vmatpush.bf16.msra.mxu0 %v508
    %620 = vmatpush.bf16.msra.mxu0 %v504
    %621 = vmatpush.bf16.msra.mxu0 %v500
    %622 = vmatpush.bf16.msra.mxu0 %v496
    %623 = vmatpush.bf16.msra.mxu0 %v492
    %624 = vmatpush.bf16.msra.mxu0 %v488
    %625 = vmatpush.bf16.msra.mxu0 %v484
    %626 = vmatmul.bf16.gmra.mxu0 %v184
    %v627 = vpop.f32.mrf.mxu0
    %v628 = vadd.f32 %v615, %v627
    %v629 = vpop.f32.mrf.mxu0
    %630 = vdwg.mxu0
    %631 = vmatpush.bf16.msra.mxu0 %v481
    %632 = vmatpush.bf16.msra.mxu0 %v477
    %633 = vmatpush.bf16.msra.mxu0 %v473
    %634 = vmatpush.bf16.msra.mxu0 %v469
    %635 = vmatpush.bf16.msra.mxu0 %v465
    %636 = vmatpush.bf16.msra.mxu0 %v461
    %637 = vmatpush.bf16.msra.mxu0 %v457
    %638 = vmatpush.bf16.msra.mxu0 %v453
    %639 = vmatmul.bf16.gmra.mxu0 %v183
    %v640 = vpop.f32.mrf.mxu0
    %v641 = vadd.f32 %v253, %v640
    %v642 = vpop.f32.mrf.mxu0
    %643 = vdwg.mxu0
    %644 = vmatpush.bf16.msra.mxu0 %v513
    %645 = vmatpush.bf16.msra.mxu0 %v509
    %646 = vmatpush.bf16.msra.mxu0 %v505
    %647 = vmatpush.bf16.msra.mxu0 %v501
    %648 = vmatpush.bf16.msra.mxu0 %v497
    %649 = vmatpush.bf16.msra.mxu0 %v493
    %650 = vmatpush.bf16.msra.mxu0 %v489
    %651 = vmatpush.bf16.msra.mxu0 %v485
    %652 = vmatmul.bf16.gmra.mxu0 %v184
    %v653 = vpop.f32.mrf.mxu0
    %v654 = vadd.f32 %v641, %v653
    %v655 = vpop.f32.mrf.mxu0
    %656 = vdwg.mxu0
    %657 = vmatpush.bf16.msra.mxu0 %v482
    %658 = vmatpush.bf16.msra.mxu0 %v478
    %659 = vmatpush.bf16.msra.mxu0 %v474
    %660 = vmatpush.bf16.msra.mxu0 %v470
    %661 = vmatpush.bf16.msra.mxu0 %v466
    %662 = vmatpush.bf16.msra.mxu0 %v462
    %663 = vmatpush.bf16.msra.mxu0 %v458
    %664 = vmatpush.bf16.msra.mxu0 %v454
    %665 = vmatmul.bf16.gmra.mxu0 %v183
    %v666 = vpop.f32.mrf.mxu0
    %v667 = vadd.f32 %v254, %v666
    %v668 = vpop.f32.mrf.mxu0
    %669 = vdwg.mxu0
    %670 = vmatpush.bf16.msra.mxu0 %v514
    %671 = vmatpush.bf16.msra.mxu0 %v510
    %672 = vmatpush.bf16.msra.mxu0 %v506
    %673 = vmatpush.bf16.msra.mxu0 %v502
    %674 = vmatpush.bf16.msra.mxu0 %v498
    %675 = vmatpush.bf16.msra.mxu0 %v494
    %676 = vmatpush.bf16.msra.mxu0 %v490
    %677 = vmatpush.bf16.msra.mxu0 %v486
    %678 = vmatmul.bf16.gmra.mxu0 %v184
    %v679 = vpop.f32.mrf.mxu0
    %v680 = vadd.f32 %v667, %v679
    %v681 = vpop.f32.mrf.mxu0
    %682 = vdwg.mxu0
    %v683 = vmul.f32 %v602, 0.01
    %v684 = vmul.f32 %v628, 0.01
    %v685 = vmul.f32 %v654, 0.01
    %v686 = vmul.f32 %v680, 0.01
    %v687 = vmax.f32 %v602, %v683
    %v688 = vmax.f32 %v628, %v684
    %v689 = vmax.f32 %v654, %v685
    %v690 = vmax.f32 %v680, %v686
    %v691 = vpack.c.bf16 %v687, %v687
    %v692 = vpack.c.bf16 %v688, %v688
    %v693 = vpack.c.bf16 %v689, %v689
    %v694 = vpack.c.bf16 %v690, %v690
    %v695 = vld [vmem:[#allocation8] sm:$0xff]
    %v696 = vld [vmem:[#allocation8 + $0x8] sm:$0xff]
    %v697 = vld [vmem:[#allocation8 + $0x10] sm:$0xff]
    %v698 = vld [vmem:[#allocation8 + $0x18] sm:$0xff]
    %v699 = vld [vmem:[#allocation8 + $0x20] sm:$0xff]
    %v700 = vld [vmem:[#allocation8 + $0x28] sm:$0xff]
    %v701 = vld [vmem:[#allocation8 + $0x30] sm:$0xff]
    %v702 = vld [vmem:[#allocation8 + $0x38] sm:$0xff]
    %v703 = vld [vmem:[#allocation8 + $0x40] sm:$0xff]
    %v704 = vld [vmem:[#allocation8 + $0x48] sm:$0xff]
    %v705 = vld [vmem:[#allocation8 + $0x50] sm:$0xff]
    %v706 = vld [vmem:[#allocation8 + $0x58] sm:$0xff]
    %v707 = vld [vmem:[#allocation8 + $0x60] sm:$0xff]
    %v708 = vld [vmem:[#allocation8 + $0x68] sm:$0xff]
    %v709 = vld [vmem:[#allocation8 + $0x70] sm:$0xff]
    %v710 = vld [vmem:[#allocation8 + $0x78] sm:$0xff]
    %v711 = vld [vmem:[#allocation8 + $0x80] sm:$0xff]
    %v712 = vld [vmem:[#allocation8 + $0x88] sm:$0xff]
    %v713 = vld [vmem:[#allocation8 + $0x90] sm:$0xff]
    %v714 = vld [vmem:[#allocation8 + $0x98] sm:$0xff]
    %v715 = vld [vmem:[#allocation8 + $0xa0] sm:$0xff]
    %v716 = vld [vmem:[#allocation8 + $0xa8] sm:$0xff]
    %v717 = vld [vmem:[#allocation8 + $0xb0] sm:$0xff]
    %v718 = vld [vmem:[#allocation8 + $0xb8] sm:$0xff]
    %v719 = vld [vmem:[#allocation8 + $0xc0] sm:$0xff]
    %v720 = vld [vmem:[#allocation8 + $0xc8] sm:$0xff]
    %v721 = vld [vmem:[#allocation8 + $0xd0] sm:$0xff]
    %v722 = vld [vmem:[#allocation8 + $0xd8] sm:$0xff]
    %v723 = vld [vmem:[#allocation8 + $0xe0] sm:$0xff]
    %v724 = vld [vmem:[#allocation8 + $0xe8] sm:$0xff]
    %v725 = vld [vmem:[#allocation8 + $0xf0] sm:$0xff]
    %v726 = vld [vmem:[#allocation8 + $0xf8] sm:$0xff]
    %v727 = vld [vmem:[#allocation8 + $0x100] sm:$0xff]
    %v728 = vld [vmem:[#allocation8 + $0x108] sm:$0xff]
    %v729 = vld [vmem:[#allocation8 + $0x110] sm:$0xff]
    %v730 = vld [vmem:[#allocation8 + $0x118] sm:$0xff]
    %v731 = vld [vmem:[#allocation8 + $0x120] sm:$0xff]
    %v732 = vld [vmem:[#allocation8 + $0x128] sm:$0xff]
    %v733 = vld [vmem:[#allocation8 + $0x130] sm:$0xff]
    %v734 = vld [vmem:[#allocation8 + $0x138] sm:$0xff]
    %v735 = vld [vmem:[#allocation8 + $0x140] sm:$0xff]
    %v736 = vld [vmem:[#allocation8 + $0x148] sm:$0xff]
    %v737 = vld [vmem:[#allocation8 + $0x150] sm:$0xff]
    %v738 = vld [vmem:[#allocation8 + $0x158] sm:$0xff]
    %v739 = vld [vmem:[#allocation8 + $0x160] sm:$0xff]
    %v740 = vld [vmem:[#allocation8 + $0x168] sm:$0xff]
    %v741 = vld [vmem:[#allocation8 + $0x170] sm:$0xff]
    %v742 = vld [vmem:[#allocation8 + $0x178] sm:$0xff]
    %v743 = vld [vmem:[#allocation8 + $0x180] sm:$0xff]
    %v744 = vld [vmem:[#allocation8 + $0x188] sm:$0xff]
    %v745 = vld [vmem:[#allocation8 + $0x190] sm:$0xff]
    %v746 = vld [vmem:[#allocation8 + $0x198] sm:$0xff]
    %v747 = vld [vmem:[#allocation8 + $0x1a0] sm:$0xff]
    %v748 = vld [vmem:[#allocation8 + $0x1a8] sm:$0xff]
    %v749 = vld [vmem:[#allocation8 + $0x1b0] sm:$0xff]
    %v750 = vld [vmem:[#allocation8 + $0x1b8] sm:$0xff]
    %v751 = vld [vmem:[#allocation8 + $0x1c0] sm:$0xff]
    %v752 = vld [vmem:[#allocation8 + $0x1c8] sm:$0xff]
    %v753 = vld [vmem:[#allocation8 + $0x1d0] sm:$0xff]
    %v754 = vld [vmem:[#allocation8 + $0x1d8] sm:$0xff]
    %v755 = vld [vmem:[#allocation8 + $0x1e0] sm:$0xff]
    %v756 = vld [vmem:[#allocation8 + $0x1e8] sm:$0xff]
    %v757 = vld [vmem:[#allocation8 + $0x1f0] sm:$0xff]
    %v758 = vld [vmem:[#allocation8 + $0x1f8] sm:$0xff]
    %v759 = vld [vmem:[%s4] sm:$0x3]
    %v761 = vperm.slane %v759, 0
    %v762 = vperm.slane %v759, 1
    %v829 = vunpack.c.l.b16 %v695
    %v830 = vunpack.c.h.b16 %v695
    %v831 = vunpack.c.l.b16 %v696
    %v832 = vunpack.c.h.b16 %v696
    %v833 = vunpack.c.l.b16 %v697
    %v834 = vunpack.c.h.b16 %v697
    %v835 = vunpack.c.l.b16 %v698
    %v836 = vunpack.c.h.b16 %v698
    %v837 = vunpack.c.l.b16 %v699
    %v838 = vunpack.c.h.b16 %v699
    %v839 = vunpack.c.l.b16 %v700
    %v840 = vunpack.c.h.b16 %v700
    %v841 = vunpack.c.l.b16 %v701
    %v842 = vunpack.c.h.b16 %v701
    %v843 = vunpack.c.l.b16 %v702
    %v844 = vunpack.c.h.b16 %v702
    %v845 = vunpack.c.l.b16 %v703
    %v846 = vunpack.c.h.b16 %v703
    %v847 = vunpack.c.l.b16 %v704
    %v848 = vunpack.c.h.b16 %v704
    %v849 = vunpack.c.l.b16 %v705
    %v850 = vunpack.c.h.b16 %v705
    %v851 = vunpack.c.l.b16 %v706
    %v852 = vunpack.c.h.b16 %v706
    %v853 = vunpack.c.l.b16 %v707
    %v854 = vunpack.c.h.b16 %v707
    %v855 = vunpack.c.l.b16 %v708
    %v856 = vunpack.c.h.b16 %v708
    %v857 = vunpack.c.l.b16 %v709
    %v858 = vunpack.c.h.b16 %v709
    %v859 = vunpack.c.l.b16 %v710
    %v860 = vunpack.c.h.b16 %v710
    %v861 = vunpack.c.l.b16 %v711
    %v862 = vunpack.c.h.b16 %v711
    %v863 = vunpack.c.l.b16 %v712
    %v864 = vunpack.c.h.b16 %v712
    %v865 = vunpack.c.l.b16 %v713
    %v866 = vunpack.c.h.b16 %v713
    %v867 = vunpack.c.l.b16 %v714
    %v868 = vunpack.c.h.b16 %v714
    %v869 = vunpack.c.l.b16 %v715
    %v870 = vunpack.c.h.b16 %v715
    %v871 = vunpack.c.l.b16 %v716
    %v872 = vunpack.c.h.b16 %v716
    %v873 = vunpack.c.l.b16 %v717
    %v874 = vunpack.c.h.b16 %v717
    %v875 = vunpack.c.l.b16 %v718
    %v876 = vunpack.c.h.b16 %v718
    %v877 = vunpack.c.l.b16 %v719
    %v878 = vunpack.c.h.b16 %v719
    %v879 = vunpack.c.l.b16 %v720
    %v880 = vunpack.c.h.b16 %v720
    %v881 = vunpack.c.l.b16 %v721
    %v882 = vunpack.c.h.b16 %v721
    %v883 = vunpack.c.l.b16 %v722
    %v884 = vunpack.c.h.b16 %v722
    %v885 = vunpack.c.l.b16 %v723
    %v886 = vunpack.c.h.b16 %v723
    %v887 = vunpack.c.l.b16 %v724
    %v888 = vunpack.c.h.b16 %v724
    %v889 = vunpack.c.l.b16 %v725
    %v890 = vunpack.c.h.b16 %v725
    %v891 = vunpack.c.l.b16 %v726
    %v892 = vunpack.c.h.b16 %v726
    %v893 = vunpack.c.l.b16 %v727
    %v894 = vunpack.c.h.b16 %v727
    %v895 = vunpack.c.l.b16 %v728
    %v896 = vunpack.c.h.b16 %v728
    %v897 = vunpack.c.l.b16 %v729
    %v898 = vunpack.c.h.b16 %v729
    %v899 = vunpack.c.l.b16 %v730
    %v900 = vunpack.c.h.b16 %v730
    %v901 = vunpack.c.l.b16 %v731
    %v902 = vunpack.c.h.b16 %v731
    %v903 = vunpack.c.l.b16 %v732
    %v904 = vunpack.c.h.b16 %v732
    %v905 = vunpack.c.l.b16 %v733
    %v906 = vunpack.c.h.b16 %v733
    %v907 = vunpack.c.l.b16 %v734
    %v908 = vunpack.c.h.b16 %v734
    %v909 = vunpack.c.l.b16 %v735
    %v910 = vunpack.c.h.b16 %v735
    %v911 = vunpack.c.l.b16 %v736
    %v912 = vunpack.c.h.b16 %v736
    %v913 = vunpack.c.l.b16 %v737
    %v914 = vunpack.c.h.b16 %v737
    %v915 = vunpack.c.l.b16 %v738
    %v916 = vunpack.c.h.b16 %v738
    %v917 = vunpack.c.l.b16 %v739
    %v918 = vunpack.c.h.b16 %v739
    %v919 = vunpack.c.l.b16 %v740
    %v920 = vunpack.c.h.b16 %v740
    %v921 = vunpack.c.l.b16 %v741
    %v922 = vunpack.c.h.b16 %v741
    %v923 = vunpack.c.l.b16 %v742
    %v924 = vunpack.c.h.b16 %v742
    %v925 = vunpack.c.l.b16 %v743
    %v926 = vunpack.c.h.b16 %v743
    %v927 = vunpack.c.l.b16 %v744
    %v928 = vunpack.c.h.b16 %v744
    %v929 = vunpack.c.l.b16 %v745
    %v930 = vunpack.c.h.b16 %v745
    %v931 = vunpack.c.l.b16 %v746
    %v932 = vunpack.c.h.b16 %v746
    %v933 = vunpack.c.l.b16 %v747
    %v934 = vunpack.c.h.b16 %v747
    %v935 = vunpack.c.l.b16 %v748
    %v936 = vunpack.c.h.b16 %v748
    %v937 = vunpack.c.l.b16 %v749
    %v938 = vunpack.c.h.b16 %v749
    %v939 = vunpack.c.l.b16 %v750
    %v940 = vunpack.c.h.b16 %v750
    %v941 = vunpack.c.l.b16 %v751
    %v942 = vunpack.c.h.b16 %v751
    %v943 = vunpack.c.l.b16 %v752
    %v944 = vunpack.c.h.b16 %v752
    %v945 = vunpack.c.l.b16 %v753
    %v946 = vunpack.c.h.b16 %v753
    %v947 = vunpack.c.l.b16 %v754
    %v948 = vunpack.c.h.b16 %v754
    %v949 = vunpack.c.l.b16 %v755
    %v950 = vunpack.c.h.b16 %v755
    %v951 = vunpack.c.l.b16 %v756
    %v952 = vunpack.c.h.b16 %v756
    %v953 = vunpack.c.l.b16 %v757
    %v954 = vunpack.c.h.b16 %v757
    %v955 = vunpack.c.l.b16 %v758
    %v956 = vunpack.c.h.b16 %v758
    %v957 = vpack.c.b16 %v831, %v829
    %v958 = vpack.c.b16 %v832, %v830
    %v959 = vpack.c.b16 %v835, %v833
    %v960 = vpack.c.b16 %v836, %v834
    %v961 = vpack.c.b16 %v839, %v837
    %v962 = vpack.c.b16 %v840, %v838
    %v963 = vpack.c.b16 %v843, %v841
    %v964 = vpack.c.b16 %v844, %v842
    %v965 = vpack.c.b16 %v847, %v845
    %v966 = vpack.c.b16 %v848, %v846
    %v967 = vpack.c.b16 %v851, %v849
    %v968 = vpack.c.b16 %v852, %v850
    %v969 = vpack.c.b16 %v855, %v853
    %v970 = vpack.c.b16 %v856, %v854
    %v971 = vpack.c.b16 %v859, %v857
    %v972 = vpack.c.b16 %v860, %v858
    %v973 = vpack.c.b16 %v863, %v861
    %v974 = vpack.c.b16 %v864, %v862
    %v975 = vpack.c.b16 %v867, %v865
    %v976 = vpack.c.b16 %v868, %v866
    %v977 = vpack.c.b16 %v871, %v869
    %v978 = vpack.c.b16 %v872, %v870
    %v979 = vpack.c.b16 %v875, %v873
    %v980 = vpack.c.b16 %v876, %v874
    %v981 = vpack.c.b16 %v879, %v877
    %v982 = vpack.c.b16 %v880, %v878
    %v983 = vpack.c.b16 %v883, %v881
    %v984 = vpack.c.b16 %v884, %v882
    %v985 = vpack.c.b16 %v887, %v885
    %v986 = vpack.c.b16 %v888, %v886
    %v987 = vpack.c.b16 %v891, %v889
    %v988 = vpack.c.b16 %v892, %v890
    %v989 = vpack.c.b16 %v895, %v893
    %v990 = vpack.c.b16 %v896, %v894
    %v991 = vpack.c.b16 %v899, %v897
    %v992 = vpack.c.b16 %v900, %v898
    %v993 = vpack.c.b16 %v903, %v901
    %v994 = vpack.c.b16 %v904, %v902
    %v995 = vpack.c.b16 %v907, %v905
    %v996 = vpack.c.b16 %v908, %v906
    %v997 = vpack.c.b16 %v911, %v909
    %v998 = vpack.c.b16 %v912, %v910
    %v999 = vpack.c.b16 %v915, %v913
    %v1000 = vpack.c.b16 %v916, %v914
    %v1001 = vpack.c.b16 %v919, %v917
    %v1002 = vpack.c.b16 %v920, %v918
    %v1003 = vpack.c.b16 %v923, %v921
    %v1004 = vpack.c.b16 %v924, %v922
    %v1005 = vpack.c.b16 %v927, %v925
    %v1006 = vpack.c.b16 %v928, %v926
    %v1007 = vpack.c.b16 %v931, %v929
    %v1008 = vpack.c.b16 %v932, %v930
    %v1009 = vpack.c.b16 %v935, %v933
    %v1010 = vpack.c.b16 %v936, %v934
    %v1011 = vpack.c.b16 %v939, %v937
    %v1012 = vpack.c.b16 %v940, %v938
    %v1013 = vpack.c.b16 %v943, %v941
    %v1014 = vpack.c.b16 %v944, %v942
    %v1015 = vpack.c.b16 %v947, %v945
    %v1016 = vpack.c.b16 %v948, %v946
    %v1017 = vpack.c.b16 %v951, %v949
    %v1018 = vpack.c.b16 %v952, %v950
    %v1019 = vpack.c.b16 %v955, %v953
    %v1020 = vpack.c.b16 %v956, %v954
    %1085 = vmatpush.bf16.msra.mxu0 %v971
    %1086 = vmatpush.bf16.msra.mxu0 %v969
    %1087 = vmatpush.bf16.msra.mxu0 %v967
    %1088 = vmatpush.bf16.msra.mxu0 %v965
    %1089 = vmatpush.bf16.msra.mxu0 %v963
    %1090 = vmatpush.bf16.msra.mxu0 %v961
    %1091 = vmatpush.bf16.msra.mxu0 %v959
    %1092 = vmatpush.bf16.msra.mxu0 %v957
    %1093 = vmatmul.bf16.gmra.mxu0 %v691
    %v1094 = vpop.f32.mrf.mxu0
    %v1095 = vadd.f32 %v761, %v1094
    %v1096 = vpop.f32.mrf.mxu0
    %1097 = vdwg.mxu0
    %1098 = vmatpush.bf16.msra.mxu0 %v987
    %1099 = vmatpush.bf16.msra.mxu0 %v985
    %1100 = vmatpush.bf16.msra.mxu0 %v983
    %1101 = vmatpush.bf16.msra.mxu0 %v981
    %1102 = vmatpush.bf16.msra.mxu0 %v979
    %1103 = vmatpush.bf16.msra.mxu0 %v977
    %1104 = vmatpush.bf16.msra.mxu0 %v975
    %1105 = vmatpush.bf16.msra.mxu0 %v973
    %1106 = vmatmul.bf16.gmra.mxu0 %v692
    %v1107 = vpop.f32.mrf.mxu0
    %v1108 = vadd.f32 %v1095, %v1107
    %v1109 = vpop.f32.mrf.mxu0
    %1110 = vdwg.mxu0
    %1111 = vmatpush.bf16.msra.mxu0 %v1003
    %1112 = vmatpush.bf16.msra.mxu0 %v1001
    %1113 = vmatpush.bf16.msra.mxu0 %v999
    %1114 = vmatpush.bf16.msra.mxu0 %v997
    %1115 = vmatpush.bf16.msra.mxu0 %v995
    %1116 = vmatpush.bf16.msra.mxu0 %v993
    %1117 = vmatpush.bf16.msra.mxu0 %v991
    %1118 = vmatpush.bf16.msra.mxu0 %v989
    %1119 = vmatmul.bf16.gmra.mxu0 %v693
    %v1120 = vpop.f32.mrf.mxu0
    %v1121 = vadd.f32 %v1108, %v1120
    %v1122 = vpop.f32.mrf.mxu0
    %1123 = vdwg.mxu0
    %1124 = vmatpush.bf16.msra.mxu0 %v1019
    %1125 = vmatpush.bf16.msra.mxu0 %v1017
    %1126 = vmatpush.bf16.msra.mxu0 %v1015
    %1127 = vmatpush.bf16.msra.mxu0 %v1013
    %1128 = vmatpush.bf16.msra.mxu0 %v1011
    %1129 = vmatpush.bf16.msra.mxu0 %v1009
    %1130 = vmatpush.bf16.msra.mxu0 %v1007
    %1131 = vmatpush.bf16.msra.mxu0 %v1005
    %1132 = vmatmul.bf16.gmra.mxu0 %v694
    %v1133 = vpop.f32.mrf.mxu0
    %v1134 = vadd.f32 %v1121, %v1133
    %v1135 = vpop.f32.mrf.mxu0
    %1136 = vdwg.mxu0
    %1137 = vmatpush.bf16.msra.mxu0 %v972
    %1138 = vmatpush.bf16.msra.mxu0 %v970
    %1139 = vmatpush.bf16.msra.mxu0 %v968
    %1140 = vmatpush.bf16.msra.mxu0 %v966
    %1141 = vmatpush.bf16.msra.mxu0 %v964
    %1142 = vmatpush.bf16.msra.mxu0 %v962
    %1143 = vmatpush.bf16.msra.mxu0 %v960
    %1144 = vmatpush.bf16.msra.mxu0 %v958
    %1145 = vmatmul.bf16.gmra.mxu0 %v691
    %v1146 = vpop.f32.mrf.mxu0
    %v1147 = vadd.f32 %v762, %v1146
    %v1148 = vpop.f32.mrf.mxu0
    %1149 = vdwg.mxu0
    %1150 = vmatpush.bf16.msra.mxu0 %v988
    %1151 = vmatpush.bf16.msra.mxu0 %v986
    %1152 = vmatpush.bf16.msra.mxu0 %v984
    %1153 = vmatpush.bf16.msra.mxu0 %v982
    %1154 = vmatpush.bf16.msra.mxu0 %v980
    %1155 = vmatpush.bf16.msra.mxu0 %v978
    %1156 = vmatpush.bf16.msra.mxu0 %v976
    %1157 = vmatpush.bf16.msra.mxu0 %v974
    %1158 = vmatmul.bf16.gmra.mxu0 %v692
    %v1159 = vpop.f32.mrf.mxu0
    %v1160 = vadd.f32 %v1147, %v1159
    %v1161 = vpop.f32.mrf.mxu0
    %1162 = vdwg.mxu0
    %1163 = vmatpush.bf16.msra.mxu0 %v1004
    %1164 = vmatpush.bf16.msra.mxu0 %v1002
    %1165 = vmatpush.bf16.msra.mxu0 %v1000
    %1166 = vmatpush.bf16.msra.mxu0 %v998
    %1167 = vmatpush.bf16.msra.mxu0 %v996
    %1168 = vmatpush.bf16.msra.mxu0 %v994
    %1169 = vmatpush.bf16.msra.mxu0 %v992
    %1170 = vmatpush.bf16.msra.mxu0 %v990
    %1171 = vmatmul.bf16.gmra.mxu0 %v693
    %v1172 = vpop.f32.mrf.mxu0
    %v1173 = vadd.f32 %v1160, %v1172
    %v1174 = vpop.f32.mrf.mxu0
    %1175 = vdwg.mxu0
    %1176 = vmatpush.bf16.msra.mxu0 %v1020
    %1177 = vmatpush.bf16.msra.mxu0 %v1018
    %1178 = vmatpush.bf16.msra.mxu0 %v1016
    %1179 = vmatpush.bf16.msra.mxu0 %v1014
    %1180 = vmatpush.bf16.msra.mxu0 %v1012
    %1181 = vmatpush.bf16.msra.mxu0 %v1010
    %1182 = vmatpush.bf16.msra.mxu0 %v1008
    %1183 = vmatpush.bf16.msra.mxu0 %v1006
    %1184 = vmatmul.bf16.gmra.mxu0 %v694
    %v1185 = vpop.f32.mrf.mxu0
    %v1186 = vadd.f32 %v1173, %v1185
    %v1187 = vpop.f32.mrf.mxu0
    %1188 = vdwg.mxu0
    %v1189 = vmax.f32 %v1134, 0.0
    %v1190 = vmax.f32 %v1186, 0.0
    %v1191 = vpack.c.bf16 %v1189, %v1189
    %v1192 = vpack.c.bf16 %v1190, %v1190
    %v1193 = vld [vmem:[#allocation10] sm:$0xf]
    %v1194 = vld [vmem:[#allocation10 + $0x4] sm:$0xf]
    %v1195 = vld [vmem:[#allocation10 + $0x8] sm:$0xf]
    %v1196 = vld [vmem:[#allocation10 + $0xc] sm:$0xf]
    %v1197 = vld [vmem:[#allocation10 + $0x10] sm:$0xf]
    %v1198 = vld [vmem:[#allocation10 + $0x14] sm:$0xf]
    %v1199 = vld [vmem:[#allocation10 + $0x18] sm:$0xf]
    %v1200 = vld [vmem:[#allocation10 + $0x1c] sm:$0xf]
    %v1201 = vld [vmem:[#allocation10 + $0x20] sm:$0xf]
    %v1202 = vld [vmem:[#allocation10 + $0x24] sm:$0xf]
    %v1203 = vld [vmem:[#allocation10 + $0x28] sm:$0xf]
    %v1204 = vld [vmem:[#allocation10 + $0x2c] sm:$0xf]
    %v1205 = vld [vmem:[#allocation10 + $0x30] sm:$0xf]
    %v1206 = vld [vmem:[#allocation10 + $0x34] sm:$0xf]
    %v1207 = vld [vmem:[#allocation10 + $0x38] sm:$0xf]
    %v1208 = vld [vmem:[#allocation10 + $0x3c] sm:$0xf]
    %v1209 = vld [vmem:[#allocation10 + $0x40] sm:$0xf]
    %v1210 = vld [vmem:[#allocation10 + $0x44] sm:$0xf]
    %v1211 = vld [vmem:[#allocation10 + $0x48] sm:$0xf]
    %v1212 = vld [vmem:[#allocation10 + $0x4c] sm:$0xf]
    %v1213 = vld [vmem:[#allocation10 + $0x50] sm:$0xf]
    %v1214 = vld [vmem:[#allocation10 + $0x54] sm:$0xf]
    %v1215 = vld [vmem:[#allocation10 + $0x58] sm:$0xf]
    %v1216 = vld [vmem:[#allocation10 + $0x5c] sm:$0xf]
    %v1217 = vld [vmem:[#allocation10 + $0x60] sm:$0xf]
    %v1218 = vld [vmem:[#allocation10 + $0x64] sm:$0xf]
    %v1219 = vld [vmem:[#allocation10 + $0x68] sm:$0xf]
    %v1220 = vld [vmem:[#allocation10 + $0x6c] sm:$0xf]
    %v1221 = vld [vmem:[#allocation10 + $0x70] sm:$0xf]
    %v1222 = vld [vmem:[#allocation10 + $0x74] sm:$0xf]
    %v1223 = vld [vmem:[#allocation10 + $0x78] sm:$0xf]
    %v1224 = vld [vmem:[#allocation10 + $0x7c] sm:$0xf]
    %v1225 = vld [vmem:[#allocation11] sm:$0xff]
    %v1226 = vld [vmem:[#allocation11 + $0x8] sm:$0xff]
    %v1227 = vld [vmem:[#allocation11 + $0x10] sm:$0xff]
    %v1228 = vld [vmem:[#allocation11 + $0x18] sm:$0xff]
    %v1229 = vld [vmem:[#allocation11 + $0x20] sm:$0xff]
    %v1230 = vld [vmem:[#allocation11 + $0x28] sm:$0xff]
    %v1231 = vld [vmem:[#allocation11 + $0x30] sm:$0xff]
    %v1232 = vld [vmem:[#allocation11 + $0x38] sm:$0xff]
    %v1233 = vld [vmem:[#allocation11 + $0x40] sm:$0xff]
    %v1234 = vld [vmem:[#allocation11 + $0x48] sm:$0xff]
    %v1235 = vld [vmem:[#allocation11 + $0x50] sm:$0xff]
    %v1236 = vld [vmem:[#allocation11 + $0x58] sm:$0xff]
    %v1237 = vld [vmem:[#allocation11 + $0x60] sm:$0xff]
    %v1238 = vld [vmem:[#allocation11 + $0x68] sm:$0xff]
    %v1239 = vld [vmem:[#allocation11 + $0x70] sm:$0xff]
    %v1240 = vld [vmem:[#allocation11 + $0x78] sm:$0xff]
    %v1241 = vld [vmem:[#allocation11 + $0x80] sm:$0xff]
    %v1242 = vld [vmem:[#allocation11 + $0x88] sm:$0xff]
    %v1243 = vld [vmem:[#allocation11 + $0x90] sm:$0xff]
    %v1244 = vld [vmem:[#allocation11 + $0x98] sm:$0xff]
    %v1245 = vld [vmem:[#allocation11 + $0xa0] sm:$0xff]
    %v1246 = vld [vmem:[#allocation11 + $0xa8] sm:$0xff]
    %v1247 = vld [vmem:[#allocation11 + $0xb0] sm:$0xff]
    %v1248 = vld [vmem:[#allocation11 + $0xb8] sm:$0xff]
    %v1249 = vld [vmem:[#allocation11 + $0xc0] sm:$0xff]
    %v1250 = vld [vmem:[#allocation11 + $0xc8] sm:$0xff]
    %v1251 = vld [vmem:[#allocation11 + $0xd0] sm:$0xff]
    %v1252 = vld [vmem:[#allocation11 + $0xd8] sm:$0xff]
    %v1253 = vld [vmem:[#allocation11 + $0xe0] sm:$0xff]
    %v1254 = vld [vmem:[#allocation11 + $0xe8] sm:$0xff]
    %v1255 = vld [vmem:[#allocation11 + $0xf0] sm:$0xff]
    %v1256 = vld [vmem:[#allocation11 + $0xf8] sm:$0xff]
    %v1257 = vld [vmem:[#allocation11 + $0x100] sm:$0xff]
    %v1258 = vld [vmem:[#allocation11 + $0x108] sm:$0xff]
    %v1259 = vld [vmem:[#allocation11 + $0x110] sm:$0xff]
    %v1260 = vld [vmem:[#allocation11 + $0x118] sm:$0xff]
    %v1261 = vld [vmem:[#allocation11 + $0x120] sm:$0xff]
    %v1262 = vld [vmem:[#allocation11 + $0x128] sm:$0xff]
    %v1263 = vld [vmem:[#allocation11 + $0x130] sm:$0xff]
    %v1264 = vld [vmem:[#allocation11 + $0x138] sm:$0xff]
    %v1265 = vld [vmem:[#allocation11 + $0x140] sm:$0xff]
    %v1266 = vld [vmem:[#allocation11 + $0x148] sm:$0xff]
    %v1267 = vld [vmem:[#allocation11 + $0x150] sm:$0xff]
    %v1268 = vld [vmem:[#allocation11 + $0x158] sm:$0xff]
    %v1269 = vld [vmem:[#allocation11 + $0x160] sm:$0xff]
    %v1270 = vld [vmem:[#allocation11 + $0x168] sm:$0xff]
    %v1271 = vld [vmem:[#allocation11 + $0x170] sm:$0xff]
    %v1272 = vld [vmem:[#allocation11 + $0x178] sm:$0xff]
    %v1273 = vld [vmem:[#allocation11 + $0x180] sm:$0xff]
    %v1274 = vld [vmem:[#allocation11 + $0x188] sm:$0xff]
    %v1275 = vld [vmem:[#allocation11 + $0x190] sm:$0xff]
    %v1276 = vld [vmem:[#allocation11 + $0x198] sm:$0xff]
    %v1277 = vld [vmem:[#allocation11 + $0x1a0] sm:$0xff]
    %v1278 = vld [vmem:[#allocation11 + $0x1a8] sm:$0xff]
    %v1279 = vld [vmem:[#allocation11 + $0x1b0] sm:$0xff]
    %v1280 = vld [vmem:[#allocation11 + $0x1b8] sm:$0xff]
    %v1281 = vld [vmem:[#allocation11 + $0x1c0] sm:$0xff]
    %v1282 = vld [vmem:[#allocation11 + $0x1c8] sm:$0xff]
    %v1283 = vld [vmem:[#allocation11 + $0x1d0] sm:$0xff]
    %v1284 = vld [vmem:[#allocation11 + $0x1d8] sm:$0xff]
    %v1285 = vld [vmem:[#allocation11 + $0x1e0] sm:$0xff]
    %v1286 = vld [vmem:[#allocation11 + $0x1e8] sm:$0xff]
    %v1287 = vld [vmem:[#allocation11 + $0x1f0] sm:$0xff]
    %v1288 = vld [vmem:[#allocation11 + $0x1f8] sm:$0xff]
    %v1289 = vld [vmem:[#allocation11 + $0x200] sm:$0xff]
    %v1290 = vld [vmem:[#allocation11 + $0x208] sm:$0xff]
    %v1291 = vld [vmem:[#allocation11 + $0x210] sm:$0xff]
    %v1292 = vld [vmem:[#allocation11 + $0x218] sm:$0xff]
    %v1293 = vld [vmem:[#allocation11 + $0x220] sm:$0xff]
    %v1294 = vld [vmem:[#allocation11 + $0x228] sm:$0xff]
    %v1295 = vld [vmem:[#allocation11 + $0x230] sm:$0xff]
    %v1296 = vld [vmem:[#allocation11 + $0x238] sm:$0xff]
    %v1297 = vld [vmem:[#allocation11 + $0x240] sm:$0xff]
    %v1298 = vld [vmem:[#allocation11 + $0x248] sm:$0xff]
    %v1299 = vld [vmem:[#allocation11 + $0x250] sm:$0xff]
    %v1300 = vld [vmem:[#allocation11 + $0x258] sm:$0xff]
    %v1301 = vld [vmem:[#allocation11 + $0x260] sm:$0xff]
    %v1302 = vld [vmem:[#allocation11 + $0x268] sm:$0xff]
    %v1303 = vld [vmem:[#allocation11 + $0x270] sm:$0xff]
    %v1304 = vld [vmem:[#allocation11 + $0x278] sm:$0xff]
    %v1305 = vld [vmem:[#allocation11 + $0x280] sm:$0xff]
    %v1306 = vld [vmem:[#allocation11 + $0x288] sm:$0xff]
    %v1307 = vld [vmem:[#allocation11 + $0x290] sm:$0xff]
    %v1308 = vld [vmem:[#allocation11 + $0x298] sm:$0xff]
    %v1309 = vld [vmem:[#allocation11 + $0x2a0] sm:$0xff]
    %v1310 = vld [vmem:[#allocation11 + $0x2a8] sm:$0xff]
    %v1311 = vld [vmem:[#allocation11 + $0x2b0] sm:$0xff]
    %v1312 = vld [vmem:[#allocation11 + $0x2b8] sm:$0xff]
    %v1313 = vld [vmem:[#allocation11 + $0x2c0] sm:$0xff]
    %v1314 = vld [vmem:[#allocation11 + $0x2c8] sm:$0xff]
    %v1315 = vld [vmem:[#allocation11 + $0x2d0] sm:$0xff]
    %v1316 = vld [vmem:[#allocation11 + $0x2d8] sm:$0xff]
    %v1317 = vld [vmem:[#allocation11 + $0x2e0] sm:$0xff]
    %v1318 = vld [vmem:[#allocation11 + $0x2e8] sm:$0xff]
    %v1319 = vld [vmem:[#allocation11 + $0x2f0] sm:$0xff]
    %v1320 = vld [vmem:[#allocation11 + $0x2f8] sm:$0xff]
    %v1321 = vld [vmem:[#allocation11 + $0x300] sm:$0xff]
    %v1322 = vld [vmem:[#allocation11 + $0x308] sm:$0xff]
    %v1323 = vld [vmem:[#allocation11 + $0x310] sm:$0xff]
    %v1324 = vld [vmem:[#allocation11 + $0x318] sm:$0xff]
    %v1325 = vld [vmem:[#allocation11 + $0x320] sm:$0xff]
    %v1326 = vld [vmem:[#allocation11 + $0x328] sm:$0xff]
    %v1327 = vld [vmem:[#allocation11 + $0x330] sm:$0xff]
    %v1328 = vld [vmem:[#allocation11 + $0x338] sm:$0xff]
    %v1329 = vld [vmem:[#allocation11 + $0x340] sm:$0xff]
    %v1330 = vld [vmem:[#allocation11 + $0x348] sm:$0xff]
    %v1331 = vld [vmem:[#allocation11 + $0x350] sm:$0xff]
    %v1332 = vld [vmem:[#allocation11 + $0x358] sm:$0xff]
    %v1333 = vld [vmem:[#allocation11 + $0x360] sm:$0xff]
    %v1334 = vld [vmem:[#allocation11 + $0x368] sm:$0xff]
    %v1335 = vld [vmem:[#allocation11 + $0x370] sm:$0xff]
    %v1336 = vld [vmem:[#allocation11 + $0x378] sm:$0xff]
    %v1337 = vld [vmem:[#allocation11 + $0x380] sm:$0xff]
    %v1338 = vld [vmem:[#allocation11 + $0x388] sm:$0xff]
    %v1339 = vld [vmem:[#allocation11 + $0x390] sm:$0xff]
    %v1340 = vld [vmem:[#allocation11 + $0x398] sm:$0xff]
    %v1341 = vld [vmem:[#allocation11 + $0x3a0] sm:$0xff]
    %v1342 = vld [vmem:[#allocation11 + $0x3a8] sm:$0xff]
    %v1343 = vld [vmem:[#allocation11 + $0x3b0] sm:$0xff]
    %v1344 = vld [vmem:[#allocation11 + $0x3b8] sm:$0xff]
    %v1345 = vld [vmem:[#allocation11 + $0x3c0] sm:$0xff]
    %v1346 = vld [vmem:[#allocation11 + $0x3c8] sm:$0xff]
    %v1347 = vld [vmem:[#allocation11 + $0x3d0] sm:$0xff]
    %v1348 = vld [vmem:[#allocation11 + $0x3d8] sm:$0xff]
    %v1349 = vld [vmem:[#allocation11 + $0x3e0] sm:$0xff]
    %v1350 = vld [vmem:[#allocation11 + $0x3e8] sm:$0xff]
    %v1351 = vld [vmem:[#allocation11 + $0x3f0] sm:$0xff]
    %v1352 = vld [vmem:[#allocation11 + $0x3f8] sm:$0xff]
    %v1353 = vld [vmem:[#allocation13] sm:$0xff]
    %v1355 = vperm.slane %v1353, 0
    %v1356 = vperm.slane %v1353, 1
    %v1357 = vperm.slane %v1353, 2
    %v1358 = vperm.slane %v1353, 3
    %v1359 = vperm.slane %v1353, 4
    %v1360 = vperm.slane %v1353, 5
    %v1361 = vperm.slane %v1353, 6
    %v1362 = vperm.slane %v1353, 7
    %v1499 = vunpack.c.l.b16 %v1225
    %v1500 = vunpack.c.h.b16 %v1225
    %v1501 = vunpack.c.l.b16 %v1226
    %v1502 = vunpack.c.h.b16 %v1226
    %v1503 = vunpack.c.l.b16 %v1227
    %v1504 = vunpack.c.h.b16 %v1227
    %v1505 = vunpack.c.l.b16 %v1228
    %v1506 = vunpack.c.h.b16 %v1228
    %v1507 = vunpack.c.l.b16 %v1229
    %v1508 = vunpack.c.h.b16 %v1229
    %v1509 = vunpack.c.l.b16 %v1230
    %v1510 = vunpack.c.h.b16 %v1230
    %v1511 = vunpack.c.l.b16 %v1231
    %v1512 = vunpack.c.h.b16 %v1231
    %v1513 = vunpack.c.l.b16 %v1232
    %v1514 = vunpack.c.h.b16 %v1232
    %v1515 = vunpack.c.l.b16 %v1233
    %v1516 = vunpack.c.h.b16 %v1233
    %v1517 = vunpack.c.l.b16 %v1234
    %v1518 = vunpack.c.h.b16 %v1234
    %v1519 = vunpack.c.l.b16 %v1235
    %v1520 = vunpack.c.h.b16 %v1235
    %v1521 = vunpack.c.l.b16 %v1236
    %v1522 = vunpack.c.h.b16 %v1236
    %v1523 = vunpack.c.l.b16 %v1237
    %v1524 = vunpack.c.h.b16 %v1237
    %v1525 = vunpack.c.l.b16 %v1238
    %v1526 = vunpack.c.h.b16 %v1238
    %v1527 = vunpack.c.l.b16 %v1239
    %v1528 = vunpack.c.h.b16 %v1239
    %v1529 = vunpack.c.l.b16 %v1240
    %v1530 = vunpack.c.h.b16 %v1240
    %v1531 = vunpack.c.l.b16 %v1241
    %v1532 = vunpack.c.h.b16 %v1241
    %v1533 = vunpack.c.l.b16 %v1242
    %v1534 = vunpack.c.h.b16 %v1242
    %v1535 = vunpack.c.l.b16 %v1243
    %v1536 = vunpack.c.h.b16 %v1243
    %v1537 = vunpack.c.l.b16 %v1244
    %v1538 = vunpack.c.h.b16 %v1244
    %v1539 = vunpack.c.l.b16 %v1245
    %v1540 = vunpack.c.h.b16 %v1245
    %v1541 = vunpack.c.l.b16 %v1246
    %v1542 = vunpack.c.h.b16 %v1246
    %v1543 = vunpack.c.l.b16 %v1247
    %v1544 = vunpack.c.h.b16 %v1247
    %v1545 = vunpack.c.l.b16 %v1248
    %v1546 = vunpack.c.h.b16 %v1248
    %v1547 = vunpack.c.l.b16 %v1249
    %v1548 = vunpack.c.h.b16 %v1249
    %v1549 = vunpack.c.l.b16 %v1250
    %v1550 = vunpack.c.h.b16 %v1250
    %v1551 = vunpack.c.l.b16 %v1251
    %v1552 = vunpack.c.h.b16 %v1251
    %v1553 = vunpack.c.l.b16 %v1252
    %v1554 = vunpack.c.h.b16 %v1252
    %v1555 = vunpack.c.l.b16 %v1253
    %v1556 = vunpack.c.h.b16 %v1253
    %v1557 = vunpack.c.l.b16 %v1254
    %v1558 = vunpack.c.h.b16 %v1254
    %v1559 = vunpack.c.l.b16 %v1255
    %v1560 = vunpack.c.h.b16 %v1255
    %v1561 = vunpack.c.l.b16 %v1256
    %v1562 = vunpack.c.h.b16 %v1256
    %v1563 = vunpack.c.l.b16 %v1257
    %v1564 = vunpack.c.h.b16 %v1257
    %v1565 = vunpack.c.l.b16 %v1258
    %v1566 = vunpack.c.h.b16 %v1258
    %v1567 = vunpack.c.l.b16 %v1259
    %v1568 = vunpack.c.h.b16 %v1259
    %v1569 = vunpack.c.l.b16 %v1260
    %v1570 = vunpack.c.h.b16 %v1260
    %v1571 = vunpack.c.l.b16 %v1261
    %v1572 = vunpack.c.h.b16 %v1261
    %v1573 = vunpack.c.l.b16 %v1262
    %v1574 = vunpack.c.h.b16 %v1262
    %v1575 = vunpack.c.l.b16 %v1263
    %v1576 = vunpack.c.h.b16 %v1263
    %v1577 = vunpack.c.l.b16 %v1264
    %v1578 = vunpack.c.h.b16 %v1264
    %v1579 = vunpack.c.l.b16 %v1265
    %v1580 = vunpack.c.h.b16 %v1265
    %v1581 = vunpack.c.l.b16 %v1266
    %v1582 = vunpack.c.h.b16 %v1266
    %v1583 = vunpack.c.l.b16 %v1267
    %v1584 = vunpack.c.h.b16 %v1267
    %v1585 = vunpack.c.l.b16 %v1268
    %v1586 = vunpack.c.h.b16 %v1268
    %v1587 = vunpack.c.l.b16 %v1269
    %v1588 = vunpack.c.h.b16 %v1269
    %v1589 = vunpack.c.l.b16 %v1270
    %v1590 = vunpack.c.h.b16 %v1270
    %v1591 = vunpack.c.l.b16 %v1271
    %v1592 = vunpack.c.h.b16 %v1271
    %v1593 = vunpack.c.l.b16 %v1272
    %v1594 = vunpack.c.h.b16 %v1272
    %v1595 = vunpack.c.l.b16 %v1273
    %v1596 = vunpack.c.h.b16 %v1273
    %v1597 = vunpack.c.l.b16 %v1274
    %v1598 = vunpack.c.h.b16 %v1274
    %v1599 = vunpack.c.l.b16 %v1275
    %v1600 = vunpack.c.h.b16 %v1275
    %v1601 = vunpack.c.l.b16 %v1276
    %v1602 = vunpack.c.h.b16 %v1276
    %v1603 = vunpack.c.l.b16 %v1277
    %v1604 = vunpack.c.h.b16 %v1277
    %v1605 = vunpack.c.l.b16 %v1278
    %v1606 = vunpack.c.h.b16 %v1278
    %v1607 = vunpack.c.l.b16 %v1279
    %v1608 = vunpack.c.h.b16 %v1279
    %v1609 = vunpack.c.l.b16 %v1280
    %v1610 = vunpack.c.h.b16 %v1280
    %v1611 = vunpack.c.l.b16 %v1281
    %v1612 = vunpack.c.h.b16 %v1281
    %v1613 = vunpack.c.l.b16 %v1282
    %v1614 = vunpack.c.h.b16 %v1282
    %v1615 = vunpack.c.l.b16 %v1283
    %v1616 = vunpack.c.h.b16 %v1283
    %v1617 = vunpack.c.l.b16 %v1284
    %v1618 = vunpack.c.h.b16 %v1284
    %v1619 = vunpack.c.l.b16 %v1285
    %v1620 = vunpack.c.h.b16 %v1285
    %v1621 = vunpack.c.l.b16 %v1286
    %v1622 = vunpack.c.h.b16 %v1286
    %v1623 = vunpack.c.l.b16 %v1287
    %v1624 = vunpack.c.h.b16 %v1287
    %v1625 = vunpack.c.l.b16 %v1288
    %v1626 = vunpack.c.h.b16 %v1288
    %v1627 = vunpack.c.l.b16 %v1289
    %v1628 = vunpack.c.h.b16 %v1289
    %v1629 = vunpack.c.l.b16 %v1290
    %v1630 = vunpack.c.h.b16 %v1290
    %v1631 = vunpack.c.l.b16 %v1291
    %v1632 = vunpack.c.h.b16 %v1291
    %v1633 = vunpack.c.l.b16 %v1292
    %v1634 = vunpack.c.h.b16 %v1292
    %v1635 = vunpack.c.l.b16 %v1293
    %v1636 = vunpack.c.h.b16 %v1293
    %v1637 = vunpack.c.l.b16 %v1294
    %v1638 = vunpack.c.h.b16 %v1294
    %v1639 = vunpack.c.l.b16 %v1295
    %v1640 = vunpack.c.h.b16 %v1295
    %v1641 = vunpack.c.l.b16 %v1296
    %v1642 = vunpack.c.h.b16 %v1296
    %v1643 = vunpack.c.l.b16 %v1297
    %v1644 = vunpack.c.h.b16 %v1297
    %v1645 = vunpack.c.l.b16 %v1298
    %v1646 = vunpack.c.h.b16 %v1298
    %v1647 = vunpack.c.l.b16 %v1299
    %v1648 = vunpack.c.h.b16 %v1299
    %v1649 = vunpack.c.l.b16 %v1300
    %v1650 = vunpack.c.h.b16 %v1300
    %v1651 = vunpack.c.l.b16 %v1301
    %v1652 = vunpack.c.h.b16 %v1301
    %v1653 = vunpack.c.l.b16 %v1302
    %v1654 = vunpack.c.h.b16 %v1302
    %v1655 = vunpack.c.l.b16 %v1303
    %v1656 = vunpack.c.h.b16 %v1303
    %v1657 = vunpack.c.l.b16 %v1304
    %v1658 = vunpack.c.h.b16 %v1304
    %v1659 = vunpack.c.l.b16 %v1305
    %v1660 = vunpack.c.h.b16 %v1305
    %v1661 = vunpack.c.l.b16 %v1306
    %v1662 = vunpack.c.h.b16 %v1306
    %v1663 = vunpack.c.l.b16 %v1307
    %v1664 = vunpack.c.h.b16 %v1307
    %v1665 = vunpack.c.l.b16 %v1308
    %v1666 = vunpack.c.h.b16 %v1308
    %v1667 = vunpack.c.l.b16 %v1309
    %v1668 = vunpack.c.h.b16 %v1309
    %v1669 = vunpack.c.l.b16 %v1310
    %v1670 = vunpack.c.h.b16 %v1310
    %v1671 = vunpack.c.l.b16 %v1311
    %v1672 = vunpack.c.h.b16 %v1311
    %v1673 = vunpack.c.l.b16 %v1312
    %v1674 = vunpack.c.h.b16 %v1312
    %v1675 = vunpack.c.l.b16 %v1313
    %v1676 = vunpack.c.h.b16 %v1313
    %v1677 = vunpack.c.l.b16 %v1314
    %v1678 = vunpack.c.h.b16 %v1314
    %v1679 = vunpack.c.l.b16 %v1315
    %v1680 = vunpack.c.h.b16 %v1315
    %v1681 = vunpack.c.l.b16 %v1316
    %v1682 = vunpack.c.h.b16 %v1316
    %v1683 = vunpack.c.l.b16 %v1317
    %v1684 = vunpack.c.h.b16 %v1317
    %v1685 = vunpack.c.l.b16 %v1318
    %v1686 = vunpack.c.h.b16 %v1318
    %v1687 = vunpack.c.l.b16 %v1319
    %v1688 = vunpack.c.h.b16 %v1319
    %v1689 = vunpack.c.l.b16 %v1320
    %v1690 = vunpack.c.h.b16 %v1320
    %v1691 = vunpack.c.l.b16 %v1321
    %v1692 = vunpack.c.h.b16 %v1321
    %v1693 = vunpack.c.l.b16 %v1322
    %v1694 = vunpack.c.h.b16 %v1322
    %v1695 = vunpack.c.l.b16 %v1323
    %v1696 = vunpack.c.h.b16 %v1323
    %v1697 = vunpack.c.l.b16 %v1324
    %v1698 = vunpack.c.h.b16 %v1324
    %v1699 = vunpack.c.l.b16 %v1325
    %v1700 = vunpack.c.h.b16 %v1325
    %v1701 = vunpack.c.l.b16 %v1326
    %v1702 = vunpack.c.h.b16 %v1326
    %v1703 = vunpack.c.l.b16 %v1327
    %v1704 = vunpack.c.h.b16 %v1327
    %v1705 = vunpack.c.l.b16 %v1328
    %v1706 = vunpack.c.h.b16 %v1328
    %v1707 = vunpack.c.l.b16 %v1329
    %v1708 = vunpack.c.h.b16 %v1329
    %v1709 = vunpack.c.l.b16 %v1330
    %v1710 = vunpack.c.h.b16 %v1330
    %v1711 = vunpack.c.l.b16 %v1331
    %v1712 = vunpack.c.h.b16 %v1331
    %v1713 = vunpack.c.l.b16 %v1332
    %v1714 = vunpack.c.h.b16 %v1332
    %v1715 = vunpack.c.l.b16 %v1333
    %v1716 = vunpack.c.h.b16 %v1333
    %v1717 = vunpack.c.l.b16 %v1334
    %v1718 = vunpack.c.h.b16 %v1334
    %v1719 = vunpack.c.l.b16 %v1335
    %v1720 = vunpack.c.h.b16 %v1335
    %v1721 = vunpack.c.l.b16 %v1336
    %v1722 = vunpack.c.h.b16 %v1336
    %v1723 = vunpack.c.l.b16 %v1337
    %v1724 = vunpack.c.h.b16 %v1337
    %v1725 = vunpack.c.l.b16 %v1338
    %v1726 = vunpack.c.h.b16 %v1338
    %v1727 = vunpack.c.l.b16 %v1339
    %v1728 = vunpack.c.h.b16 %v1339
    %v1729 = vunpack.c.l.b16 %v1340
    %v1730 = vunpack.c.h.b16 %v1340
    %v1731 = vunpack.c.l.b16 %v1341
    %v1732 = vunpack.c.h.b16 %v1341
    %v1733 = vunpack.c.l.b16 %v1342
    %v1734 = vunpack.c.h.b16 %v1342
    %v1735 = vunpack.c.l.b16 %v1343
    %v1736 = vunpack.c.h.b16 %v1343
    %v1737 = vunpack.c.l.b16 %v1344
    %v1738 = vunpack.c.h.b16 %v1344
    %v1739 = vunpack.c.l.b16 %v1345
    %v1740 = vunpack.c.h.b16 %v1345
    %v1741 = vunpack.c.l.b16 %v1346
    %v1742 = vunpack.c.h.b16 %v1346
    %v1743 = vunpack.c.l.b16 %v1347
    %v1744 = vunpack.c.h.b16 %v1347
    %v1745 = vunpack.c.l.b16 %v1348
    %v1746 = vunpack.c.h.b16 %v1348
    %v1747 = vunpack.c.l.b16 %v1349
    %v1748 = vunpack.c.h.b16 %v1349
    %v1749 = vunpack.c.l.b16 %v1350
    %v1750 = vunpack.c.h.b16 %v1350
    %v1751 = vunpack.c.l.b16 %v1351
    %v1752 = vunpack.c.h.b16 %v1351
    %v1753 = vunpack.c.l.b16 %v1352
    %v1754 = vunpack.c.h.b16 %v1352
    %v1755 = vpack.c.b16 %v1507, %v1499
    %v1756 = vpack.c.b16 %v1508, %v1500
    %v1757 = vpack.c.b16 %v1509, %v1501
    %v1758 = vpack.c.b16 %v1510, %v1502
    %v1759 = vpack.c.b16 %v1511, %v1503
    %v1760 = vpack.c.b16 %v1512, %v1504
    %v1761 = vpack.c.b16 %v1513, %v1505
    %v1762 = vpack.c.b16 %v1514, %v1506
    %v1763 = vpack.c.b16 %v1523, %v1515
    %v1764 = vpack.c.b16 %v1524, %v1516
    %v1765 = vpack.c.b16 %v1525, %v1517
    %v1766 = vpack.c.b16 %v1526, %v1518
    %v1767 = vpack.c.b16 %v1527, %v1519
    %v1768 = vpack.c.b16 %v1528, %v1520
    %v1769 = vpack.c.b16 %v1529, %v1521
    %v1770 = vpack.c.b16 %v1530, %v1522
    %v1771 = vpack.c.b16 %v1539, %v1531
    %v1772 = vpack.c.b16 %v1540, %v1532
    %v1773 = vpack.c.b16 %v1541, %v1533
    %v1774 = vpack.c.b16 %v1542, %v1534
    %v1775 = vpack.c.b16 %v1543, %v1535
    %v1776 = vpack.c.b16 %v1544, %v1536
    %v1777 = vpack.c.b16 %v1545, %v1537
    %v1778 = vpack.c.b16 %v1546, %v1538
    %v1779 = vpack.c.b16 %v1555, %v1547
    %v1780 = vpack.c.b16 %v1556, %v1548
    %v1781 = vpack.c.b16 %v1557, %v1549
    %v1782 = vpack.c.b16 %v1558, %v1550
    %v1783 = vpack.c.b16 %v1559, %v1551
    %v1784 = vpack.c.b16 %v1560, %v1552
    %v1785 = vpack.c.b16 %v1561, %v1553
    %v1786 = vpack.c.b16 %v1562, %v1554
    %v1787 = vpack.c.b16 %v1571, %v1563
    %v1788 = vpack.c.b16 %v1572, %v1564
    %v1789 = vpack.c.b16 %v1573, %v1565
    %v1790 = vpack.c.b16 %v1574, %v1566
    %v1791 = vpack.c.b16 %v1575, %v1567
    %v1792 = vpack.c.b16 %v1576, %v1568
    %v1793 = vpack.c.b16 %v1577, %v1569
    %v1794 = vpack.c.b16 %v1578, %v1570
    %v1795 = vpack.c.b16 %v1587, %v1579
    %v1796 = vpack.c.b16 %v1588, %v1580
    %v1797 = vpack.c.b16 %v1589, %v1581
    %v1798 = vpack.c.b16 %v1590, %v1582
    %v1799 = vpack.c.b16 %v1591, %v1583
    %v1800 = vpack.c.b16 %v1592, %v1584
    %v1801 = vpack.c.b16 %v1593, %v1585
    %v1802 = vpack.c.b16 %v1594, %v1586
    %v1803 = vpack.c.b16 %v1603, %v1595
    %v1804 = vpack.c.b16 %v1604, %v1596
    %v1805 = vpack.c.b16 %v1605, %v1597
    %v1806 = vpack.c.b16 %v1606, %v1598
    %v1807 = vpack.c.b16 %v1607, %v1599
    %v1808 = vpack.c.b16 %v1608, %v1600
    %v1809 = vpack.c.b16 %v1609, %v1601
    %v1810 = vpack.c.b16 %v1610, %v1602
    %v1811 = vpack.c.b16 %v1619, %v1611
    %v1812 = vpack.c.b16 %v1620, %v1612
    %v1813 = vpack.c.b16 %v1621, %v1613
    %v1814 = vpack.c.b16 %v1622, %v1614
    %v1815 = vpack.c.b16 %v1623, %v1615
    %v1816 = vpack.c.b16 %v1624, %v1616
    %v1817 = vpack.c.b16 %v1625, %v1617
    %v1818 = vpack.c.b16 %v1626, %v1618
    %v1819 = vpack.c.b16 %v1635, %v1627
    %v1820 = vpack.c.b16 %v1636, %v1628
    %v1821 = vpack.c.b16 %v1637, %v1629
    %v1822 = vpack.c.b16 %v1638, %v1630
    %v1823 = vpack.c.b16 %v1639, %v1631
    %v1824 = vpack.c.b16 %v1640, %v1632
    %v1825 = vpack.c.b16 %v1641, %v1633
    %v1826 = vpack.c.b16 %v1642, %v1634
    %v1827 = vpack.c.b16 %v1651, %v1643
    %v1828 = vpack.c.b16 %v1652, %v1644
    %v1829 = vpack.c.b16 %v1653, %v1645
    %v1830 = vpack.c.b16 %v1654, %v1646
    %v1831 = vpack.c.b16 %v1655, %v1647
    %v1832 = vpack.c.b16 %v1656, %v1648
    %v1833 = vpack.c.b16 %v1657, %v1649
    %v1834 = vpack.c.b16 %v1658, %v1650
    %v1835 = vpack.c.b16 %v1667, %v1659
    %v1836 = vpack.c.b16 %v1668, %v1660
    %v1837 = vpack.c.b16 %v1669, %v1661
    %v1838 = vpack.c.b16 %v1670, %v1662
    %v1839 = vpack.c.b16 %v1671, %v1663
    %v1840 = vpack.c.b16 %v1672, %v1664
    %v1841 = vpack.c.b16 %v1673, %v1665
    %v1842 = vpack.c.b16 %v1674, %v1666
    %v1843 = vpack.c.b16 %v1683, %v1675
    %v1844 = vpack.c.b16 %v1684, %v1676
    %v1845 = vpack.c.b16 %v1685, %v1677
    %v1846 = vpack.c.b16 %v1686, %v1678
    %v1847 = vpack.c.b16 %v1687, %v1679
    %v1848 = vpack.c.b16 %v1688, %v1680
    %v1849 = vpack.c.b16 %v1689, %v1681
    %v1850 = vpack.c.b16 %v1690, %v1682
    %v1851 = vpack.c.b16 %v1699, %v1691
    %v1852 = vpack.c.b16 %v1700, %v1692
    %v1853 = vpack.c.b16 %v1701, %v1693
    %v1854 = vpack.c.b16 %v1702, %v1694
    %v1855 = vpack.c.b16 %v1703, %v1695
    %v1856 = vpack.c.b16 %v1704, %v1696
    %v1857 = vpack.c.b16 %v1705, %v1697
    %v1858 = vpack.c.b16 %v1706, %v1698
    %v1859 = vpack.c.b16 %v1715, %v1707
    %v1860 = vpack.c.b16 %v1716, %v1708
    %v1861 = vpack.c.b16 %v1717, %v1709
    %v1862 = vpack.c.b16 %v1718, %v1710
    %v1863 = vpack.c.b16 %v1719, %v1711
    %v1864 = vpack.c.b16 %v1720, %v1712
    %v1865 = vpack.c.b16 %v1721, %v1713
    %v1866 = vpack.c.b16 %v1722, %v1714
    %v1867 = vpack.c.b16 %v1731, %v1723
    %v1868 = vpack.c.b16 %v1732, %v1724
    %v1869 = vpack.c.b16 %v1733, %v1725
    %v1870 = vpack.c.b16 %v1734, %v1726
    %v1871 = vpack.c.b16 %v1735, %v1727
    %v1872 = vpack.c.b16 %v1736, %v1728
    %v1873 = vpack.c.b16 %v1737, %v1729
    %v1874 = vpack.c.b16 %v1738, %v1730
    %v1875 = vpack.c.b16 %v1747, %v1739
    %v1876 = vpack.c.b16 %v1748, %v1740
    %v1877 = vpack.c.b16 %v1749, %v1741
    %v1878 = vpack.c.b16 %v1750, %v1742
    %v1879 = vpack.c.b16 %v1751, %v1743
    %v1880 = vpack.c.b16 %v1752, %v1744
    %v1881 = vpack.c.b16 %v1753, %v1745
    %v1882 = vpack.c.b16 %v1754, %v1746
    %2011 = vmatpush.bf16.msra.mxu0 %v1811
    %2012 = vmatpush.bf16.msra.mxu0 %v1803
    %2013 = vmatpush.bf16.msra.mxu0 %v1795
    %2014 = vmatpush.bf16.msra.mxu0 %v1787
    %2015 = vmatpush.bf16.msra.mxu0 %v1779
    %2016 = vmatpush.bf16.msra.mxu0 %v1771
    %2017 = vmatpush.bf16.msra.mxu0 %v1763
    %2018 = vmatpush.bf16.msra.mxu0 %v1755
    %2019 = vmatmul.bf16.gmra.mxu0 %v183
    %v2020 = vpop.f32.mrf.mxu0
    %v2021 = vadd.f32 %v1355, %v2020
    %v2022 = vpop.f32.mrf.mxu0
    %2023 = vdwg.mxu0
    %2024 = vmatpush.bf16.msra.mxu0 %v1875
    %2025 = vmatpush.bf16.msra.mxu0 %v1867
    %2026 = vmatpush.bf16.msra.mxu0 %v1859
    %2027 = vmatpush.bf16.msra.mxu0 %v1851
    %2028 = vmatpush.bf16.msra.mxu0 %v1843
    %2029 = vmatpush.bf16.msra.mxu0 %v1835
    %2030 = vmatpush.bf16.msra.mxu0 %v1827
    %2031 = vmatpush.bf16.msra.mxu0 %v1819
    %2032 = vmatmul.bf16.gmra.mxu0 %v184
    %v2033 = vpop.f32.mrf.mxu0
    %v2034 = vadd.f32 %v2021, %v2033
    %v2035 = vpop.f32.mrf.mxu0
    %2036 = vdwg.mxu0
    %2037 = vmatpush.bf16.msra.mxu0 %v1812
    %2038 = vmatpush.bf16.msra.mxu0 %v1804
    %2039 = vmatpush.bf16.msra.mxu0 %v1796
    %2040 = vmatpush.bf16.msra.mxu0 %v1788
    %2041 = vmatpush.bf16.msra.mxu0 %v1780
    %2042 = vmatpush.bf16.msra.mxu0 %v1772
    %2043 = vmatpush.bf16.msra.mxu0 %v1764
    %2044 = vmatpush.bf16.msra.mxu0 %v1756
    %2045 = vmatmul.bf16.gmra.mxu0 %v183
    %v2046 = vpop.f32.mrf.mxu0
    %v2047 = vadd.f32 %v1356, %v2046
    %v2048 = vpop.f32.mrf.mxu0
    %2049 = vdwg.mxu0
    %2050 = vmatpush.bf16.msra.mxu0 %v1876
    %2051 = vmatpush.bf16.msra.mxu0 %v1868
    %2052 = vmatpush.bf16.msra.mxu0 %v1860
    %2053 = vmatpush.bf16.msra.mxu0 %v1852
    %2054 = vmatpush.bf16.msra.mxu0 %v1844
    %2055 = vmatpush.bf16.msra.mxu0 %v1836
    %2056 = vmatpush.bf16.msra.mxu0 %v1828
    %2057 = vmatpush.bf16.msra.mxu0 %v1820
    %2058 = vmatmul.bf16.gmra.mxu0 %v184
    %v2059 = vpop.f32.mrf.mxu0
    %v2060 = vadd.f32 %v2047, %v2059
    %v2061 = vpop.f32.mrf.mxu0
    %2062 = vdwg.mxu0
    %2063 = vmatpush.bf16.msra.mxu0 %v1813
    %2064 = vmatpush.bf16.msra.mxu0 %v1805
    %2065 = vmatpush.bf16.msra.mxu0 %v1797
    %2066 = vmatpush.bf16.msra.mxu0 %v1789
    %2067 = vmatpush.bf16.msra.mxu0 %v1781
    %2068 = vmatpush.bf16.msra.mxu0 %v1773
    %2069 = vmatpush.bf16.msra.mxu0 %v1765
    %2070 = vmatpush.bf16.msra.mxu0 %v1757
    %2071 = vmatmul.bf16.gmra.mxu0 %v183
    %v2072 = vpop.f32.mrf.mxu0
    %v2073 = vadd.f32 %v1357, %v2072
    %v2074 = vpop.f32.mrf.mxu0
    %2075 = vdwg.mxu0
    %2076 = vmatpush.bf16.msra.mxu0 %v1877
    %2077 = vmatpush.bf16.msra.mxu0 %v1869
    %2078 = vmatpush.bf16.msra.mxu0 %v1861
    %2079 = vmatpush.bf16.msra.mxu0 %v1853
    %2080 = vmatpush.bf16.msra.mxu0 %v1845
    %2081 = vmatpush.bf16.msra.mxu0 %v1837
    %2082 = vmatpush.bf16.msra.mxu0 %v1829
    %2083 = vmatpush.bf16.msra.mxu0 %v1821
    %2084 = vmatmul.bf16.gmra.mxu0 %v184
    %v2085 = vpop.f32.mrf.mxu0
    %v2086 = vadd.f32 %v2073, %v2085
    %v2087 = vpop.f32.mrf.mxu0
    %2088 = vdwg.mxu0
    %2089 = vmatpush.bf16.msra.mxu0 %v1814
    %2090 = vmatpush.bf16.msra.mxu0 %v1806
    %2091 = vmatpush.bf16.msra.mxu0 %v1798
    %2092 = vmatpush.bf16.msra.mxu0 %v1790
    %2093 = vmatpush.bf16.msra.mxu0 %v1782
    %2094 = vmatpush.bf16.msra.mxu0 %v1774
    %2095 = vmatpush.bf16.msra.mxu0 %v1766
    %2096 = vmatpush.bf16.msra.mxu0 %v1758
    %2097 = vmatmul.bf16.gmra.mxu0 %v183
    %v2098 = vpop.f32.mrf.mxu0
    %v2099 = vadd.f32 %v1358, %v2098
    %v2100 = vpop.f32.mrf.mxu0
    %2101 = vdwg.mxu0
    %2102 = vmatpush.bf16.msra.mxu0 %v1878
    %2103 = vmatpush.bf16.msra.mxu0 %v1870
    %2104 = vmatpush.bf16.msra.mxu0 %v1862
    %2105 = vmatpush.bf16.msra.mxu0 %v1854
    %2106 = vmatpush.bf16.msra.mxu0 %v1846
    %2107 = vmatpush.bf16.msra.mxu0 %v1838
    %2108 = vmatpush.bf16.msra.mxu0 %v1830
    %2109 = vmatpush.bf16.msra.mxu0 %v1822
    %2110 = vmatmul.bf16.gmra.mxu0 %v184
    %v2111 = vpop.f32.mrf.mxu0
    %v2112 = vadd.f32 %v2099, %v2111
    %v2113 = vpop.f32.mrf.mxu0
    %2114 = vdwg.mxu0
    %2115 = vmatpush.bf16.msra.mxu0 %v1815
    %2116 = vmatpush.bf16.msra.mxu0 %v1807
    %2117 = vmatpush.bf16.msra.mxu0 %v1799
    %2118 = vmatpush.bf16.msra.mxu0 %v1791
    %2119 = vmatpush.bf16.msra.mxu0 %v1783
    %2120 = vmatpush.bf16.msra.mxu0 %v1775
    %2121 = vmatpush.bf16.msra.mxu0 %v1767
    %2122 = vmatpush.bf16.msra.mxu0 %v1759
    %2123 = vmatmul.bf16.gmra.mxu0 %v183
    %v2124 = vpop.f32.mrf.mxu0
    %v2125 = vadd.f32 %v1359, %v2124
    %v2126 = vpop.f32.mrf.mxu0
    %2127 = vdwg.mxu0
    %2128 = vmatpush.bf16.msra.mxu0 %v1879
    %2129 = vmatpush.bf16.msra.mxu0 %v1871
    %2130 = vmatpush.bf16.msra.mxu0 %v1863
    %2131 = vmatpush.bf16.msra.mxu0 %v1855
    %2132 = vmatpush.bf16.msra.mxu0 %v1847
    %2133 = vmatpush.bf16.msra.mxu0 %v1839
    %2134 = vmatpush.bf16.msra.mxu0 %v1831
    %2135 = vmatpush.bf16.msra.mxu0 %v1823
    %2136 = vmatmul.bf16.gmra.mxu0 %v184
    %v2137 = vpop.f32.mrf.mxu0
    %v2138 = vadd.f32 %v2125, %v2137
    %v2139 = vpop.f32.mrf.mxu0
    %2140 = vdwg.mxu0
    %2141 = vmatpush.bf16.msra.mxu0 %v1816
    %2142 = vmatpush.bf16.msra.mxu0 %v1808
    %2143 = vmatpush.bf16.msra.mxu0 %v1800
    %2144 = vmatpush.bf16.msra.mxu0 %v1792
    %2145 = vmatpush.bf16.msra.mxu0 %v1784
    %2146 = vmatpush.bf16.msra.mxu0 %v1776
    %2147 = vmatpush.bf16.msra.mxu0 %v1768
    %2148 = vmatpush.bf16.msra.mxu0 %v1760
    %2149 = vmatmul.bf16.gmra.mxu0 %v183
    %v2150 = vpop.f32.mrf.mxu0
    %v2151 = vadd.f32 %v1360, %v2150
    %v2152 = vpop.f32.mrf.mxu0
    %2153 = vdwg.mxu0
    %2154 = vmatpush.bf16.msra.mxu0 %v1880
    %2155 = vmatpush.bf16.msra.mxu0 %v1872
    %2156 = vmatpush.bf16.msra.mxu0 %v1864
    %2157 = vmatpush.bf16.msra.mxu0 %v1856
    %2158 = vmatpush.bf16.msra.mxu0 %v1848
    %2159 = vmatpush.bf16.msra.mxu0 %v1840
    %2160 = vmatpush.bf16.msra.mxu0 %v1832
    %2161 = vmatpush.bf16.msra.mxu0 %v1824
    %2162 = vmatmul.bf16.gmra.mxu0 %v184
    %v2163 = vpop.f32.mrf.mxu0
    %v2164 = vadd.f32 %v2151, %v2163
    %v2165 = vpop.f32.mrf.mxu0
    %2166 = vdwg.mxu0
    %2167 = vmatpush.bf16.msra.mxu0 %v1817
    %2168 = vmatpush.bf16.msra.mxu0 %v1809
    %2169 = vmatpush.bf16.msra.mxu0 %v1801
    %2170 = vmatpush.bf16.msra.mxu0 %v1793
    %2171 = vmatpush.bf16.msra.mxu0 %v1785
    %2172 = vmatpush.bf16.msra.mxu0 %v1777
    %2173 = vmatpush.bf16.msra.mxu0 %v1769
    %2174 = vmatpush.bf16.msra.mxu0 %v1761
    %2175 = vmatmul.bf16.gmra.mxu0 %v183
    %v2176 = vpop.f32.mrf.mxu0
    %v2177 = vadd.f32 %v1361, %v2176
    %v2178 = vpop.f32.mrf.mxu0
    %2179 = vdwg.mxu0
    %2180 = vmatpush.bf16.msra.mxu0 %v1881
    %2181 = vmatpush.bf16.msra.mxu0 %v1873
    %2182 = vmatpush.bf16.msra.mxu0 %v1865
    %2183 = vmatpush.bf16.msra.mxu0 %v1857
    %2184 = vmatpush.bf16.msra.mxu0 %v1849
    %2185 = vmatpush.bf16.msra.mxu0 %v1841
    %2186 = vmatpush.bf16.msra.mxu0 %v1833
    %2187 = vmatpush.bf16.msra.mxu0 %v1825
    %2188 = vmatmul.bf16.gmra.mxu0 %v184
    %v2189 = vpop.f32.mrf.mxu0
    %v2190 = vadd.f32 %v2177, %v2189
    %v2191 = vpop.f32.mrf.mxu0
    %2192 = vdwg.mxu0
    %2193 = vmatpush.bf16.msra.mxu0 %v1818
    %2194 = vmatpush.bf16.msra.mxu0 %v1810
    %2195 = vmatpush.bf16.msra.mxu0 %v1802
    %2196 = vmatpush.bf16.msra.mxu0 %v1794
    %2197 = vmatpush.bf16.msra.mxu0 %v1786
    %2198 = vmatpush.bf16.msra.mxu0 %v1778
    %2199 = vmatpush.bf16.msra.mxu0 %v1770
    %2200 = vmatpush.bf16.msra.mxu0 %v1762
    %2201 = vmatmul.bf16.gmra.mxu0 %v183
    %v2202 = vpop.f32.mrf.mxu0
    %v2203 = vadd.f32 %v1362, %v2202
    %v2204 = vpop.f32.mrf.mxu0
    %2205 = vdwg.mxu0
    %2206 = vmatpush.bf16.msra.mxu0 %v1882
    %2207 = vmatpush.bf16.msra.mxu0 %v1874
    %2208 = vmatpush.bf16.msra.mxu0 %v1866
    %2209 = vmatpush.bf16.msra.mxu0 %v1858
    %2210 = vmatpush.bf16.msra.mxu0 %v1850
    %2211 = vmatpush.bf16.msra.mxu0 %v1842
    %2212 = vmatpush.bf16.msra.mxu0 %v1834
    %2213 = vmatpush.bf16.msra.mxu0 %v1826
    %2214 = vmatmul.bf16.gmra.mxu0 %v184
    %v2215 = vpop.f32.mrf.mxu0
    %v2216 = vadd.f32 %v2203, %v2215
    %v2217 = vpop.f32.mrf.mxu0
    %2218 = vdwg.mxu0
    %v2219 = vmul.f32 %v2034, 0.01
    %v2220 = vmul.f32 %v2060, 0.01
    %v2221 = vmul.f32 %v2086, 0.01
    %v2222 = vmul.f32 %v2112, 0.01
    %v2223 = vmul.f32 %v2138, 0.01
    %v2224 = vmul.f32 %v2164, 0.01
    %v2225 = vmul.f32 %v2190, 0.01
    %v2226 = vmul.f32 %v2216, 0.01
    %v2227 = vmax.f32 %v2034, %v2219
    %v2228 = vmax.f32 %v2060, %v2220
    %v2229 = vmax.f32 %v2086, %v2221
    %v2230 = vmax.f32 %v2112, %v2222
    %v2231 = vmax.f32 %v2138, %v2223
    %v2232 = vmax.f32 %v2164, %v2224
    %v2233 = vmax.f32 %v2190, %v2225
    %v2234 = vmax.f32 %v2216, %v2226
    %v2235 = vpack.c.bf16 %v2227, %v2227
    %v2236 = vpack.c.bf16 %v2228, %v2228
    %v2237 = vpack.c.bf16 %v2229, %v2229
    %v2238 = vpack.c.bf16 %v2230, %v2230
    %v2239 = vpack.c.bf16 %v2231, %v2231
    %v2240 = vpack.c.bf16 %v2232, %v2232
    %v2241 = vpack.c.bf16 %v2233, %v2233
    %v2242 = vpack.c.bf16 %v2234, %v2234
    %v2243 = vld [vmem:[#allocation14] sm:$0xff]
    %v2244 = vld [vmem:[#allocation14 + $0x8] sm:$0xff]
    %v2245 = vld [vmem:[#allocation14 + $0x10] sm:$0xff]
    %v2246 = vld [vmem:[#allocation14 + $0x18] sm:$0xff]
    %v2247 = vld [vmem:[#allocation14 + $0x20] sm:$0xff]
    %v2248 = vld [vmem:[#allocation14 + $0x28] sm:$0xff]
    %v2249 = vld [vmem:[#allocation14 + $0x30] sm:$0xff]
    %v2250 = vld [vmem:[#allocation14 + $0x38] sm:$0xff]
    %v2251 = vld [vmem:[#allocation14 + $0x40] sm:$0xff]
    %v2252 = vld [vmem:[#allocation14 + $0x48] sm:$0xff]
    %v2253 = vld [vmem:[#allocation14 + $0x50] sm:$0xff]
    %v2254 = vld [vmem:[#allocation14 + $0x58] sm:$0xff]
    %v2255 = vld [vmem:[#allocation14 + $0x60] sm:$0xff]
    %v2256 = vld [vmem:[#allocation14 + $0x68] sm:$0xff]
    %v2257 = vld [vmem:[#allocation14 + $0x70] sm:$0xff]
    %v2258 = vld [vmem:[#allocation14 + $0x78] sm:$0xff]
    %v2259 = vld [vmem:[#allocation14 + $0x80] sm:$0xff]
    %v2260 = vld [vmem:[#allocation14 + $0x88] sm:$0xff]
    %v2261 = vld [vmem:[#allocation14 + $0x90] sm:$0xff]
    %v2262 = vld [vmem:[#allocation14 + $0x98] sm:$0xff]
    %v2263 = vld [vmem:[#allocation14 + $0xa0] sm:$0xff]
    %v2264 = vld [vmem:[#allocation14 + $0xa8] sm:$0xff]
    %v2265 = vld [vmem:[#allocation14 + $0xb0] sm:$0xff]
    %v2266 = vld [vmem:[#allocation14 + $0xb8] sm:$0xff]
    %v2267 = vld [vmem:[#allocation14 + $0xc0] sm:$0xff]
    %v2268 = vld [vmem:[#allocation14 + $0xc8] sm:$0xff]
    %v2269 = vld [vmem:[#allocation14 + $0xd0] sm:$0xff]
    %v2270 = vld [vmem:[#allocation14 + $0xd8] sm:$0xff]
    %v2271 = vld [vmem:[#allocation14 + $0xe0] sm:$0xff]
    %v2272 = vld [vmem:[#allocation14 + $0xe8] sm:$0xff]
    %v2273 = vld [vmem:[#allocation14 + $0xf0] sm:$0xff]
    %v2274 = vld [vmem:[#allocation14 + $0xf8] sm:$0xff]
    %v2275 = vld [vmem:[#allocation14 + $0x100] sm:$0xff]
    %v2276 = vld [vmem:[#allocation14 + $0x108] sm:$0xff]
    %v2277 = vld [vmem:[#allocation14 + $0x110] sm:$0xff]
    %v2278 = vld [vmem:[#allocation14 + $0x118] sm:$0xff]
    %v2279 = vld [vmem:[#allocation14 + $0x120] sm:$0xff]
    %v2280 = vld [vmem:[#allocation14 + $0x128] sm:$0xff]
    %v2281 = vld [vmem:[#allocation14 + $0x130] sm:$0xff]
    %v2282 = vld [vmem:[#allocation14 + $0x138] sm:$0xff]
    %v2283 = vld [vmem:[#allocation14 + $0x140] sm:$0xff]
    %v2284 = vld [vmem:[#allocation14 + $0x148] sm:$0xff]
    %v2285 = vld [vmem:[#allocation14 + $0x150] sm:$0xff]
    %v2286 = vld [vmem:[#allocation14 + $0x158] sm:$0xff]
    %v2287 = vld [vmem:[#allocation14 + $0x160] sm:$0xff]
    %v2288 = vld [vmem:[#allocation14 + $0x168] sm:$0xff]
    %v2289 = vld [vmem:[#allocation14 + $0x170] sm:$0xff]
    %v2290 = vld [vmem:[#allocation14 + $0x178] sm:$0xff]
    %v2291 = vld [vmem:[#allocation14 + $0x180] sm:$0xff]
    %v2292 = vld [vmem:[#allocation14 + $0x188] sm:$0xff]
    %v2293 = vld [vmem:[#allocation14 + $0x190] sm:$0xff]
    %v2294 = vld [vmem:[#allocation14 + $0x198] sm:$0xff]
    %v2295 = vld [vmem:[#allocation14 + $0x1a0] sm:$0xff]
    %v2296 = vld [vmem:[#allocation14 + $0x1a8] sm:$0xff]
    %v2297 = vld [vmem:[#allocation14 + $0x1b0] sm:$0xff]
    %v2298 = vld [vmem:[#allocation14 + $0x1b8] sm:$0xff]
    %v2299 = vld [vmem:[#allocation14 + $0x1c0] sm:$0xff]
    %v2300 = vld [vmem:[#allocation14 + $0x1c8] sm:$0xff]
    %v2301 = vld [vmem:[#allocation14 + $0x1d0] sm:$0xff]
    %v2302 = vld [vmem:[#allocation14 + $0x1d8] sm:$0xff]
    %v2303 = vld [vmem:[#allocation14 + $0x1e0] sm:$0xff]
    %v2304 = vld [vmem:[#allocation14 + $0x1e8] sm:$0xff]
    %v2305 = vld [vmem:[#allocation14 + $0x1f0] sm:$0xff]
    %v2306 = vld [vmem:[#allocation14 + $0x1f8] sm:$0xff]
    %v2307 = vld [vmem:[#allocation14 + $0x200] sm:$0xff]
    %v2308 = vld [vmem:[#allocation14 + $0x208] sm:$0xff]
    %v2309 = vld [vmem:[#allocation14 + $0x210] sm:$0xff]
    %v2310 = vld [vmem:[#allocation14 + $0x218] sm:$0xff]
    %v2311 = vld [vmem:[#allocation14 + $0x220] sm:$0xff]
    %v2312 = vld [vmem:[#allocation14 + $0x228] sm:$0xff]
    %v2313 = vld [vmem:[#allocation14 + $0x230] sm:$0xff]
    %v2314 = vld [vmem:[#allocation14 + $0x238] sm:$0xff]
    %v2315 = vld [vmem:[#allocation14 + $0x240] sm:$0xff]
    %v2316 = vld [vmem:[#allocation14 + $0x248] sm:$0xff]
    %v2317 = vld [vmem:[#allocation14 + $0x250] sm:$0xff]
    %v2318 = vld [vmem:[#allocation14 + $0x258] sm:$0xff]
    %v2319 = vld [vmem:[#allocation14 + $0x260] sm:$0xff]
    %v2320 = vld [vmem:[#allocation14 + $0x268] sm:$0xff]
    %v2321 = vld [vmem:[#allocation14 + $0x270] sm:$0xff]
    %v2322 = vld [vmem:[#allocation14 + $0x278] sm:$0xff]
    %v2323 = vld [vmem:[#allocation14 + $0x280] sm:$0xff]
    %v2324 = vld [vmem:[#allocation14 + $0x288] sm:$0xff]
    %v2325 = vld [vmem:[#allocation14 + $0x290] sm:$0xff]
    %v2326 = vld [vmem:[#allocation14 + $0x298] sm:$0xff]
    %v2327 = vld [vmem:[#allocation14 + $0x2a0] sm:$0xff]
    %v2328 = vld [vmem:[#allocation14 + $0x2a8] sm:$0xff]
    %v2329 = vld [vmem:[#allocation14 + $0x2b0] sm:$0xff]
    %v2330 = vld [vmem:[#allocation14 + $0x2b8] sm:$0xff]
    %v2331 = vld [vmem:[#allocation14 + $0x2c0] sm:$0xff]
    %v2332 = vld [vmem:[#allocation14 + $0x2c8] sm:$0xff]
    %v2333 = vld [vmem:[#allocation14 + $0x2d0] sm:$0xff]
    %v2334 = vld [vmem:[#allocation14 + $0x2d8] sm:$0xff]
    %v2335 = vld [vmem:[#allocation14 + $0x2e0] sm:$0xff]
    %v2336 = vld [vmem:[#allocation14 + $0x2e8] sm:$0xff]
    %v2337 = vld [vmem:[#allocation14 + $0x2f0] sm:$0xff]
    %v2338 = vld [vmem:[#allocation14 + $0x2f8] sm:$0xff]
    %v2339 = vld [vmem:[#allocation14 + $0x300] sm:$0xff]
    %v2340 = vld [vmem:[#allocation14 + $0x308] sm:$0xff]
    %v2341 = vld [vmem:[#allocation14 + $0x310] sm:$0xff]
    %v2342 = vld [vmem:[#allocation14 + $0x318] sm:$0xff]
    %v2343 = vld [vmem:[#allocation14 + $0x320] sm:$0xff]
    %v2344 = vld [vmem:[#allocation14 + $0x328] sm:$0xff]
    %v2345 = vld [vmem:[#allocation14 + $0x330] sm:$0xff]
    %v2346 = vld [vmem:[#allocation14 + $0x338] sm:$0xff]
    %v2347 = vld [vmem:[#allocation14 + $0x340] sm:$0xff]
    %v2348 = vld [vmem:[#allocation14 + $0x348] sm:$0xff]
    %v2349 = vld [vmem:[#allocation14 + $0x350] sm:$0xff]
    %v2350 = vld [vmem:[#allocation14 + $0x358] sm:$0xff]
    %v2351 = vld [vmem:[#allocation14 + $0x360] sm:$0xff]
    %v2352 = vld [vmem:[#allocation14 + $0x368] sm:$0xff]
    %v2353 = vld [vmem:[#allocation14 + $0x370] sm:$0xff]
    %v2354 = vld [vmem:[#allocation14 + $0x378] sm:$0xff]
    %v2355 = vld [vmem:[#allocation14 + $0x380] sm:$0xff]
    %v2356 = vld [vmem:[#allocation14 + $0x388] sm:$0xff]
    %v2357 = vld [vmem:[#allocation14 + $0x390] sm:$0xff]
    %v2358 = vld [vmem:[#allocation14 + $0x398] sm:$0xff]
    %v2359 = vld [vmem:[#allocation14 + $0x3a0] sm:$0xff]
    %v2360 = vld [vmem:[#allocation14 + $0x3a8] sm:$0xff]
    %v2361 = vld [vmem:[#allocation14 + $0x3b0] sm:$0xff]
    %v2362 = vld [vmem:[#allocation14 + $0x3b8] sm:$0xff]
    %v2363 = vld [vmem:[#allocation14 + $0x3c0] sm:$0xff]
    %v2364 = vld [vmem:[#allocation14 + $0x3c8] sm:$0xff]
    %v2365 = vld [vmem:[#allocation14 + $0x3d0] sm:$0xff]
    %v2366 = vld [vmem:[#allocation14 + $0x3d8] sm:$0xff]
    %v2367 = vld [vmem:[#allocation14 + $0x3e0] sm:$0xff]
    %v2368 = vld [vmem:[#allocation14 + $0x3e8] sm:$0xff]
    %v2369 = vld [vmem:[#allocation14 + $0x3f0] sm:$0xff]
    %v2370 = vld [vmem:[#allocation14 + $0x3f8] sm:$0xff]
    %v2371 = vld [vmem:[#allocation14 + $0x400] sm:$0xff]
    %v2372 = vld [vmem:[#allocation14 + $0x408] sm:$0xff]
    %v2373 = vld [vmem:[#allocation14 + $0x410] sm:$0xff]
    %v2374 = vld [vmem:[#allocation14 + $0x418] sm:$0xff]
    %v2375 = vld [vmem:[#allocation14 + $0x420] sm:$0xff]
    %v2376 = vld [vmem:[#allocation14 + $0x428] sm:$0xff]
    %v2377 = vld [vmem:[#allocation14 + $0x430] sm:$0xff]
    %v2378 = vld [vmem:[#allocation14 + $0x438] sm:$0xff]
    %v2379 = vld [vmem:[#allocation14 + $0x440] sm:$0xff]
    %v2380 = vld [vmem:[#allocation14 + $0x448] sm:$0xff]
    %v2381 = vld [vmem:[#allocation14 + $0x450] sm:$0xff]
    %v2382 = vld [vmem:[#allocation14 + $0x458] sm:$0xff]
    %v2383 = vld [vmem:[#allocation14 + $0x460] sm:$0xff]
    %v2384 = vld [vmem:[#allocation14 + $0x468] sm:$0xff]
    %v2385 = vld [vmem:[#allocation14 + $0x470] sm:$0xff]
    %v2386 = vld [vmem:[#allocation14 + $0x478] sm:$0xff]
    %v2387 = vld [vmem:[#allocation14 + $0x480] sm:$0xff]
    %v2388 = vld [vmem:[#allocation14 + $0x488] sm:$0xff]
    %v2389 = vld [vmem:[#allocation14 + $0x490] sm:$0xff]
    %v2390 = vld [vmem:[#allocation14 + $0x498] sm:$0xff]
    %v2391 = vld [vmem:[#allocation14 + $0x4a0] sm:$0xff]
    %v2392 = vld [vmem:[#allocation14 + $0x4a8] sm:$0xff]
    %v2393 = vld [vmem:[#allocation14 + $0x4b0] sm:$0xff]
    %v2394 = vld [vmem:[#allocation14 + $0x4b8] sm:$0xff]
    %v2395 = vld [vmem:[#allocation14 + $0x4c0] sm:$0xff]
    %v2396 = vld [vmem:[#allocation14 + $0x4c8] sm:$0xff]
    %v2397 = vld [vmem:[#allocation14 + $0x4d0] sm:$0xff]
    %v2398 = vld [vmem:[#allocation14 + $0x4d8] sm:$0xff]
    %v2399 = vld [vmem:[#allocation14 + $0x4e0] sm:$0xff]
    %v2400 = vld [vmem:[#allocation14 + $0x4e8] sm:$0xff]
    %v2401 = vld [vmem:[#allocation14 + $0x4f0] sm:$0xff]
    %v2402 = vld [vmem:[#allocation14 + $0x4f8] sm:$0xff]
    %v2403 = vld [vmem:[#allocation14 + $0x500] sm:$0xff]
    %v2404 = vld [vmem:[#allocation14 + $0x508] sm:$0xff]
    %v2405 = vld [vmem:[#allocation14 + $0x510] sm:$0xff]
    %v2406 = vld [vmem:[#allocation14 + $0x518] sm:$0xff]
    %v2407 = vld [vmem:[#allocation14 + $0x520] sm:$0xff]
    %v2408 = vld [vmem:[#allocation14 + $0x528] sm:$0xff]
    %v2409 = vld [vmem:[#allocation14 + $0x530] sm:$0xff]
    %v2410 = vld [vmem:[#allocation14 + $0x538] sm:$0xff]
    %v2411 = vld [vmem:[#allocation14 + $0x540] sm:$0xff]
    %v2412 = vld [vmem:[#allocation14 + $0x548] sm:$0xff]
    %v2413 = vld [vmem:[#allocation14 + $0x550] sm:$0xff]
    %v2414 = vld [vmem:[#allocation14 + $0x558] sm:$0xff]
    %v2415 = vld [vmem:[#allocation14 + $0x560] sm:$0xff]
    %v2416 = vld [vmem:[#allocation14 + $0x568] sm:$0xff]
    %v2417 = vld [vmem:[#allocation14 + $0x570] sm:$0xff]
    %v2418 = vld [vmem:[#allocation14 + $0x578] sm:$0xff]
    %v2419 = vld [vmem:[#allocation14 + $0x580] sm:$0xff]
    %v2420 = vld [vmem:[#allocation14 + $0x588] sm:$0xff]
    %v2421 = vld [vmem:[#allocation14 + $0x590] sm:$0xff]
    %v2422 = vld [vmem:[#allocation14 + $0x598] sm:$0xff]
    %v2423 = vld [vmem:[#allocation14 + $0x5a0] sm:$0xff]
    %v2424 = vld [vmem:[#allocation14 + $0x5a8] sm:$0xff]
    %v2425 = vld [vmem:[#allocation14 + $0x5b0] sm:$0xff]
    %v2426 = vld [vmem:[#allocation14 + $0x5b8] sm:$0xff]
    %v2427 = vld [vmem:[#allocation14 + $0x5c0] sm:$0xff]
    %v2428 = vld [vmem:[#allocation14 + $0x5c8] sm:$0xff]
    %v2429 = vld [vmem:[#allocation14 + $0x5d0] sm:$0xff]
    %v2430 = vld [vmem:[#allocation14 + $0x5d8] sm:$0xff]
    %v2431 = vld [vmem:[#allocation14 + $0x5e0] sm:$0xff]
    %v2432 = vld [vmem:[#allocation14 + $0x5e8] sm:$0xff]
    %v2433 = vld [vmem:[#allocation14 + $0x5f0] sm:$0xff]
    %v2434 = vld [vmem:[#allocation14 + $0x5f8] sm:$0xff]
    %v2435 = vld [vmem:[#allocation14 + $0x600] sm:$0xff]
    %v2436 = vld [vmem:[#allocation14 + $0x608] sm:$0xff]
    %v2437 = vld [vmem:[#allocation14 + $0x610] sm:$0xff]
    %v2438 = vld [vmem:[#allocation14 + $0x618] sm:$0xff]
    %v2439 = vld [vmem:[#allocation14 + $0x620] sm:$0xff]
    %v2440 = vld [vmem:[#allocation14 + $0x628] sm:$0xff]
    %v2441 = vld [vmem:[#allocation14 + $0x630] sm:$0xff]
    %v2442 = vld [vmem:[#allocation14 + $0x638] sm:$0xff]
    %v2443 = vld [vmem:[#allocation14 + $0x640] sm:$0xff]
    %v2444 = vld [vmem:[#allocation14 + $0x648] sm:$0xff]
    %v2445 = vld [vmem:[#allocation14 + $0x650] sm:$0xff]
    %v2446 = vld [vmem:[#allocation14 + $0x658] sm:$0xff]
    %v2447 = vld [vmem:[#allocation14 + $0x660] sm:$0xff]
    %v2448 = vld [vmem:[#allocation14 + $0x668] sm:$0xff]
    %v2449 = vld [vmem:[#allocation14 + $0x670] sm:$0xff]
    %v2450 = vld [vmem:[#allocation14 + $0x678] sm:$0xff]
    %v2451 = vld [vmem:[#allocation14 + $0x680] sm:$0xff]
    %v2452 = vld [vmem:[#allocation14 + $0x688] sm:$0xff]
    %v2453 = vld [vmem:[#allocation14 + $0x690] sm:$0xff]
    %v2454 = vld [vmem:[#allocation14 + $0x698] sm:$0xff]
    %v2455 = vld [vmem:[#allocation14 + $0x6a0] sm:$0xff]
    %v2456 = vld [vmem:[#allocation14 + $0x6a8] sm:$0xff]
    %v2457 = vld [vmem:[#allocation14 + $0x6b0] sm:$0xff]
    %v2458 = vld [vmem:[#allocation14 + $0x6b8] sm:$0xff]
    %v2459 = vld [vmem:[#allocation14 + $0x6c0] sm:$0xff]
    %v2460 = vld [vmem:[#allocation14 + $0x6c8] sm:$0xff]
    %v2461 = vld [vmem:[#allocation14 + $0x6d0] sm:$0xff]
    %v2462 = vld [vmem:[#allocation14 + $0x6d8] sm:$0xff]
    %v2463 = vld [vmem:[#allocation14 + $0x6e0] sm:$0xff]
    %v2464 = vld [vmem:[#allocation14 + $0x6e8] sm:$0xff]
    %v2465 = vld [vmem:[#allocation14 + $0x6f0] sm:$0xff]
    %v2466 = vld [vmem:[#allocation14 + $0x6f8] sm:$0xff]
    %v2467 = vld [vmem:[#allocation14 + $0x700] sm:$0xff]
    %v2468 = vld [vmem:[#allocation14 + $0x708] sm:$0xff]
    %v2469 = vld [vmem:[#allocation14 + $0x710] sm:$0xff]
    %v2470 = vld [vmem:[#allocation14 + $0x718] sm:$0xff]
    %v2471 = vld [vmem:[#allocation14 + $0x720] sm:$0xff]
    %v2472 = vld [vmem:[#allocation14 + $0x728] sm:$0xff]
    %v2473 = vld [vmem:[#allocation14 + $0x730] sm:$0xff]
    %v2474 = vld [vmem:[#allocation14 + $0x738] sm:$0xff]
    %v2475 = vld [vmem:[#allocation14 + $0x740] sm:$0xff]
    %v2476 = vld [vmem:[#allocation14 + $0x748] sm:$0xff]
    %v2477 = vld [vmem:[#allocation14 + $0x750] sm:$0xff]
    %v2478 = vld [vmem:[#allocation14 + $0x758] sm:$0xff]
    %v2479 = vld [vmem:[#allocation14 + $0x760] sm:$0xff]
    %v2480 = vld [vmem:[#allocation14 + $0x768] sm:$0xff]
    %v2481 = vld [vmem:[#allocation14 + $0x770] sm:$0xff]
    %v2482 = vld [vmem:[#allocation14 + $0x778] sm:$0xff]
    %v2483 = vld [vmem:[#allocation14 + $0x780] sm:$0xff]
    %v2484 = vld [vmem:[#allocation14 + $0x788] sm:$0xff]
    %v2485 = vld [vmem:[#allocation14 + $0x790] sm:$0xff]
    %v2486 = vld [vmem:[#allocation14 + $0x798] sm:$0xff]
    %v2487 = vld [vmem:[#allocation14 + $0x7a0] sm:$0xff]
    %v2488 = vld [vmem:[#allocation14 + $0x7a8] sm:$0xff]
    %v2489 = vld [vmem:[#allocation14 + $0x7b0] sm:$0xff]
    %v2490 = vld [vmem:[#allocation14 + $0x7b8] sm:$0xff]
    %v2491 = vld [vmem:[#allocation14 + $0x7c0] sm:$0xff]
    %v2492 = vld [vmem:[#allocation14 + $0x7c8] sm:$0xff]
    %v2493 = vld [vmem:[#allocation14 + $0x7d0] sm:$0xff]
    %v2494 = vld [vmem:[#allocation14 + $0x7d8] sm:$0xff]
    %v2495 = vld [vmem:[#allocation14 + $0x7e0] sm:$0xff]
    %v2496 = vld [vmem:[#allocation14 + $0x7e8] sm:$0xff]
    %v2497 = vld [vmem:[#allocation14 + $0x7f0] sm:$0xff]
    %v2498 = vld [vmem:[#allocation14 + $0x7f8] sm:$0xff]
    %v2499 = vld [vmem:[%s9] sm:$0xf]
    %v2501 = vperm.slane %v2499, 0
    %v2502 = vperm.slane %v2499, 1
    %v2503 = vperm.slane %v2499, 2
    %v2504 = vperm.slane %v2499, 3
    %v2765 = vunpack.c.l.b16 %v2243
    %v2766 = vunpack.c.h.b16 %v2243
    %v2767 = vunpack.c.l.b16 %v2244
    %v2768 = vunpack.c.h.b16 %v2244
    %v2769 = vunpack.c.l.b16 %v2245
    %v2770 = vunpack.c.h.b16 %v2245
    %v2771 = vunpack.c.l.b16 %v2246
    %v2772 = vunpack.c.h.b16 %v2246
    %v2773 = vunpack.c.l.b16 %v2247
    %v2774 = vunpack.c.h.b16 %v2247
    %v2775 = vunpack.c.l.b16 %v2248
    %v2776 = vunpack.c.h.b16 %v2248
    %v2777 = vunpack.c.l.b16 %v2249
    %v2778 = vunpack.c.h.b16 %v2249
    %v2779 = vunpack.c.l.b16 %v2250
    %v2780 = vunpack.c.h.b16 %v2250
    %v2781 = vunpack.c.l.b16 %v2251
    %v2782 = vunpack.c.h.b16 %v2251
    %v2783 = vunpack.c.l.b16 %v2252
    %v2784 = vunpack.c.h.b16 %v2252
    %v2785 = vunpack.c.l.b16 %v2253
    %v2786 = vunpack.c.h.b16 %v2253
    %v2787 = vunpack.c.l.b16 %v2254
    %v2788 = vunpack.c.h.b16 %v2254
    %v2789 = vunpack.c.l.b16 %v2255
    %v2790 = vunpack.c.h.b16 %v2255
    %v2791 = vunpack.c.l.b16 %v2256
    %v2792 = vunpack.c.h.b16 %v2256
    %v2793 = vunpack.c.l.b16 %v2257
    %v2794 = vunpack.c.h.b16 %v2257
    %v2795 = vunpack.c.l.b16 %v2258
    %v2796 = vunpack.c.h.b16 %v2258
    %v2797 = vunpack.c.l.b16 %v2259
    %v2798 = vunpack.c.h.b16 %v2259
    %v2799 = vunpack.c.l.b16 %v2260
    %v2800 = vunpack.c.h.b16 %v2260
    %v2801 = vunpack.c.l.b16 %v2261
    %v2802 = vunpack.c.h.b16 %v2261
    %v2803 = vunpack.c.l.b16 %v2262
    %v2804 = vunpack.c.h.b16 %v2262
    %v2805 = vunpack.c.l.b16 %v2263
    %v2806 = vunpack.c.h.b16 %v2263
    %v2807 = vunpack.c.l.b16 %v2264
    %v2808 = vunpack.c.h.b16 %v2264
    %v2809 = vunpack.c.l.b16 %v2265
    %v2810 = vunpack.c.h.b16 %v2265
    %v2811 = vunpack.c.l.b16 %v2266
    %v2812 = vunpack.c.h.b16 %v2266
    %v2813 = vunpack.c.l.b16 %v2267
    %v2814 = vunpack.c.h.b16 %v2267
    %v2815 = vunpack.c.l.b16 %v2268
    %v2816 = vunpack.c.h.b16 %v2268
    %v2817 = vunpack.c.l.b16 %v2269
    %v2818 = vunpack.c.h.b16 %v2269
    %v2819 = vunpack.c.l.b16 %v2270
    %v2820 = vunpack.c.h.b16 %v2270
    %v2821 = vunpack.c.l.b16 %v2271
    %v2822 = vunpack.c.h.b16 %v2271
    %v2823 = vunpack.c.l.b16 %v2272
    %v2824 = vunpack.c.h.b16 %v2272
    %v2825 = vunpack.c.l.b16 %v2273
    %v2826 = vunpack.c.h.b16 %v2273
    %v2827 = vunpack.c.l.b16 %v2274
    %v2828 = vunpack.c.h.b16 %v2274
    %v2829 = vunpack.c.l.b16 %v2275
    %v2830 = vunpack.c.h.b16 %v2275
    %v2831 = vunpack.c.l.b16 %v2276
    %v2832 = vunpack.c.h.b16 %v2276
    %v2833 = vunpack.c.l.b16 %v2277
    %v2834 = vunpack.c.h.b16 %v2277
    %v2835 = vunpack.c.l.b16 %v2278
    %v2836 = vunpack.c.h.b16 %v2278
    %v2837 = vunpack.c.l.b16 %v2279
    %v2838 = vunpack.c.h.b16 %v2279
    %v2839 = vunpack.c.l.b16 %v2280
    %v2840 = vunpack.c.h.b16 %v2280
    %v2841 = vunpack.c.l.b16 %v2281
    %v2842 = vunpack.c.h.b16 %v2281
    %v2843 = vunpack.c.l.b16 %v2282
    %v2844 = vunpack.c.h.b16 %v2282
    %v2845 = vunpack.c.l.b16 %v2283
    %v2846 = vunpack.c.h.b16 %v2283
    %v2847 = vunpack.c.l.b16 %v2284
    %v2848 = vunpack.c.h.b16 %v2284
    %v2849 = vunpack.c.l.b16 %v2285
    %v2850 = vunpack.c.h.b16 %v2285
    %v2851 = vunpack.c.l.b16 %v2286
    %v2852 = vunpack.c.h.b16 %v2286
    %v2853 = vunpack.c.l.b16 %v2287
    %v2854 = vunpack.c.h.b16 %v2287
    %v2855 = vunpack.c.l.b16 %v2288
    %v2856 = vunpack.c.h.b16 %v2288
    %v2857 = vunpack.c.l.b16 %v2289
    %v2858 = vunpack.c.h.b16 %v2289
    %v2859 = vunpack.c.l.b16 %v2290
    %v2860 = vunpack.c.h.b16 %v2290
    %v2861 = vunpack.c.l.b16 %v2291
    %v2862 = vunpack.c.h.b16 %v2291
    %v2863 = vunpack.c.l.b16 %v2292
    %v2864 = vunpack.c.h.b16 %v2292
    %v2865 = vunpack.c.l.b16 %v2293
    %v2866 = vunpack.c.h.b16 %v2293
    %v2867 = vunpack.c.l.b16 %v2294
    %v2868 = vunpack.c.h.b16 %v2294
    %v2869 = vunpack.c.l.b16 %v2295
    %v2870 = vunpack.c.h.b16 %v2295
    %v2871 = vunpack.c.l.b16 %v2296
    %v2872 = vunpack.c.h.b16 %v2296
    %v2873 = vunpack.c.l.b16 %v2297
    %v2874 = vunpack.c.h.b16 %v2297
    %v2875 = vunpack.c.l.b16 %v2298
    %v2876 = vunpack.c.h.b16 %v2298
    %v2877 = vunpack.c.l.b16 %v2299
    %v2878 = vunpack.c.h.b16 %v2299
    %v2879 = vunpack.c.l.b16 %v2300
    %v2880 = vunpack.c.h.b16 %v2300
    %v2881 = vunpack.c.l.b16 %v2301
    %v2882 = vunpack.c.h.b16 %v2301
    %v2883 = vunpack.c.l.b16 %v2302
    %v2884 = vunpack.c.h.b16 %v2302
    %v2885 = vunpack.c.l.b16 %v2303
    %v2886 = vunpack.c.h.b16 %v2303
    %v2887 = vunpack.c.l.b16 %v2304
    %v2888 = vunpack.c.h.b16 %v2304
    %v2889 = vunpack.c.l.b16 %v2305
    %v2890 = vunpack.c.h.b16 %v2305
    %v2891 = vunpack.c.l.b16 %v2306
    %v2892 = vunpack.c.h.b16 %v2306
    %v2893 = vunpack.c.l.b16 %v2307
    %v2894 = vunpack.c.h.b16 %v2307
    %v2895 = vunpack.c.l.b16 %v2308
    %v2896 = vunpack.c.h.b16 %v2308
    %v2897 = vunpack.c.l.b16 %v2309
    %v2898 = vunpack.c.h.b16 %v2309
    %v2899 = vunpack.c.l.b16 %v2310
    %v2900 = vunpack.c.h.b16 %v2310
    %v2901 = vunpack.c.l.b16 %v2311
    %v2902 = vunpack.c.h.b16 %v2311
    %v2903 = vunpack.c.l.b16 %v2312
    %v2904 = vunpack.c.h.b16 %v2312
    %v2905 = vunpack.c.l.b16 %v2313
    %v2906 = vunpack.c.h.b16 %v2313
    %v2907 = vunpack.c.l.b16 %v2314
    %v2908 = vunpack.c.h.b16 %v2314
    %v2909 = vunpack.c.l.b16 %v2315
    %v2910 = vunpack.c.h.b16 %v2315
    %v2911 = vunpack.c.l.b16 %v2316
    %v2912 = vunpack.c.h.b16 %v2316
    %v2913 = vunpack.c.l.b16 %v2317
    %v2914 = vunpack.c.h.b16 %v2317
    %v2915 = vunpack.c.l.b16 %v2318
    %v2916 = vunpack.c.h.b16 %v2318
    %v2917 = vunpack.c.l.b16 %v2319
    %v2918 = vunpack.c.h.b16 %v2319
    %v2919 = vunpack.c.l.b16 %v2320
    %v2920 = vunpack.c.h.b16 %v2320
    %v2921 = vunpack.c.l.b16 %v2321
    %v2922 = vunpack.c.h.b16 %v2321
    %v2923 = vunpack.c.l.b16 %v2322
    %v2924 = vunpack.c.h.b16 %v2322
    %v2925 = vunpack.c.l.b16 %v2323
    %v2926 = vunpack.c.h.b16 %v2323
    %v2927 = vunpack.c.l.b16 %v2324
    %v2928 = vunpack.c.h.b16 %v2324
    %v2929 = vunpack.c.l.b16 %v2325
    %v2930 = vunpack.c.h.b16 %v2325
    %v2931 = vunpack.c.l.b16 %v2326
    %v2932 = vunpack.c.h.b16 %v2326
    %v2933 = vunpack.c.l.b16 %v2327
    %v2934 = vunpack.c.h.b16 %v2327
    %v2935 = vunpack.c.l.b16 %v2328
    %v2936 = vunpack.c.h.b16 %v2328
    %v2937 = vunpack.c.l.b16 %v2329
    %v2938 = vunpack.c.h.b16 %v2329
    %v2939 = vunpack.c.l.b16 %v2330
    %v2940 = vunpack.c.h.b16 %v2330
    %v2941 = vunpack.c.l.b16 %v2331
    %v2942 = vunpack.c.h.b16 %v2331
    %v2943 = vunpack.c.l.b16 %v2332
    %v2944 = vunpack.c.h.b16 %v2332
    %v2945 = vunpack.c.l.b16 %v2333
    %v2946 = vunpack.c.h.b16 %v2333
    %v2947 = vunpack.c.l.b16 %v2334
    %v2948 = vunpack.c.h.b16 %v2334
    %v2949 = vunpack.c.l.b16 %v2335
    %v2950 = vunpack.c.h.b16 %v2335
    %v2951 = vunpack.c.l.b16 %v2336
    %v2952 = vunpack.c.h.b16 %v2336
    %v2953 = vunpack.c.l.b16 %v2337
    %v2954 = vunpack.c.h.b16 %v2337
    %v2955 = vunpack.c.l.b16 %v2338
    %v2956 = vunpack.c.h.b16 %v2338
    %v2957 = vunpack.c.l.b16 %v2339
    %v2958 = vunpack.c.h.b16 %v2339
    %v2959 = vunpack.c.l.b16 %v2340
    %v2960 = vunpack.c.h.b16 %v2340
    %v2961 = vunpack.c.l.b16 %v2341
    %v2962 = vunpack.c.h.b16 %v2341
    %v2963 = vunpack.c.l.b16 %v2342
    %v2964 = vunpack.c.h.b16 %v2342
    %v2965 = vunpack.c.l.b16 %v2343
    %v2966 = vunpack.c.h.b16 %v2343
    %v2967 = vunpack.c.l.b16 %v2344
    %v2968 = vunpack.c.h.b16 %v2344
    %v2969 = vunpack.c.l.b16 %v2345
    %v2970 = vunpack.c.h.b16 %v2345
    %v2971 = vunpack.c.l.b16 %v2346
    %v2972 = vunpack.c.h.b16 %v2346
    %v2973 = vunpack.c.l.b16 %v2347
    %v2974 = vunpack.c.h.b16 %v2347
    %v2975 = vunpack.c.l.b16 %v2348
    %v2976 = vunpack.c.h.b16 %v2348
    %v2977 = vunpack.c.l.b16 %v2349
    %v2978 = vunpack.c.h.b16 %v2349
    %v2979 = vunpack.c.l.b16 %v2350
    %v2980 = vunpack.c.h.b16 %v2350
    %v2981 = vunpack.c.l.b16 %v2351
    %v2982 = vunpack.c.h.b16 %v2351
    %v2983 = vunpack.c.l.b16 %v2352
    %v2984 = vunpack.c.h.b16 %v2352
    %v2985 = vunpack.c.l.b16 %v2353
    %v2986 = vunpack.c.h.b16 %v2353
    %v2987 = vunpack.c.l.b16 %v2354
    %v2988 = vunpack.c.h.b16 %v2354
    %v2989 = vunpack.c.l.b16 %v2355
    %v2990 = vunpack.c.h.b16 %v2355
    %v2991 = vunpack.c.l.b16 %v2356
    %v2992 = vunpack.c.h.b16 %v2356
    %v2993 = vunpack.c.l.b16 %v2357
    %v2994 = vunpack.c.h.b16 %v2357
    %v2995 = vunpack.c.l.b16 %v2358
    %v2996 = vunpack.c.h.b16 %v2358
    %v2997 = vunpack.c.l.b16 %v2359
    %v2998 = vunpack.c.h.b16 %v2359
    %v2999 = vunpack.c.l.b16 %v2360
    %v3000 = vunpack.c.h.b16 %v2360
    %v3001 = vunpack.c.l.b16 %v2361
    %v3002 = vunpack.c.h.b16 %v2361
    %v3003 = vunpack.c.l.b16 %v2362
    %v3004 = vunpack.c.h.b16 %v2362
    %v3005 = vunpack.c.l.b16 %v2363
    %v3006 = vunpack.c.h.b16 %v2363
    %v3007 = vunpack.c.l.b16 %v2364
    %v3008 = vunpack.c.h.b16 %v2364
    %v3009 = vunpack.c.l.b16 %v2365
    %v3010 = vunpack.c.h.b16 %v2365
    %v3011 = vunpack.c.l.b16 %v2366
    %v3012 = vunpack.c.h.b16 %v2366
    %v3013 = vunpack.c.l.b16 %v2367
    %v3014 = vunpack.c.h.b16 %v2367
    %v3015 = vunpack.c.l.b16 %v2368
    %v3016 = vunpack.c.h.b16 %v2368
    %v3017 = vunpack.c.l.b16 %v2369
    %v3018 = vunpack.c.h.b16 %v2369
    %v3019 = vunpack.c.l.b16 %v2370
    %v3020 = vunpack.c.h.b16 %v2370
    %v3021 = vunpack.c.l.b16 %v2371
    %v3022 = vunpack.c.h.b16 %v2371
    %v3023 = vunpack.c.l.b16 %v2372
    %v3024 = vunpack.c.h.b16 %v2372
    %v3025 = vunpack.c.l.b16 %v2373
    %v3026 = vunpack.c.h.b16 %v2373
    %v3027 = vunpack.c.l.b16 %v2374
    %v3028 = vunpack.c.h.b16 %v2374
    %v3029 = vunpack.c.l.b16 %v2375
    %v3030 = vunpack.c.h.b16 %v2375
    %v3031 = vunpack.c.l.b16 %v2376
    %v3032 = vunpack.c.h.b16 %v2376
    %v3033 = vunpack.c.l.b16 %v2377
    %v3034 = vunpack.c.h.b16 %v2377
    %v3035 = vunpack.c.l.b16 %v2378
    %v3036 = vunpack.c.h.b16 %v2378
    %v3037 = vunpack.c.l.b16 %v2379
    %v3038 = vunpack.c.h.b16 %v2379
    %v3039 = vunpack.c.l.b16 %v2380
    %v3040 = vunpack.c.h.b16 %v2380
    %v3041 = vunpack.c.l.b16 %v2381
    %v3042 = vunpack.c.h.b16 %v2381
    %v3043 = vunpack.c.l.b16 %v2382
    %v3044 = vunpack.c.h.b16 %v2382
    %v3045 = vunpack.c.l.b16 %v2383
    %v3046 = vunpack.c.h.b16 %v2383
    %v3047 = vunpack.c.l.b16 %v2384
    %v3048 = vunpack.c.h.b16 %v2384
    %v3049 = vunpack.c.l.b16 %v2385
    %v3050 = vunpack.c.h.b16 %v2385
    %v3051 = vunpack.c.l.b16 %v2386
    %v3052 = vunpack.c.h.b16 %v2386
    %v3053 = vunpack.c.l.b16 %v2387
    %v3054 = vunpack.c.h.b16 %v2387
    %v3055 = vunpack.c.l.b16 %v2388
    %v3056 = vunpack.c.h.b16 %v2388
    %v3057 = vunpack.c.l.b16 %v2389
    %v3058 = vunpack.c.h.b16 %v2389
    %v3059 = vunpack.c.l.b16 %v2390
    %v3060 = vunpack.c.h.b16 %v2390
    %v3061 = vunpack.c.l.b16 %v2391
    %v3062 = vunpack.c.h.b16 %v2391
    %v3063 = vunpack.c.l.b16 %v2392
    %v3064 = vunpack.c.h.b16 %v2392
    %v3065 = vunpack.c.l.b16 %v2393
    %v3066 = vunpack.c.h.b16 %v2393
    %v3067 = vunpack.c.l.b16 %v2394
    %v3068 = vunpack.c.h.b16 %v2394
    %v3069 = vunpack.c.l.b16 %v2395
    %v3070 = vunpack.c.h.b16 %v2395
    %v3071 = vunpack.c.l.b16 %v2396
    %v3072 = vunpack.c.h.b16 %v2396
    %v3073 = vunpack.c.l.b16 %v2397
    %v3074 = vunpack.c.h.b16 %v2397
    %v3075 = vunpack.c.l.b16 %v2398
    %v3076 = vunpack.c.h.b16 %v2398
    %v3077 = vunpack.c.l.b16 %v2399
    %v3078 = vunpack.c.h.b16 %v2399
    %v3079 = vunpack.c.l.b16 %v2400
    %v3080 = vunpack.c.h.b16 %v2400
    %v3081 = vunpack.c.l.b16 %v2401
    %v3082 = vunpack.c.h.b16 %v2401
    %v3083 = vunpack.c.l.b16 %v2402
    %v3084 = vunpack.c.h.b16 %v2402
    %v3085 = vunpack.c.l.b16 %v2403
    %v3086 = vunpack.c.h.b16 %v2403
    %v3087 = vunpack.c.l.b16 %v2404
    %v3088 = vunpack.c.h.b16 %v2404
    %v3089 = vunpack.c.l.b16 %v2405
    %v3090 = vunpack.c.h.b16 %v2405
    %v3091 = vunpack.c.l.b16 %v2406
    %v3092 = vunpack.c.h.b16 %v2406
    %v3093 = vunpack.c.l.b16 %v2407
    %v3094 = vunpack.c.h.b16 %v2407
    %v3095 = vunpack.c.l.b16 %v2408
    %v3096 = vunpack.c.h.b16 %v2408
    %v3097 = vunpack.c.l.b16 %v2409
    %v3098 = vunpack.c.h.b16 %v2409
    %v3099 = vunpack.c.l.b16 %v2410
    %v3100 = vunpack.c.h.b16 %v2410
    %v3101 = vunpack.c.l.b16 %v2411
    %v3102 = vunpack.c.h.b16 %v2411
    %v3103 = vunpack.c.l.b16 %v2412
    %v3104 = vunpack.c.h.b16 %v2412
    %v3105 = vunpack.c.l.b16 %v2413
    %v3106 = vunpack.c.h.b16 %v2413
    %v3107 = vunpack.c.l.b16 %v2414
    %v3108 = vunpack.c.h.b16 %v2414
    %v3109 = vunpack.c.l.b16 %v2415
    %v3110 = vunpack.c.h.b16 %v2415
    %v3111 = vunpack.c.l.b16 %v2416
    %v3112 = vunpack.c.h.b16 %v2416
    %v3113 = vunpack.c.l.b16 %v2417
    %v3114 = vunpack.c.h.b16 %v2417
    %v3115 = vunpack.c.l.b16 %v2418
    %v3116 = vunpack.c.h.b16 %v2418
    %v3117 = vunpack.c.l.b16 %v2419
    %v3118 = vunpack.c.h.b16 %v2419
    %v3119 = vunpack.c.l.b16 %v2420
    %v3120 = vunpack.c.h.b16 %v2420
    %v3121 = vunpack.c.l.b16 %v2421
    %v3122 = vunpack.c.h.b16 %v2421
    %v3123 = vunpack.c.l.b16 %v2422
    %v3124 = vunpack.c.h.b16 %v2422
    %v3125 = vunpack.c.l.b16 %v2423
    %v3126 = vunpack.c.h.b16 %v2423
    %v3127 = vunpack.c.l.b16 %v2424
    %v3128 = vunpack.c.h.b16 %v2424
    %v3129 = vunpack.c.l.b16 %v2425
    %v3130 = vunpack.c.h.b16 %v2425
    %v3131 = vunpack.c.l.b16 %v2426
    %v3132 = vunpack.c.h.b16 %v2426
    %v3133 = vunpack.c.l.b16 %v2427
    %v3134 = vunpack.c.h.b16 %v2427
    %v3135 = vunpack.c.l.b16 %v2428
    %v3136 = vunpack.c.h.b16 %v2428
    %v3137 = vunpack.c.l.b16 %v2429
    %v3138 = vunpack.c.h.b16 %v2429
    %v3139 = vunpack.c.l.b16 %v2430
    %v3140 = vunpack.c.h.b16 %v2430
    %v3141 = vunpack.c.l.b16 %v2431
    %v3142 = vunpack.c.h.b16 %v2431
    %v3143 = vunpack.c.l.b16 %v2432
    %v3144 = vunpack.c.h.b16 %v2432
    %v3145 = vunpack.c.l.b16 %v2433
    %v3146 = vunpack.c.h.b16 %v2433
    %v3147 = vunpack.c.l.b16 %v2434
    %v3148 = vunpack.c.h.b16 %v2434
    %v3149 = vunpack.c.l.b16 %v2435
    %v3150 = vunpack.c.h.b16 %v2435
    %v3151 = vunpack.c.l.b16 %v2436
    %v3152 = vunpack.c.h.b16 %v2436
    %v3153 = vunpack.c.l.b16 %v2437
    %v3154 = vunpack.c.h.b16 %v2437
    %v3155 = vunpack.c.l.b16 %v2438
    %v3156 = vunpack.c.h.b16 %v2438
    %v3157 = vunpack.c.l.b16 %v2439
    %v3158 = vunpack.c.h.b16 %v2439
    %v3159 = vunpack.c.l.b16 %v2440
    %v3160 = vunpack.c.h.b16 %v2440
    %v3161 = vunpack.c.l.b16 %v2441
    %v3162 = vunpack.c.h.b16 %v2441
    %v3163 = vunpack.c.l.b16 %v2442
    %v3164 = vunpack.c.h.b16 %v2442
    %v3165 = vunpack.c.l.b16 %v2443
    %v3166 = vunpack.c.h.b16 %v2443
    %v3167 = vunpack.c.l.b16 %v2444
    %v3168 = vunpack.c.h.b16 %v2444
    %v3169 = vunpack.c.l.b16 %v2445
    %v3170 = vunpack.c.h.b16 %v2445
    %v3171 = vunpack.c.l.b16 %v2446
    %v3172 = vunpack.c.h.b16 %v2446
    %v3173 = vunpack.c.l.b16 %v2447
    %v3174 = vunpack.c.h.b16 %v2447
    %v3175 = vunpack.c.l.b16 %v2448
    %v3176 = vunpack.c.h.b16 %v2448
    %v3177 = vunpack.c.l.b16 %v2449
    %v3178 = vunpack.c.h.b16 %v2449
    %v3179 = vunpack.c.l.b16 %v2450
    %v3180 = vunpack.c.h.b16 %v2450
    %v3181 = vunpack.c.l.b16 %v2451
    %v3182 = vunpack.c.h.b16 %v2451
    %v3183 = vunpack.c.l.b16 %v2452
    %v3184 = vunpack.c.h.b16 %v2452
    %v3185 = vunpack.c.l.b16 %v2453
    %v3186 = vunpack.c.h.b16 %v2453
    %v3187 = vunpack.c.l.b16 %v2454
    %v3188 = vunpack.c.h.b16 %v2454
    %v3189 = vunpack.c.l.b16 %v2455
    %v3190 = vunpack.c.h.b16 %v2455
    %v3191 = vunpack.c.l.b16 %v2456
    %v3192 = vunpack.c.h.b16 %v2456
    %v3193 = vunpack.c.l.b16 %v2457
    %v3194 = vunpack.c.h.b16 %v2457
    %v3195 = vunpack.c.l.b16 %v2458
    %v3196 = vunpack.c.h.b16 %v2458
    %v3197 = vunpack.c.l.b16 %v2459
    %v3198 = vunpack.c.h.b16 %v2459
    %v3199 = vunpack.c.l.b16 %v2460
    %v3200 = vunpack.c.h.b16 %v2460
    %v3201 = vunpack.c.l.b16 %v2461
    %v3202 = vunpack.c.h.b16 %v2461
    %v3203 = vunpack.c.l.b16 %v2462
    %v3204 = vunpack.c.h.b16 %v2462
    %v3205 = vunpack.c.l.b16 %v2463
    %v3206 = vunpack.c.h.b16 %v2463
    %v3207 = vunpack.c.l.b16 %v2464
    %v3208 = vunpack.c.h.b16 %v2464
    %v3209 = vunpack.c.l.b16 %v2465
    %v3210 = vunpack.c.h.b16 %v2465
    %v3211 = vunpack.c.l.b16 %v2466
    %v3212 = vunpack.c.h.b16 %v2466
    %v3213 = vunpack.c.l.b16 %v2467
    %v3214 = vunpack.c.h.b16 %v2467
    %v3215 = vunpack.c.l.b16 %v2468
    %v3216 = vunpack.c.h.b16 %v2468
    %v3217 = vunpack.c.l.b16 %v2469
    %v3218 = vunpack.c.h.b16 %v2469
    %v3219 = vunpack.c.l.b16 %v2470
    %v3220 = vunpack.c.h.b16 %v2470
    %v3221 = vunpack.c.l.b16 %v2471
    %v3222 = vunpack.c.h.b16 %v2471
    %v3223 = vunpack.c.l.b16 %v2472
    %v3224 = vunpack.c.h.b16 %v2472
    %v3225 = vunpack.c.l.b16 %v2473
    %v3226 = vunpack.c.h.b16 %v2473
    %v3227 = vunpack.c.l.b16 %v2474
    %v3228 = vunpack.c.h.b16 %v2474
    %v3229 = vunpack.c.l.b16 %v2475
    %v3230 = vunpack.c.h.b16 %v2475
    %v3231 = vunpack.c.l.b16 %v2476
    %v3232 = vunpack.c.h.b16 %v2476
    %v3233 = vunpack.c.l.b16 %v2477
    %v3234 = vunpack.c.h.b16 %v2477
    %v3235 = vunpack.c.l.b16 %v2478
    %v3236 = vunpack.c.h.b16 %v2478
    %v3237 = vunpack.c.l.b16 %v2479
    %v3238 = vunpack.c.h.b16 %v2479
    %v3239 = vunpack.c.l.b16 %v2480
    %v3240 = vunpack.c.h.b16 %v2480
    %v3241 = vunpack.c.l.b16 %v2481
    %v3242 = vunpack.c.h.b16 %v2481
    %v3243 = vunpack.c.l.b16 %v2482
    %v3244 = vunpack.c.h.b16 %v2482
    %v3245 = vunpack.c.l.b16 %v2483
    %v3246 = vunpack.c.h.b16 %v2483
    %v3247 = vunpack.c.l.b16 %v2484
    %v3248 = vunpack.c.h.b16 %v2484
    %v3249 = vunpack.c.l.b16 %v2485
    %v3250 = vunpack.c.h.b16 %v2485
    %v3251 = vunpack.c.l.b16 %v2486
    %v3252 = vunpack.c.h.b16 %v2486
    %v3253 = vunpack.c.l.b16 %v2487
    %v3254 = vunpack.c.h.b16 %v2487
    %v3255 = vunpack.c.l.b16 %v2488
    %v3256 = vunpack.c.h.b16 %v2488
    %v3257 = vunpack.c.l.b16 %v2489
    %v3258 = vunpack.c.h.b16 %v2489
    %v3259 = vunpack.c.l.b16 %v2490
    %v3260 = vunpack.c.h.b16 %v2490
    %v3261 = vunpack.c.l.b16 %v2491
    %v3262 = vunpack.c.h.b16 %v2491
    %v3263 = vunpack.c.l.b16 %v2492
    %v3264 = vunpack.c.h.b16 %v2492
    %v3265 = vunpack.c.l.b16 %v2493
    %v3266 = vunpack.c.h.b16 %v2493
    %v3267 = vunpack.c.l.b16 %v2494
    %v3268 = vunpack.c.h.b16 %v2494
    %v3269 = vunpack.c.l.b16 %v2495
    %v3270 = vunpack.c.h.b16 %v2495
    %v3271 = vunpack.c.l.b16 %v2496
    %v3272 = vunpack.c.h.b16 %v2496
    %v3273 = vunpack.c.l.b16 %v2497
    %v3274 = vunpack.c.h.b16 %v2497
    %v3275 = vunpack.c.l.b16 %v2498
    %v3276 = vunpack.c.h.b16 %v2498
    %v3277 = vpack.c.b16 %v2769, %v2765
    %v3278 = vpack.c.b16 %v2770, %v2766
    %v3279 = vpack.c.b16 %v2771, %v2767
    %v3280 = vpack.c.b16 %v2772, %v2768
    %v3281 = vpack.c.b16 %v2777, %v2773
    %v3282 = vpack.c.b16 %v2778, %v2774
    %v3283 = vpack.c.b16 %v2779, %v2775
    %v3284 = vpack.c.b16 %v2780, %v2776
    %v3285 = vpack.c.b16 %v2785, %v2781
    %v3286 = vpack.c.b16 %v2786, %v2782
    %v3287 = vpack.c.b16 %v2787, %v2783
    %v3288 = vpack.c.b16 %v2788, %v2784
    %v3289 = vpack.c.b16 %v2793, %v2789
    %v3290 = vpack.c.b16 %v2794, %v2790
    %v3291 = vpack.c.b16 %v2795, %v2791
    %v3292 = vpack.c.b16 %v2796, %v2792
    %v3293 = vpack.c.b16 %v2801, %v2797
    %v3294 = vpack.c.b16 %v2802, %v2798
    %v3295 = vpack.c.b16 %v2803, %v2799
    %v3296 = vpack.c.b16 %v2804, %v2800
    %v3297 = vpack.c.b16 %v2809, %v2805
    %v3298 = vpack.c.b16 %v2810, %v2806
    %v3299 = vpack.c.b16 %v2811, %v2807
    %v3300 = vpack.c.b16 %v2812, %v2808
    %v3301 = vpack.c.b16 %v2817, %v2813
    %v3302 = vpack.c.b16 %v2818, %v2814
    %v3303 = vpack.c.b16 %v2819, %v2815
    %v3304 = vpack.c.b16 %v2820, %v2816
    %v3305 = vpack.c.b16 %v2825, %v2821
    %v3306 = vpack.c.b16 %v2826, %v2822
    %v3307 = vpack.c.b16 %v2827, %v2823
    %v3308 = vpack.c.b16 %v2828, %v2824
    %v3309 = vpack.c.b16 %v2833, %v2829
    %v3310 = vpack.c.b16 %v2834, %v2830
    %v3311 = vpack.c.b16 %v2835, %v2831
    %v3312 = vpack.c.b16 %v2836, %v2832
    %v3313 = vpack.c.b16 %v2841, %v2837
    %v3314 = vpack.c.b16 %v2842, %v2838
    %v3315 = vpack.c.b16 %v2843, %v2839
    %v3316 = vpack.c.b16 %v2844, %v2840
    %v3317 = vpack.c.b16 %v2849, %v2845
    %v3318 = vpack.c.b16 %v2850, %v2846
    %v3319 = vpack.c.b16 %v2851, %v2847
    %v3320 = vpack.c.b16 %v2852, %v2848
    %v3321 = vpack.c.b16 %v2857, %v2853
    %v3322 = vpack.c.b16 %v2858, %v2854
    %v3323 = vpack.c.b16 %v2859, %v2855
    %v3324 = vpack.c.b16 %v2860, %v2856
    %v3325 = vpack.c.b16 %v2865, %v2861
    %v3326 = vpack.c.b16 %v2866, %v2862
    %v3327 = vpack.c.b16 %v2867, %v2863
    %v3328 = vpack.c.b16 %v2868, %v2864
    %v3329 = vpack.c.b16 %v2873, %v2869
    %v3330 = vpack.c.b16 %v2874, %v2870
    %v3331 = vpack.c.b16 %v2875, %v2871
    %v3332 = vpack.c.b16 %v2876, %v2872
    %v3333 = vpack.c.b16 %v2881, %v2877
    %v3334 = vpack.c.b16 %v2882, %v2878
    %v3335 = vpack.c.b16 %v2883, %v2879
    %v3336 = vpack.c.b16 %v2884, %v2880
    %v3337 = vpack.c.b16 %v2889, %v2885
    %v3338 = vpack.c.b16 %v2890, %v2886
    %v3339 = vpack.c.b16 %v2891, %v2887
    %v3340 = vpack.c.b16 %v2892, %v2888
    %v3341 = vpack.c.b16 %v2897, %v2893
    %v3342 = vpack.c.b16 %v2898, %v2894
    %v3343 = vpack.c.b16 %v2899, %v2895
    %v3344 = vpack.c.b16 %v2900, %v2896
    %v3345 = vpack.c.b16 %v2905, %v2901
    %v3346 = vpack.c.b16 %v2906, %v2902
    %v3347 = vpack.c.b16 %v2907, %v2903
    %v3348 = vpack.c.b16 %v2908, %v2904
    %v3349 = vpack.c.b16 %v2913, %v2909
    %v3350 = vpack.c.b16 %v2914, %v2910
    %v3351 = vpack.c.b16 %v2915, %v2911
    %v3352 = vpack.c.b16 %v2916, %v2912
    %v3353 = vpack.c.b16 %v2921, %v2917
    %v3354 = vpack.c.b16 %v2922, %v2918
    %v3355 = vpack.c.b16 %v2923, %v2919
    %v3356 = vpack.c.b16 %v2924, %v2920
    %v3357 = vpack.c.b16 %v2929, %v2925
    %v3358 = vpack.c.b16 %v2930, %v2926
    %v3359 = vpack.c.b16 %v2931, %v2927
    %v3360 = vpack.c.b16 %v2932, %v2928
    %v3361 = vpack.c.b16 %v2937, %v2933
    %v3362 = vpack.c.b16 %v2938, %v2934
    %v3363 = vpack.c.b16 %v2939, %v2935
    %v3364 = vpack.c.b16 %v2940, %v2936
    %v3365 = vpack.c.b16 %v2945, %v2941
    %v3366 = vpack.c.b16 %v2946, %v2942
    %v3367 = vpack.c.b16 %v2947, %v2943
    %v3368 = vpack.c.b16 %v2948, %v2944
    %v3369 = vpack.c.b16 %v2953, %v2949
    %v3370 = vpack.c.b16 %v2954, %v2950
    %v3371 = vpack.c.b16 %v2955, %v2951
    %v3372 = vpack.c.b16 %v2956, %v2952
    %v3373 = vpack.c.b16 %v2961, %v2957
    %v3374 = vpack.c.b16 %v2962, %v2958
    %v3375 = vpack.c.b16 %v2963, %v2959
    %v3376 = vpack.c.b16 %v2964, %v2960
    %v3377 = vpack.c.b16 %v2969, %v2965
    %v3378 = vpack.c.b16 %v2970, %v2966
    %v3379 = vpack.c.b16 %v2971, %v2967
    %v3380 = vpack.c.b16 %v2972, %v2968
    %v3381 = vpack.c.b16 %v2977, %v2973
    %v3382 = vpack.c.b16 %v2978, %v2974
    %v3383 = vpack.c.b16 %v2979, %v2975
    %v3384 = vpack.c.b16 %v2980, %v2976
    %v3385 = vpack.c.b16 %v2985, %v2981
    %v3386 = vpack.c.b16 %v2986, %v2982
    %v3387 = vpack.c.b16 %v2987, %v2983
    %v3388 = vpack.c.b16 %v2988, %v2984
    %v3389 = vpack.c.b16 %v2993, %v2989
    %v3390 = vpack.c.b16 %v2994, %v2990
    %v3391 = vpack.c.b16 %v2995, %v2991
    %v3392 = vpack.c.b16 %v2996, %v2992
    %v3393 = vpack.c.b16 %v3001, %v2997
    %v3394 = vpack.c.b16 %v3002, %v2998
    %v3395 = vpack.c.b16 %v3003, %v2999
    %v3396 = vpack.c.b16 %v3004, %v3000
    %v3397 = vpack.c.b16 %v3009, %v3005
    %v3398 = vpack.c.b16 %v3010, %v3006
    %v3399 = vpack.c.b16 %v3011, %v3007
    %v3400 = vpack.c.b16 %v3012, %v3008
    %v3401 = vpack.c.b16 %v3017, %v3013
    %v3402 = vpack.c.b16 %v3018, %v3014
    %v3403 = vpack.c.b16 %v3019, %v3015
    %v3404 = vpack.c.b16 %v3020, %v3016
    %v3405 = vpack.c.b16 %v3025, %v3021
    %v3406 = vpack.c.b16 %v3026, %v3022
    %v3407 = vpack.c.b16 %v3027, %v3023
    %v3408 = vpack.c.b16 %v3028, %v3024
    %v3409 = vpack.c.b16 %v3033, %v3029
    %v3410 = vpack.c.b16 %v3034, %v3030
    %v3411 = vpack.c.b16 %v3035, %v3031
    %v3412 = vpack.c.b16 %v3036, %v3032
    %v3413 = vpack.c.b16 %v3041, %v3037
    %v3414 = vpack.c.b16 %v3042, %v3038
    %v3415 = vpack.c.b16 %v3043, %v3039
    %v3416 = vpack.c.b16 %v3044, %v3040
    %v3417 = vpack.c.b16 %v3049, %v3045
    %v3418 = vpack.c.b16 %v3050, %v3046
    %v3419 = vpack.c.b16 %v3051, %v3047
    %v3420 = vpack.c.b16 %v3052, %v3048
    %v3421 = vpack.c.b16 %v3057, %v3053
    %v3422 = vpack.c.b16 %v3058, %v3054
    %v3423 = vpack.c.b16 %v3059, %v3055
    %v3424 = vpack.c.b16 %v3060, %v3056
    %v3425 = vpack.c.b16 %v3065, %v3061
    %v3426 = vpack.c.b16 %v3066, %v3062
    %v3427 = vpack.c.b16 %v3067, %v3063
    %v3428 = vpack.c.b16 %v3068, %v3064
    %v3429 = vpack.c.b16 %v3073, %v3069
    %v3430 = vpack.c.b16 %v3074, %v3070
    %v3431 = vpack.c.b16 %v3075, %v3071
    %v3432 = vpack.c.b16 %v3076, %v3072
    %v3433 = vpack.c.b16 %v3081, %v3077
    %v3434 = vpack.c.b16 %v3082, %v3078
    %v3435 = vpack.c.b16 %v3083, %v3079
    %v3436 = vpack.c.b16 %v3084, %v3080
    %v3437 = vpack.c.b16 %v3089, %v3085
    %v3438 = vpack.c.b16 %v3090, %v3086
    %v3439 = vpack.c.b16 %v3091, %v3087
    %v3440 = vpack.c.b16 %v3092, %v3088
    %v3441 = vpack.c.b16 %v3097, %v3093
    %v3442 = vpack.c.b16 %v3098, %v3094
    %v3443 = vpack.c.b16 %v3099, %v3095
    %v3444 = vpack.c.b16 %v3100, %v3096
    %v3445 = vpack.c.b16 %v3105, %v3101
    %v3446 = vpack.c.b16 %v3106, %v3102
    %v3447 = vpack.c.b16 %v3107, %v3103
    %v3448 = vpack.c.b16 %v3108, %v3104
    %v3449 = vpack.c.b16 %v3113, %v3109
    %v3450 = vpack.c.b16 %v3114, %v3110
    %v3451 = vpack.c.b16 %v3115, %v3111
    %v3452 = vpack.c.b16 %v3116, %v3112
    %v3453 = vpack.c.b16 %v3121, %v3117
    %v3454 = vpack.c.b16 %v3122, %v3118
    %v3455 = vpack.c.b16 %v3123, %v3119
    %v3456 = vpack.c.b16 %v3124, %v3120
    %v3457 = vpack.c.b16 %v3129, %v3125
    %v3458 = vpack.c.b16 %v3130, %v3126
    %v3459 = vpack.c.b16 %v3131, %v3127
    %v3460 = vpack.c.b16 %v3132, %v3128
    %v3461 = vpack.c.b16 %v3137, %v3133
    %v3462 = vpack.c.b16 %v3138, %v3134
    %v3463 = vpack.c.b16 %v3139, %v3135
    %v3464 = vpack.c.b16 %v3140, %v3136
    %v3465 = vpack.c.b16 %v3145, %v3141
    %v3466 = vpack.c.b16 %v3146, %v3142
    %v3467 = vpack.c.b16 %v3147, %v3143
    %v3468 = vpack.c.b16 %v3148, %v3144
    %v3469 = vpack.c.b16 %v3153, %v3149
    %v3470 = vpack.c.b16 %v3154, %v3150
    %v3471 = vpack.c.b16 %v3155, %v3151
    %v3472 = vpack.c.b16 %v3156, %v3152
    %v3473 = vpack.c.b16 %v3161, %v3157
    %v3474 = vpack.c.b16 %v3162, %v3158
    %v3475 = vpack.c.b16 %v3163, %v3159
    %v3476 = vpack.c.b16 %v3164, %v3160
    %v3477 = vpack.c.b16 %v3169, %v3165
    %v3478 = vpack.c.b16 %v3170, %v3166
    %v3479 = vpack.c.b16 %v3171, %v3167
    %v3480 = vpack.c.b16 %v3172, %v3168
    %v3481 = vpack.c.b16 %v3177, %v3173
    %v3482 = vpack.c.b16 %v3178, %v3174
    %v3483 = vpack.c.b16 %v3179, %v3175
    %v3484 = vpack.c.b16 %v3180, %v3176
    %v3485 = vpack.c.b16 %v3185, %v3181
    %v3486 = vpack.c.b16 %v3186, %v3182
    %v3487 = vpack.c.b16 %v3187, %v3183
    %v3488 = vpack.c.b16 %v3188, %v3184
    %v3489 = vpack.c.b16 %v3193, %v3189
    %v3490 = vpack.c.b16 %v3194, %v3190
    %v3491 = vpack.c.b16 %v3195, %v3191
    %v3492 = vpack.c.b16 %v3196, %v3192
    %v3493 = vpack.c.b16 %v3201, %v3197
    %v3494 = vpack.c.b16 %v3202, %v3198
    %v3495 = vpack.c.b16 %v3203, %v3199
    %v3496 = vpack.c.b16 %v3204, %v3200
    %v3497 = vpack.c.b16 %v3209, %v3205
    %v3498 = vpack.c.b16 %v3210, %v3206
    %v3499 = vpack.c.b16 %v3211, %v3207
    %v3500 = vpack.c.b16 %v3212, %v3208
    %v3501 = vpack.c.b16 %v3217, %v3213
    %v3502 = vpack.c.b16 %v3218, %v3214
    %v3503 = vpack.c.b16 %v3219, %v3215
    %v3504 = vpack.c.b16 %v3220, %v3216
    %v3505 = vpack.c.b16 %v3225, %v3221
    %v3506 = vpack.c.b16 %v3226, %v3222
    %v3507 = vpack.c.b16 %v3227, %v3223
    %v3508 = vpack.c.b16 %v3228, %v3224
    %v3509 = vpack.c.b16 %v3233, %v3229
    %v3510 = vpack.c.b16 %v3234, %v3230
    %v3511 = vpack.c.b16 %v3235, %v3231
    %v3512 = vpack.c.b16 %v3236, %v3232
    %v3513 = vpack.c.b16 %v3241, %v3237
    %v3514 = vpack.c.b16 %v3242, %v3238
    %v3515 = vpack.c.b16 %v3243, %v3239
    %v3516 = vpack.c.b16 %v3244, %v3240
    %v3517 = vpack.c.b16 %v3249, %v3245
    %v3518 = vpack.c.b16 %v3250, %v3246
    %v3519 = vpack.c.b16 %v3251, %v3247
    %v3520 = vpack.c.b16 %v3252, %v3248
    %v3521 = vpack.c.b16 %v3257, %v3253
    %v3522 = vpack.c.b16 %v3258, %v3254
    %v3523 = vpack.c.b16 %v3259, %v3255
    %v3524 = vpack.c.b16 %v3260, %v3256
    %v3525 = vpack.c.b16 %v3265, %v3261
    %v3526 = vpack.c.b16 %v3266, %v3262
    %v3527 = vpack.c.b16 %v3267, %v3263
    %v3528 = vpack.c.b16 %v3268, %v3264
    %v3529 = vpack.c.b16 %v3273, %v3269
    %v3530 = vpack.c.b16 %v3274, %v3270
    %v3531 = vpack.c.b16 %v3275, %v3271
    %v3532 = vpack.c.b16 %v3276, %v3272
    %3789 = vmatpush.bf16.msra.mxu0 %v3305
    %3790 = vmatpush.bf16.msra.mxu0 %v3301
    %3791 = vmatpush.bf16.msra.mxu0 %v3297
    %3792 = vmatpush.bf16.msra.mxu0 %v3293
    %3793 = vmatpush.bf16.msra.mxu0 %v3289
    %3794 = vmatpush.bf16.msra.mxu0 %v3285
    %3795 = vmatpush.bf16.msra.mxu0 %v3281
    %3796 = vmatpush.bf16.msra.mxu0 %v3277
    %3797 = vmatmul.bf16.gmra.mxu0 %v2235
    %v3798 = vpop.f32.mrf.mxu0
    %v3799 = vadd.f32 %v2501, %v3798
    %v3800 = vpop.f32.mrf.mxu0
    %3801 = vdwg.mxu0
    %3802 = vmatpush.bf16.msra.mxu0 %v3337
    %3803 = vmatpush.bf16.msra.mxu0 %v3333
    %3804 = vmatpush.bf16.msra.mxu0 %v3329
    %3805 = vmatpush.bf16.msra.mxu0 %v3325
    %3806 = vmatpush.bf16.msra.mxu0 %v3321
    %3807 = vmatpush.bf16.msra.mxu0 %v3317
    %3808 = vmatpush.bf16.msra.mxu0 %v3313
    %3809 = vmatpush.bf16.msra.mxu0 %v3309
    %3810 = vmatmul.bf16.gmra.mxu0 %v2236
    %v3811 = vpop.f32.mrf.mxu0
    %v3812 = vadd.f32 %v3799, %v3811
    %v3813 = vpop.f32.mrf.mxu0
    %3814 = vdwg.mxu0
    %3815 = vmatpush.bf16.msra.mxu0 %v3369
    %3816 = vmatpush.bf16.msra.mxu0 %v3365
    %3817 = vmatpush.bf16.msra.mxu0 %v3361
    %3818 = vmatpush.bf16.msra.mxu0 %v3357
    %3819 = vmatpush.bf16.msra.mxu0 %v3353
    %3820 = vmatpush.bf16.msra.mxu0 %v3349
    %3821 = vmatpush.bf16.msra.mxu0 %v3345
    %3822 = vmatpush.bf16.msra.mxu0 %v3341
    %3823 = vmatmul.bf16.gmra.mxu0 %v2237
    %v3824 = vpop.f32.mrf.mxu0
    %v3825 = vadd.f32 %v3812, %v3824
    %v3826 = vpop.f32.mrf.mxu0
    %3827 = vdwg.mxu0
    %3828 = vmatpush.bf16.msra.mxu0 %v3401
    %3829 = vmatpush.bf16.msra.mxu0 %v3397
    %3830 = vmatpush.bf16.msra.mxu0 %v3393
    %3831 = vmatpush.bf16.msra.mxu0 %v3389
    %3832 = vmatpush.bf16.msra.mxu0 %v3385
    %3833 = vmatpush.bf16.msra.mxu0 %v3381
    %3834 = vmatpush.bf16.msra.mxu0 %v3377
    %3835 = vmatpush.bf16.msra.mxu0 %v3373
    %3836 = vmatmul.bf16.gmra.mxu0 %v2238
    %v3837 = vpop.f32.mrf.mxu0
    %v3838 = vadd.f32 %v3825, %v3837
    %v3839 = vpop.f32.mrf.mxu0
    %3840 = vdwg.mxu0
    %3841 = vmatpush.bf16.msra.mxu0 %v3433
    %3842 = vmatpush.bf16.msra.mxu0 %v3429
    %3843 = vmatpush.bf16.msra.mxu0 %v3425
    %3844 = vmatpush.bf16.msra.mxu0 %v3421
    %3845 = vmatpush.bf16.msra.mxu0 %v3417
    %3846 = vmatpush.bf16.msra.mxu0 %v3413
    %3847 = vmatpush.bf16.msra.mxu0 %v3409
    %3848 = vmatpush.bf16.msra.mxu0 %v3405
    %3849 = vmatmul.bf16.gmra.mxu0 %v2239
    %v3850 = vpop.f32.mrf.mxu0
    %v3851 = vadd.f32 %v3838, %v3850
    %v3852 = vpop.f32.mrf.mxu0
    %3853 = vdwg.mxu0
    %3854 = vmatpush.bf16.msra.mxu0 %v3465
    %3855 = vmatpush.bf16.msra.mxu0 %v3461
    %3856 = vmatpush.bf16.msra.mxu0 %v3457
    %3857 = vmatpush.bf16.msra.mxu0 %v3453
    %3858 = vmatpush.bf16.msra.mxu0 %v3449
    %3859 = vmatpush.bf16.msra.mxu0 %v3445
    %3860 = vmatpush.bf16.msra.mxu0 %v3441
    %3861 = vmatpush.bf16.msra.mxu0 %v3437
    %3862 = vmatmul.bf16.gmra.mxu0 %v2240
    %v3863 = vpop.f32.mrf.mxu0
    %v3864 = vadd.f32 %v3851, %v3863
    %v3865 = vpop.f32.mrf.mxu0
    %3866 = vdwg.mxu0
    %3867 = vmatpush.bf16.msra.mxu0 %v3497
    %3868 = vmatpush.bf16.msra.mxu0 %v3493
    %3869 = vmatpush.bf16.msra.mxu0 %v3489
    %3870 = vmatpush.bf16.msra.mxu0 %v3485
    %3871 = vmatpush.bf16.msra.mxu0 %v3481
    %3872 = vmatpush.bf16.msra.mxu0 %v3477
    %3873 = vmatpush.bf16.msra.mxu0 %v3473
    %3874 = vmatpush.bf16.msra.mxu0 %v3469
    %3875 = vmatmul.bf16.gmra.mxu0 %v2241
    %v3876 = vpop.f32.mrf.mxu0
    %v3877 = vadd.f32 %v3864, %v3876
    %v3878 = vpop.f32.mrf.mxu0
    %3879 = vdwg.mxu0
    %3880 = vmatpush.bf16.msra.mxu0 %v3529
    %3881 = vmatpush.bf16.msra.mxu0 %v3525
    %3882 = vmatpush.bf16.msra.mxu0 %v3521
    %3883 = vmatpush.bf16.msra.mxu0 %v3517
    %3884 = vmatpush.bf16.msra.mxu0 %v3513
    %3885 = vmatpush.bf16.msra.mxu0 %v3509
    %3886 = vmatpush.bf16.msra.mxu0 %v3505
    %3887 = vmatpush.bf16.msra.mxu0 %v3501
    %3888 = vmatmul.bf16.gmra.mxu0 %v2242
    %v3889 = vpop.f32.mrf.mxu0
    %v3890 = vadd.f32 %v3877, %v3889
    %v3891 = vpop.f32.mrf.mxu0
    %3892 = vdwg.mxu0
    %3893 = vmatpush.bf16.msra.mxu0 %v3306
    %3894 = vmatpush.bf16.msra.mxu0 %v3302
    %3895 = vmatpush.bf16.msra.mxu0 %v3298
    %3896 = vmatpush.bf16.msra.mxu0 %v3294
    %3897 = vmatpush.bf16.msra.mxu0 %v3290
    %3898 = vmatpush.bf16.msra.mxu0 %v3286
    %3899 = vmatpush.bf16.msra.mxu0 %v3282
    %3900 = vmatpush.bf16.msra.mxu0 %v3278
    %3901 = vmatmul.bf16.gmra.mxu0 %v2235
    %v3902 = vpop.f32.mrf.mxu0
    %v3903 = vadd.f32 %v2502, %v3902
    %v3904 = vpop.f32.mrf.mxu0
    %3905 = vdwg.mxu0
    %3906 = vmatpush.bf16.msra.mxu0 %v3338
    %3907 = vmatpush.bf16.msra.mxu0 %v3334
    %3908 = vmatpush.bf16.msra.mxu0 %v3330
    %3909 = vmatpush.bf16.msra.mxu0 %v3326
    %3910 = vmatpush.bf16.msra.mxu0 %v3322
    %3911 = vmatpush.bf16.msra.mxu0 %v3318
    %3912 = vmatpush.bf16.msra.mxu0 %v3314
    %3913 = vmatpush.bf16.msra.mxu0 %v3310
    %3914 = vmatmul.bf16.gmra.mxu0 %v2236
    %v3915 = vpop.f32.mrf.mxu0
    %v3916 = vadd.f32 %v3903, %v3915
    %v3917 = vpop.f32.mrf.mxu0
    %3918 = vdwg.mxu0
    %3919 = vmatpush.bf16.msra.mxu0 %v3370
    %3920 = vmatpush.bf16.msra.mxu0 %v3366
    %3921 = vmatpush.bf16.msra.mxu0 %v3362
    %3922 = vmatpush.bf16.msra.mxu0 %v3358
    %3923 = vmatpush.bf16.msra.mxu0 %v3354
    %3924 = vmatpush.bf16.msra.mxu0 %v3350
    %3925 = vmatpush.bf16.msra.mxu0 %v3346
    %3926 = vmatpush.bf16.msra.mxu0 %v3342
    %3927 = vmatmul.bf16.gmra.mxu0 %v2237
    %v3928 = vpop.f32.mrf.mxu0
    %v3929 = vadd.f32 %v3916, %v3928
    %v3930 = vpop.f32.mrf.mxu0
    %3931 = vdwg.mxu0
    %3932 = vmatpush.bf16.msra.mxu0 %v3402
    %3933 = vmatpush.bf16.msra.mxu0 %v3398
    %3934 = vmatpush.bf16.msra.mxu0 %v3394
    %3935 = vmatpush.bf16.msra.mxu0 %v3390
    %3936 = vmatpush.bf16.msra.mxu0 %v3386
    %3937 = vmatpush.bf16.msra.mxu0 %v3382
    %3938 = vmatpush.bf16.msra.mxu0 %v3378
    %3939 = vmatpush.bf16.msra.mxu0 %v3374
    %3940 = vmatmul.bf16.gmra.mxu0 %v2238
    %v3941 = vpop.f32.mrf.mxu0
    %v3942 = vadd.f32 %v3929, %v3941
    %v3943 = vpop.f32.mrf.mxu0
    %3944 = vdwg.mxu0
    %3945 = vmatpush.bf16.msra.mxu0 %v3434
    %3946 = vmatpush.bf16.msra.mxu0 %v3430
    %3947 = vmatpush.bf16.msra.mxu0 %v3426
    %3948 = vmatpush.bf16.msra.mxu0 %v3422
    %3949 = vmatpush.bf16.msra.mxu0 %v3418
    %3950 = vmatpush.bf16.msra.mxu0 %v3414
    %3951 = vmatpush.bf16.msra.mxu0 %v3410
    %3952 = vmatpush.bf16.msra.mxu0 %v3406
    %3953 = vmatmul.bf16.gmra.mxu0 %v2239
    %v3954 = vpop.f32.mrf.mxu0
    %v3955 = vadd.f32 %v3942, %v3954
    %v3956 = vpop.f32.mrf.mxu0
    %3957 = vdwg.mxu0
    %3958 = vmatpush.bf16.msra.mxu0 %v3466
    %3959 = vmatpush.bf16.msra.mxu0 %v3462
    %3960 = vmatpush.bf16.msra.mxu0 %v3458
    %3961 = vmatpush.bf16.msra.mxu0 %v3454
    %3962 = vmatpush.bf16.msra.mxu0 %v3450
    %3963 = vmatpush.bf16.msra.mxu0 %v3446
    %3964 = vmatpush.bf16.msra.mxu0 %v3442
    %3965 = vmatpush.bf16.msra.mxu0 %v3438
    %3966 = vmatmul.bf16.gmra.mxu0 %v2240
    %v3967 = vpop.f32.mrf.mxu0
    %v3968 = vadd.f32 %v3955, %v3967
    %v3969 = vpop.f32.mrf.mxu0
    %3970 = vdwg.mxu0
    %3971 = vmatpush.bf16.msra.mxu0 %v3498
    %3972 = vmatpush.bf16.msra.mxu0 %v3494
    %3973 = vmatpush.bf16.msra.mxu0 %v3490
    %3974 = vmatpush.bf16.msra.mxu0 %v3486
    %3975 = vmatpush.bf16.msra.mxu0 %v3482
    %3976 = vmatpush.bf16.msra.mxu0 %v3478
    %3977 = vmatpush.bf16.msra.mxu0 %v3474
    %3978 = vmatpush.bf16.msra.mxu0 %v3470
    %3979 = vmatmul.bf16.gmra.mxu0 %v2241
    %v3980 = vpop.f32.mrf.mxu0
    %v3981 = vadd.f32 %v3968, %v3980
    %v3982 = vpop.f32.mrf.mxu0
    %3983 = vdwg.mxu0
    %3984 = vmatpush.bf16.msra.mxu0 %v3530
    %3985 = vmatpush.bf16.msra.mxu0 %v3526
    %3986 = vmatpush.bf16.msra.mxu0 %v3522
    %3987 = vmatpush.bf16.msra.mxu0 %v3518
    %3988 = vmatpush.bf16.msra.mxu0 %v3514
    %3989 = vmatpush.bf16.msra.mxu0 %v3510
    %3990 = vmatpush.bf16.msra.mxu0 %v3506
    %3991 = vmatpush.bf16.msra.mxu0 %v3502
    %3992 = vmatmul.bf16.gmra.mxu0 %v2242
    %v3993 = vpop.f32.mrf.mxu0
    %v3994 = vadd.f32 %v3981, %v3993
    %v3995 = vpop.f32.mrf.mxu0
    %3996 = vdwg.mxu0
    %3997 = vmatpush.bf16.msra.mxu0 %v3307
    %3998 = vmatpush.bf16.msra.mxu0 %v3303
    %3999 = vmatpush.bf16.msra.mxu0 %v3299
    %4000 = vmatpush.bf16.msra.mxu0 %v3295
    %4001 = vmatpush.bf16.msra.mxu0 %v3291
    %4002 = vmatpush.bf16.msra.mxu0 %v3287
    %4003 = vmatpush.bf16.msra.mxu0 %v3283
    %4004 = vmatpush.bf16.msra.mxu0 %v3279
    %4005 = vmatmul.bf16.gmra.mxu0 %v2235
    %v4006 = vpop.f32.mrf.mxu0
    %v4007 = vadd.f32 %v2503, %v4006
    %v4008 = vpop.f32.mrf.mxu0
    %4009 = vdwg.mxu0
    %4010 = vmatpush.bf16.msra.mxu0 %v3339
    %4011 = vmatpush.bf16.msra.mxu0 %v3335
    %4012 = vmatpush.bf16.msra.mxu0 %v3331
    %4013 = vmatpush.bf16.msra.mxu0 %v3327
    %4014 = vmatpush.bf16.msra.mxu0 %v3323
    %4015 = vmatpush.bf16.msra.mxu0 %v3319
    %4016 = vmatpush.bf16.msra.mxu0 %v3315
    %4017 = vmatpush.bf16.msra.mxu0 %v3311
    %4018 = vmatmul.bf16.gmra.mxu0 %v2236
    %v4019 = vpop.f32.mrf.mxu0
    %v4020 = vadd.f32 %v4007, %v4019
    %v4021 = vpop.f32.mrf.mxu0
    %4022 = vdwg.mxu0
    %4023 = vmatpush.bf16.msra.mxu0 %v3371
    %4024 = vmatpush.bf16.msra.mxu0 %v3367
    %4025 = vmatpush.bf16.msra.mxu0 %v3363
    %4026 = vmatpush.bf16.msra.mxu0 %v3359
    %4027 = vmatpush.bf16.msra.mxu0 %v3355
    %4028 = vmatpush.bf16.msra.mxu0 %v3351
    %4029 = vmatpush.bf16.msra.mxu0 %v3347
    %4030 = vmatpush.bf16.msra.mxu0 %v3343
    %4031 = vmatmul.bf16.gmra.mxu0 %v2237
    %v4032 = vpop.f32.mrf.mxu0
    %v4033 = vadd.f32 %v4020, %v4032
    %v4034 = vpop.f32.mrf.mxu0
    %4035 = vdwg.mxu0
    %4036 = vmatpush.bf16.msra.mxu0 %v3403
    %4037 = vmatpush.bf16.msra.mxu0 %v3399
    %4038 = vmatpush.bf16.msra.mxu0 %v3395
    %4039 = vmatpush.bf16.msra.mxu0 %v3391
    %4040 = vmatpush.bf16.msra.mxu0 %v3387
    %4041 = vmatpush.bf16.msra.mxu0 %v3383
    %4042 = vmatpush.bf16.msra.mxu0 %v3379
    %4043 = vmatpush.bf16.msra.mxu0 %v3375
    %4044 = vmatmul.bf16.gmra.mxu0 %v2238
    %v4045 = vpop.f32.mrf.mxu0
    %v4046 = vadd.f32 %v4033, %v4045
    %v4047 = vpop.f32.mrf.mxu0
    %4048 = vdwg.mxu0
    %4049 = vmatpush.bf16.msra.mxu0 %v3435
    %4050 = vmatpush.bf16.msra.mxu0 %v3431
    %4051 = vmatpush.bf16.msra.mxu0 %v3427
    %4052 = vmatpush.bf16.msra.mxu0 %v3423
    %4053 = vmatpush.bf16.msra.mxu0 %v3419
    %4054 = vmatpush.bf16.msra.mxu0 %v3415
    %4055 = vmatpush.bf16.msra.mxu0 %v3411
    %4056 = vmatpush.bf16.msra.mxu0 %v3407
    %4057 = vmatmul.bf16.gmra.mxu0 %v2239
    %v4058 = vpop.f32.mrf.mxu0
    %v4059 = vadd.f32 %v4046, %v4058
    %v4060 = vpop.f32.mrf.mxu0
    %4061 = vdwg.mxu0
    %4062 = vmatpush.bf16.msra.mxu0 %v3467
    %4063 = vmatpush.bf16.msra.mxu0 %v3463
    %4064 = vmatpush.bf16.msra.mxu0 %v3459
    %4065 = vmatpush.bf16.msra.mxu0 %v3455
    %4066 = vmatpush.bf16.msra.mxu0 %v3451
    %4067 = vmatpush.bf16.msra.mxu0 %v3447
    %4068 = vmatpush.bf16.msra.mxu0 %v3443
    %4069 = vmatpush.bf16.msra.mxu0 %v3439
    %4070 = vmatmul.bf16.gmra.mxu0 %v2240
    %v4071 = vpop.f32.mrf.mxu0
    %v4072 = vadd.f32 %v4059, %v4071
    %v4073 = vpop.f32.mrf.mxu0
    %4074 = vdwg.mxu0
    %4075 = vmatpush.bf16.msra.mxu0 %v3499
    %4076 = vmatpush.bf16.msra.mxu0 %v3495
    %4077 = vmatpush.bf16.msra.mxu0 %v3491
    %4078 = vmatpush.bf16.msra.mxu0 %v3487
    %4079 = vmatpush.bf16.msra.mxu0 %v3483
    %4080 = vmatpush.bf16.msra.mxu0 %v3479
    %4081 = vmatpush.bf16.msra.mxu0 %v3475
    %4082 = vmatpush.bf16.msra.mxu0 %v3471
    %4083 = vmatmul.bf16.gmra.mxu0 %v2241
    %v4084 = vpop.f32.mrf.mxu0
    %v4085 = vadd.f32 %v4072, %v4084
    %v4086 = vpop.f32.mrf.mxu0
    %4087 = vdwg.mxu0
    %4088 = vmatpush.bf16.msra.mxu0 %v3531
    %4089 = vmatpush.bf16.msra.mxu0 %v3527
    %4090 = vmatpush.bf16.msra.mxu0 %v3523
    %4091 = vmatpush.bf16.msra.mxu0 %v3519
    %4092 = vmatpush.bf16.msra.mxu0 %v3515
    %4093 = vmatpush.bf16.msra.mxu0 %v3511
    %4094 = vmatpush.bf16.msra.mxu0 %v3507
    %4095 = vmatpush.bf16.msra.mxu0 %v3503
    %4096 = vmatmul.bf16.gmra.mxu0 %v2242
    %v4097 = vpop.f32.mrf.mxu0
    %v4098 = vadd.f32 %v4085, %v4097
    %v4099 = vpop.f32.mrf.mxu0
    %4100 = vdwg.mxu0
    %4101 = vmatpush.bf16.msra.mxu0 %v3308
    %4102 = vmatpush.bf16.msra.mxu0 %v3304
    %4103 = vmatpush.bf16.msra.mxu0 %v3300
    %4104 = vmatpush.bf16.msra.mxu0 %v3296
    %4105 = vmatpush.bf16.msra.mxu0 %v3292
    %4106 = vmatpush.bf16.msra.mxu0 %v3288
    %4107 = vmatpush.bf16.msra.mxu0 %v3284
    %4108 = vmatpush.bf16.msra.mxu0 %v3280
    %4109 = vmatmul.bf16.gmra.mxu0 %v2235
    %v4110 = vpop.f32.mrf.mxu0
    %v4111 = vadd.f32 %v2504, %v4110
    %v4112 = vpop.f32.mrf.mxu0
    %4113 = vdwg.mxu0
    %4114 = vmatpush.bf16.msra.mxu0 %v3340
    %4115 = vmatpush.bf16.msra.mxu0 %v3336
    %4116 = vmatpush.bf16.msra.mxu0 %v3332
    %4117 = vmatpush.bf16.msra.mxu0 %v3328
    %4118 = vmatpush.bf16.msra.mxu0 %v3324
    %4119 = vmatpush.bf16.msra.mxu0 %v3320
    %4120 = vmatpush.bf16.msra.mxu0 %v3316
    %4121 = vmatpush.bf16.msra.mxu0 %v3312
    %4122 = vmatmul.bf16.gmra.mxu0 %v2236
    %v4123 = vpop.f32.mrf.mxu0
    %v4124 = vadd.f32 %v4111, %v4123
    %v4125 = vpop.f32.mrf.mxu0
    %4126 = vdwg.mxu0
    %4127 = vmatpush.bf16.msra.mxu0 %v3372
    %4128 = vmatpush.bf16.msra.mxu0 %v3368
    %4129 = vmatpush.bf16.msra.mxu0 %v3364
    %4130 = vmatpush.bf16.msra.mxu0 %v3360
    %4131 = vmatpush.bf16.msra.mxu0 %v3356
    %4132 = vmatpush.bf16.msra.mxu0 %v3352
    %4133 = vmatpush.bf16.msra.mxu0 %v3348
    %4134 = vmatpush.bf16.msra.mxu0 %v3344
    %4135 = vmatmul.bf16.gmra.mxu0 %v2237
    %v4136 = vpop.f32.mrf.mxu0
    %v4137 = vadd.f32 %v4124, %v4136
    %v4138 = vpop.f32.mrf.mxu0
    %4139 = vdwg.mxu0
    %4140 = vmatpush.bf16.msra.mxu0 %v3404
    %4141 = vmatpush.bf16.msra.mxu0 %v3400
    %4142 = vmatpush.bf16.msra.mxu0 %v3396
    %4143 = vmatpush.bf16.msra.mxu0 %v3392
    %4144 = vmatpush.bf16.msra.mxu0 %v3388
    %4145 = vmatpush.bf16.msra.mxu0 %v3384
    %4146 = vmatpush.bf16.msra.mxu0 %v3380
    %4147 = vmatpush.bf16.msra.mxu0 %v3376
    %4148 = vmatmul.bf16.gmra.mxu0 %v2238
    %v4149 = vpop.f32.mrf.mxu0
    %v4150 = vadd.f32 %v4137, %v4149
    %v4151 = vpop.f32.mrf.mxu0
    %4152 = vdwg.mxu0
    %4153 = vmatpush.bf16.msra.mxu0 %v3436
    %4154 = vmatpush.bf16.msra.mxu0 %v3432
    %4155 = vmatpush.bf16.msra.mxu0 %v3428
    %4156 = vmatpush.bf16.msra.mxu0 %v3424
    %4157 = vmatpush.bf16.msra.mxu0 %v3420
    %4158 = vmatpush.bf16.msra.mxu0 %v3416
    %4159 = vmatpush.bf16.msra.mxu0 %v3412
    %4160 = vmatpush.bf16.msra.mxu0 %v3408
    %4161 = vmatmul.bf16.gmra.mxu0 %v2239
    %v4162 = vpop.f32.mrf.mxu0
    %v4163 = vadd.f32 %v4150, %v4162
    %v4164 = vpop.f32.mrf.mxu0
    %4165 = vdwg.mxu0
    %4166 = vmatpush.bf16.msra.mxu0 %v3468
    %4167 = vmatpush.bf16.msra.mxu0 %v3464
    %4168 = vmatpush.bf16.msra.mxu0 %v3460
    %4169 = vmatpush.bf16.msra.mxu0 %v3456
    %4170 = vmatpush.bf16.msra.mxu0 %v3452
    %4171 = vmatpush.bf16.msra.mxu0 %v3448
    %4172 = vmatpush.bf16.msra.mxu0 %v3444
    %4173 = vmatpush.bf16.msra.mxu0 %v3440
    %4174 = vmatmul.bf16.gmra.mxu0 %v2240
    %v4175 = vpop.f32.mrf.mxu0
    %v4176 = vadd.f32 %v4163, %v4175
    %v4177 = vpop.f32.mrf.mxu0
    %4178 = vdwg.mxu0
    %4179 = vmatpush.bf16.msra.mxu0 %v3500
    %4180 = vmatpush.bf16.msra.mxu0 %v3496
    %4181 = vmatpush.bf16.msra.mxu0 %v3492
    %4182 = vmatpush.bf16.msra.mxu0 %v3488
    %4183 = vmatpush.bf16.msra.mxu0 %v3484
    %4184 = vmatpush.bf16.msra.mxu0 %v3480
    %4185 = vmatpush.bf16.msra.mxu0 %v3476
    %4186 = vmatpush.bf16.msra.mxu0 %v3472
    %4187 = vmatmul.bf16.gmra.mxu0 %v2241
    %v4188 = vpop.f32.mrf.mxu0
    %v4189 = vadd.f32 %v4176, %v4188
    %v4190 = vpop.f32.mrf.mxu0
    %4191 = vdwg.mxu0
    %4192 = vmatpush.bf16.msra.mxu0 %v3532
    %4193 = vmatpush.bf16.msra.mxu0 %v3528
    %4194 = vmatpush.bf16.msra.mxu0 %v3524
    %4195 = vmatpush.bf16.msra.mxu0 %v3520
    %4196 = vmatpush.bf16.msra.mxu0 %v3516
    %4197 = vmatpush.bf16.msra.mxu0 %v3512
    %4198 = vmatpush.bf16.msra.mxu0 %v3508
    %4199 = vmatpush.bf16.msra.mxu0 %v3504
    %4200 = vmatmul.bf16.gmra.mxu0 %v2242
    %v4201 = vpop.f32.mrf.mxu0
    %v4202 = vadd.f32 %v4189, %v4201
    %v4203 = vpop.f32.mrf.mxu0
    %4204 = vdwg.mxu0
    %v4205 = vmax.f32 %v3890, 0.0
    %v4206 = vmax.f32 %v3994, 0.0
    %v4207 = vmax.f32 %v4098, 0.0
    %v4208 = vmax.f32 %v4202, 0.0
    %v4209 = vpack.c.bf16 %v4205, %v4205
    %v4210 = vpack.c.bf16 %v4206, %v4206
    %v4211 = vpack.c.bf16 %v4207, %v4207
    %v4212 = vpack.c.bf16 %v4208, %v4208
    %v4213 = vld [vmem:[#allocation16] sm:$0xf]
    %v4214 = vld [vmem:[#allocation16 + $0x4] sm:$0xf]
    %v4215 = vld [vmem:[#allocation16 + $0x8] sm:$0xf]
    %v4216 = vld [vmem:[#allocation16 + $0xc] sm:$0xf]
    %v4217 = vld [vmem:[#allocation16 + $0x10] sm:$0xf]
    %v4218 = vld [vmem:[#allocation16 + $0x14] sm:$0xf]
    %v4219 = vld [vmem:[#allocation16 + $0x18] sm:$0xf]
    %v4220 = vld [vmem:[#allocation16 + $0x1c] sm:$0xf]
    %v4221 = vld [vmem:[#allocation16 + $0x20] sm:$0xf]
    %v4222 = vld [vmem:[#allocation16 + $0x24] sm:$0xf]
    %v4223 = vld [vmem:[#allocation16 + $0x28] sm:$0xf]
    %v4224 = vld [vmem:[#allocation16 + $0x2c] sm:$0xf]
    %v4225 = vld [vmem:[#allocation16 + $0x30] sm:$0xf]
    %v4226 = vld [vmem:[#allocation16 + $0x34] sm:$0xf]
    %v4227 = vld [vmem:[#allocation16 + $0x38] sm:$0xf]
    %v4228 = vld [vmem:[#allocation16 + $0x3c] sm:$0xf]
    %v4229 = vld [vmem:[#allocation16 + $0x40] sm:$0xf]
    %v4230 = vld [vmem:[#allocation16 + $0x44] sm:$0xf]
    %v4231 = vld [vmem:[#allocation16 + $0x48] sm:$0xf]
    %v4232 = vld [vmem:[#allocation16 + $0x4c] sm:$0xf]
    %v4233 = vld [vmem:[#allocation16 + $0x50] sm:$0xf]
    %v4234 = vld [vmem:[#allocation16 + $0x54] sm:$0xf]
    %v4235 = vld [vmem:[#allocation16 + $0x58] sm:$0xf]
    %v4236 = vld [vmem:[#allocation16 + $0x5c] sm:$0xf]
    %v4237 = vld [vmem:[#allocation16 + $0x60] sm:$0xf]
    %v4238 = vld [vmem:[#allocation16 + $0x64] sm:$0xf]
    %v4239 = vld [vmem:[#allocation16 + $0x68] sm:$0xf]
    %v4240 = vld [vmem:[#allocation16 + $0x6c] sm:$0xf]
    %v4241 = vld [vmem:[#allocation16 + $0x70] sm:$0xf]
    %v4242 = vld [vmem:[#allocation16 + $0x74] sm:$0xf]
    %v4243 = vld [vmem:[#allocation16 + $0x78] sm:$0xf]
    %v4244 = vld [vmem:[#allocation16 + $0x7c] sm:$0xf]
    %v4245 = vld [vmem:[#allocation16 + $0x80] sm:$0xf]
    %v4246 = vld [vmem:[#allocation16 + $0x84] sm:$0xf]
    %v4247 = vld [vmem:[#allocation16 + $0x88] sm:$0xf]
    %v4248 = vld [vmem:[#allocation16 + $0x8c] sm:$0xf]
    %v4249 = vld [vmem:[#allocation16 + $0x90] sm:$0xf]
    %v4250 = vld [vmem:[#allocation16 + $0x94] sm:$0xf]
    %v4251 = vld [vmem:[#allocation16 + $0x98] sm:$0xf]
    %v4252 = vld [vmem:[#allocation16 + $0x9c] sm:$0xf]
    %v4253 = vld [vmem:[#allocation16 + $0xa0] sm:$0xf]
    %v4254 = vld [vmem:[#allocation16 + $0xa4] sm:$0xf]
    %v4255 = vld [vmem:[#allocation16 + $0xa8] sm:$0xf]
    %v4256 = vld [vmem:[#allocation16 + $0xac] sm:$0xf]
    %v4257 = vld [vmem:[#allocation16 + $0xb0] sm:$0xf]
    %v4258 = vld [vmem:[#allocation16 + $0xb4] sm:$0xf]
    %v4259 = vld [vmem:[#allocation16 + $0xb8] sm:$0xf]
    %v4260 = vld [vmem:[#allocation16 + $0xbc] sm:$0xf]
    %v4261 = vld [vmem:[#allocation16 + $0xc0] sm:$0xf]
    %v4262 = vld [vmem:[#allocation16 + $0xc4] sm:$0xf]
    %v4263 = vld [vmem:[#allocation16 + $0xc8] sm:$0xf]
    %v4264 = vld [vmem:[#allocation16 + $0xcc] sm:$0xf]
    %v4265 = vld [vmem:[#allocation16 + $0xd0] sm:$0xf]
    %v4266 = vld [vmem:[#allocation16 + $0xd4] sm:$0xf]
    %v4267 = vld [vmem:[#allocation16 + $0xd8] sm:$0xf]
    %v4268 = vld [vmem:[#allocation16 + $0xdc] sm:$0xf]
    %v4269 = vld [vmem:[#allocation16 + $0xe0] sm:$0xf]
    %v4270 = vld [vmem:[#allocation16 + $0xe4] sm:$0xf]
    %v4271 = vld [vmem:[#allocation16 + $0xe8] sm:$0xf]
    %v4272 = vld [vmem:[#allocation16 + $0xec] sm:$0xf]
    %v4273 = vld [vmem:[#allocation16 + $0xf0] sm:$0xf]
    %v4274 = vld [vmem:[#allocation16 + $0xf4] sm:$0xf]
    %v4275 = vld [vmem:[#allocation16 + $0xf8] sm:$0xf]
    %v4276 = vld [vmem:[#allocation16 + $0xfc] sm:$0xf]
    %v4341 = vunpack.c.l.b16 %v4213
    %v4342 = vunpack.c.l.b16 %v4214
    %v4343 = vunpack.c.l.b16 %v4215
    %v4344 = vunpack.c.l.b16 %v4216
    %v4345 = vunpack.c.l.b16 %v4217
    %v4346 = vunpack.c.l.b16 %v4218
    %v4347 = vunpack.c.l.b16 %v4219
    %v4348 = vunpack.c.l.b16 %v4220
    %v4349 = vunpack.c.l.b16 %v4221
    %v4350 = vunpack.c.l.b16 %v4222
    %v4351 = vunpack.c.l.b16 %v4223
    %v4352 = vunpack.c.l.b16 %v4224
    %v4353 = vunpack.c.l.b16 %v4225
    %v4354 = vunpack.c.l.b16 %v4226
    %v4355 = vunpack.c.l.b16 %v4227
    %v4356 = vunpack.c.l.b16 %v4228
    %v4357 = vunpack.c.l.b16 %v4229
    %v4358 = vunpack.c.l.b16 %v4230
    %v4359 = vunpack.c.l.b16 %v4231
    %v4360 = vunpack.c.l.b16 %v4232
    %v4361 = vunpack.c.l.b16 %v4233
    %v4362 = vunpack.c.l.b16 %v4234
    %v4363 = vunpack.c.l.b16 %v4235
    %v4364 = vunpack.c.l.b16 %v4236
    %v4365 = vunpack.c.l.b16 %v4237
    %v4366 = vunpack.c.l.b16 %v4238
    %v4367 = vunpack.c.l.b16 %v4239
    %v4368 = vunpack.c.l.b16 %v4240
    %v4369 = vunpack.c.l.b16 %v4241
    %v4370 = vunpack.c.l.b16 %v4242
    %v4371 = vunpack.c.l.b16 %v4243
    %v4372 = vunpack.c.l.b16 %v4244
    %v4373 = vunpack.c.l.b16 %v4245
    %v4374 = vunpack.c.l.b16 %v4246
    %v4375 = vunpack.c.l.b16 %v4247
    %v4376 = vunpack.c.l.b16 %v4248
    %v4377 = vunpack.c.l.b16 %v4249
    %v4378 = vunpack.c.l.b16 %v4250
    %v4379 = vunpack.c.l.b16 %v4251
    %v4380 = vunpack.c.l.b16 %v4252
    %v4381 = vunpack.c.l.b16 %v4253
    %v4382 = vunpack.c.l.b16 %v4254
    %v4383 = vunpack.c.l.b16 %v4255
    %v4384 = vunpack.c.l.b16 %v4256
    %v4385 = vunpack.c.l.b16 %v4257
    %v4386 = vunpack.c.l.b16 %v4258
    %v4387 = vunpack.c.l.b16 %v4259
    %v4388 = vunpack.c.l.b16 %v4260
    %v4389 = vunpack.c.l.b16 %v4261
    %v4390 = vunpack.c.l.b16 %v4262
    %v4391 = vunpack.c.l.b16 %v4263
    %v4392 = vunpack.c.l.b16 %v4264
    %v4393 = vunpack.c.l.b16 %v4265
    %v4394 = vunpack.c.l.b16 %v4266
    %v4395 = vunpack.c.l.b16 %v4267
    %v4396 = vunpack.c.l.b16 %v4268
    %v4397 = vunpack.c.l.b16 %v4269
    %v4398 = vunpack.c.l.b16 %v4270
    %v4399 = vunpack.c.l.b16 %v4271
    %v4400 = vunpack.c.l.b16 %v4272
    %v4401 = vunpack.c.l.b16 %v4273
    %v4402 = vunpack.c.l.b16 %v4274
    %v4403 = vunpack.c.l.b16 %v4275
    %v4404 = vunpack.c.l.b16 %v4276
    %v4405 = vpack.c.b16 %v4342, %v4341
    %v4406 = vpack.c.b16 %v4344, %v4343
    %v4407 = vpack.c.b16 %v4346, %v4345
    %v4408 = vpack.c.b16 %v4348, %v4347
    %v4409 = vpack.c.b16 %v4350, %v4349
    %v4410 = vpack.c.b16 %v4352, %v4351
    %v4411 = vpack.c.b16 %v4354, %v4353
    %v4412 = vpack.c.b16 %v4356, %v4355
    %v4413 = vpack.c.b16 %v4358, %v4357
    %v4414 = vpack.c.b16 %v4360, %v4359
    %v4415 = vpack.c.b16 %v4362, %v4361
    %v4416 = vpack.c.b16 %v4364, %v4363
    %v4417 = vpack.c.b16 %v4366, %v4365
    %v4418 = vpack.c.b16 %v4368, %v4367
    %v4419 = vpack.c.b16 %v4370, %v4369
    %v4420 = vpack.c.b16 %v4372, %v4371
    %v4421 = vpack.c.b16 %v4374, %v4373
    %v4422 = vpack.c.b16 %v4376, %v4375
    %v4423 = vpack.c.b16 %v4378, %v4377
    %v4424 = vpack.c.b16 %v4380, %v4379
    %v4425 = vpack.c.b16 %v4382, %v4381
    %v4426 = vpack.c.b16 %v4384, %v4383
    %v4427 = vpack.c.b16 %v4386, %v4385
    %v4428 = vpack.c.b16 %v4388, %v4387
    %v4429 = vpack.c.b16 %v4390, %v4389
    %v4430 = vpack.c.b16 %v4392, %v4391
    %v4431 = vpack.c.b16 %v4394, %v4393
    %v4432 = vpack.c.b16 %v4396, %v4395
    %v4433 = vpack.c.b16 %v4398, %v4397
    %v4434 = vpack.c.b16 %v4400, %v4399
    %v4435 = vpack.c.b16 %v4402, %v4401
    %v4436 = vpack.c.b16 %v4404, %v4403
    %4469 = vmatpush.bf16.msra.mxu0 %v4412
    %4470 = vmatpush.bf16.msra.mxu0 %v4411
    %4471 = vmatpush.bf16.msra.mxu0 %v4410
    %4472 = vmatpush.bf16.msra.mxu0 %v4409
    %4473 = vmatpush.bf16.msra.mxu0 %v4408
    %4474 = vmatpush.bf16.msra.mxu0 %v4407
    %4475 = vmatpush.bf16.msra.mxu0 %v4406
    %4476 = vmatpush.bf16.msra.mxu0 %v4405
    %4477 = vmatmul.bf16.gmra.mxu0 %v4209
    %v4478 = vpop.f32.mrf.mxu0
    %v4479 = vadd.f32 0.0, %v4478
    %v4480 = vpop.f32.mrf.mxu0
    %4481 = vdwg.mxu0
    %4482 = vmatpush.bf16.msra.mxu0 %v4420
    %4483 = vmatpush.bf16.msra.mxu0 %v4419
    %4484 = vmatpush.bf16.msra.mxu0 %v4418
    %4485 = vmatpush.bf16.msra.mxu0 %v4417
    %4486 = vmatpush.bf16.msra.mxu0 %v4416
    %4487 = vmatpush.bf16.msra.mxu0 %v4415
    %4488 = vmatpush.bf16.msra.mxu0 %v4414
    %4489 = vmatpush.bf16.msra.mxu0 %v4413
    %4490 = vmatmul.bf16.gmra.mxu0 %v4210
    %v4491 = vpop.f32.mrf.mxu0
    %v4492 = vadd.f32 %v4479, %v4491
    %v4493 = vpop.f32.mrf.mxu0
    %4494 = vdwg.mxu0
    %4495 = vmatpush.bf16.msra.mxu0 %v4428
    %4496 = vmatpush.bf16.msra.mxu0 %v4427
    %4497 = vmatpush.bf16.msra.mxu0 %v4426
    %4498 = vmatpush.bf16.msra.mxu0 %v4425
    %4499 = vmatpush.bf16.msra.mxu0 %v4424
    %4500 = vmatpush.bf16.msra.mxu0 %v4423
    %4501 = vmatpush.bf16.msra.mxu0 %v4422
    %4502 = vmatpush.bf16.msra.mxu0 %v4421
    %4503 = vmatmul.bf16.gmra.mxu0 %v4211
    %v4504 = vpop.f32.mrf.mxu0
    %v4505 = vadd.f32 %v4492, %v4504
    %v4506 = vpop.f32.mrf.mxu0
    %4507 = vdwg.mxu0
    %4508 = vmatpush.bf16.msra.mxu0 %v4436
    %4509 = vmatpush.bf16.msra.mxu0 %v4435
    %4510 = vmatpush.bf16.msra.mxu0 %v4434
    %4511 = vmatpush.bf16.msra.mxu0 %v4433
    %4512 = vmatpush.bf16.msra.mxu0 %v4432
    %4513 = vmatpush.bf16.msra.mxu0 %v4431
    %4514 = vmatpush.bf16.msra.mxu0 %v4430
    %4515 = vmatpush.bf16.msra.mxu0 %v4429
    %4516 = vmatmul.bf16.gmra.mxu0 %v4212
    %v4517 = vpop.f32.mrf.mxu0
    %v4518 = vadd.f32 %v4505, %v4517
    %v4519 = vpop.f32.mrf.mxu0
    %4520 = vdwg.mxu0
    %v4553 = vunpack.c.l.b16 %v1193
    %v4554 = vunpack.c.l.b16 %v1194
    %v4555 = vunpack.c.l.b16 %v1195
    %v4556 = vunpack.c.l.b16 %v1196
    %v4557 = vunpack.c.l.b16 %v1197
    %v4558 = vunpack.c.l.b16 %v1198
    %v4559 = vunpack.c.l.b16 %v1199
    %v4560 = vunpack.c.l.b16 %v1200
    %v4561 = vunpack.c.l.b16 %v1201
    %v4562 = vunpack.c.l.b16 %v1202
    %v4563 = vunpack.c.l.b16 %v1203
    %v4564 = vunpack.c.l.b16 %v1204
    %v4565 = vunpack.c.l.b16 %v1205
    %v4566 = vunpack.c.l.b16 %v1206
    %v4567 = vunpack.c.l.b16 %v1207
    %v4568 = vunpack.c.l.b16 %v1208
    %v4569 = vunpack.c.l.b16 %v1209
    %v4570 = vunpack.c.l.b16 %v1210
    %v4571 = vunpack.c.l.b16 %v1211
    %v4572 = vunpack.c.l.b16 %v1212
    %v4573 = vunpack.c.l.b16 %v1213
    %v4574 = vunpack.c.l.b16 %v1214
    %v4575 = vunpack.c.l.b16 %v1215
    %v4576 = vunpack.c.l.b16 %v1216
    %v4577 = vunpack.c.l.b16 %v1217
    %v4578 = vunpack.c.l.b16 %v1218
    %v4579 = vunpack.c.l.b16 %v1219
    %v4580 = vunpack.c.l.b16 %v1220
    %v4581 = vunpack.c.l.b16 %v1221
    %v4582 = vunpack.c.l.b16 %v1222
    %v4583 = vunpack.c.l.b16 %v1223
    %v4584 = vunpack.c.l.b16 %v1224
    %v4585 = vpack.c.b16 %v4554, %v4553
    %v4586 = vpack.c.b16 %v4556, %v4555
    %v4587 = vpack.c.b16 %v4558, %v4557
    %v4588 = vpack.c.b16 %v4560, %v4559
    %v4589 = vpack.c.b16 %v4562, %v4561
    %v4590 = vpack.c.b16 %v4564, %v4563
    %v4591 = vpack.c.b16 %v4566, %v4565
    %v4592 = vpack.c.b16 %v4568, %v4567
    %v4593 = vpack.c.b16 %v4570, %v4569
    %v4594 = vpack.c.b16 %v4572, %v4571
    %v4595 = vpack.c.b16 %v4574, %v4573
    %v4596 = vpack.c.b16 %v4576, %v4575
    %v4597 = vpack.c.b16 %v4578, %v4577
    %v4598 = vpack.c.b16 %v4580, %v4579
    %v4599 = vpack.c.b16 %v4582, %v4581
    %v4600 = vpack.c.b16 %v4584, %v4583
    %4617 = vmatpush.bf16.msra.mxu0 %v4592
    %4618 = vmatpush.bf16.msra.mxu0 %v4591
    %4619 = vmatpush.bf16.msra.mxu0 %v4590
    %4620 = vmatpush.bf16.msra.mxu0 %v4589
    %4621 = vmatpush.bf16.msra.mxu0 %v4588
    %4622 = vmatpush.bf16.msra.mxu0 %v4587
    %4623 = vmatpush.bf16.msra.mxu0 %v4586
    %4624 = vmatpush.bf16.msra.mxu0 %v4585
    %4625 = vmatmul.bf16.gmra.mxu0 %v1191
    %v4626 = vpop.f32.mrf.mxu0
    %v4627 = vadd.f32 %v4518, %v4626
    %v4628 = vpop.f32.mrf.mxu0
    %4629 = vdwg.mxu0
    %4630 = vmatpush.bf16.msra.mxu0 %v4600
    %4631 = vmatpush.bf16.msra.mxu0 %v4599
    %4632 = vmatpush.bf16.msra.mxu0 %v4598
    %4633 = vmatpush.bf16.msra.mxu0 %v4597
    %4634 = vmatpush.bf16.msra.mxu0 %v4596
    %4635 = vmatpush.bf16.msra.mxu0 %v4595
    %4636 = vmatpush.bf16.msra.mxu0 %v4594
    %4637 = vmatpush.bf16.msra.mxu0 %v4593
    %4638 = vmatmul.bf16.gmra.mxu0 %v1192
    %v4639 = vpop.f32.mrf.mxu0
    %v4640 = vadd.f32 %v4627, %v4639
    %v4641 = vpop.f32.mrf.mxu0
    %4642 = vdwg.mxu0
    %v4643 = vld [vmem:[%s11] sm:$0x1]
    %v4645 = vperm.slane %v4643, 0
    %v4647 = vadd.f32 %v4640, %v4645
    %4648 = vst [vmem:[#allocation17] sm:$0x3] %v4647
    // Predicated region
    $region86: #{tpu_custom_call.1} parent=1 // pred_check
      _
    $region87: #{tpu_custom_call.1} parent=1 // pred_check_branch
      %4650 = sbr.rel (0) target = $region89
    $region88: #{tpu_custom_call.1} parent=1 // pred_region
      %4652 = vsyncadd [#allocation4], 0
      %s4654 = sshll.u32 [#allocation17], 4
      %s4655 = int_to_ptr.vmem [resolvable:$true] %s4654
      %s4656 = sshll.u32 %s12, 4
      %s4657 = int_to_ptr.hbm [resolvable:$true] %s4656
      %4659 = dma.vmem_to_hbm [thread:$0]  %s4655, 32, %s4657, [#allocation4]
    $region89: #{tpu_custom_call.1} parent=1 // pred_fallthru
      _
    // Predicated region
    $region90: #{tpu_custom_call.1} parent=1 // pred_check
      _
    $region91: #{tpu_custom_call.1} parent=1 // pred_check_branch
      %4661 = sbr.rel (0) target = $region93
    $region92: #{tpu_custom_call.1} parent=1 // pred_region
      %4663 = dma.done [#allocation4], 32
    $region93: #{tpu_custom_call.1} parent=1 // pred_fallthru
      _
    %4664 = vsyncpa [#allocation3], 1
    %4665 = vsyncpa [#allocation6], 1
    %4666 = vsyncpa [#allocation9], 1
    %4667 = vsyncpa [#allocation12], 1
    %4668 = vsyncpa [#allocation15], 1
    %4669 = vsyncpa [#allocation4], 1

</llo_original>
